<compile_context>
chip_gen: v7x
topology: tpu7x:2x2x1
jax: 0.10.0
libtpu: 0.0.40
codegen_flags: <defaults>
</compile_context>

<pallas_src>
import functools

import jax
import jax.numpy as jnp
from jax.experimental import pallas as pl
from jax.experimental.pallas import tpu as pltpu


LANE = 128  # TPU lane width; hidden dim is padded up to a multiple of this


def _round_up(x, m):
    return (x + m - 1) // m * m


# ----------------------------- Pallas kernels ------------------------------


def _combine_kernel(c1_ref, b1_ref, c2_ref, b2_ref, w1_ref, w2_ref):
    # Reconstruct both layers' per-relation weights from bases in one launch:
    #   (R, B) @ (B, N*Hp)  -> (R, N*Hp)
    #   (R, B) @ (B, Hp*Hp) -> (R, Hp*Hp)
    # bf16 MXU operands, f32 accumulation, bf16 stores (halves the HBM roundtrip
    # into the conv kernel).  Output lane widths are multiples of 128.
    w1_ref[...] = jnp.dot(
        c1_ref[...], b1_ref[...], preferred_element_type=jnp.float32
    ).astype(w1_ref.dtype)
    w2_ref[...] = jnp.dot(
        c2_ref[...], b2_ref[...], preferred_element_type=jnp.float32
    ).astype(w2_ref.dtype)


def _fused_conv_kernel(a_ref, w1s_ref, rb1_ref, w2s_ref, root2_ref, bias2_ref,
                       out_ref):
    """conv1 (identity features) + ReLU + conv2, fully fused, x1 stays in VMEM."""
    hp = out_ref.shape[-1]                       # padded hidden dim (multiple of 128)
    num_rel = w2s_ref.shape[0] // hp             # R (static)

    a = a_ref[...]                               # bf16 (N, R*N), relation-major cols

    # ---- conv1: relation loop collapsed into one deep-K contraction (K = R*N) --
    x1 = jnp.dot(a, w1s_ref[...], preferred_element_type=jnp.float32)
    x1 = jnp.maximum(x1 + rb1_ref[...], 0.0)     # rb1 = root1 + bias1 (hoisted), f32
    x1_bf = x1.astype(jnp.bfloat16)              # single downcast, reused below

    # ---- conv2 -----------------------------------------------------------------
    # self/root term + bias (f32 accumulation)
    acc = jnp.dot(x1_bf, root2_ref[...], preferred_element_type=jnp.float32)
    acc = acc + bias2_ref[...]

    # Y_r = x1 @ W2_r  (K = Hp each), stacked relation-major to (R*N, Hp),
    # then ONE aggregation matmul  A (N, R*N) @ Y (R*N, Hp)  with K = R*N.
    ys = [
        jnp.dot(x1_bf, w2s_ref[pl.ds(r * hp, hp), :],
                preferred_element_type=jnp.float32)
        for r in range(num_rel)
    ]
    y_stacked = jnp.concatenate(ys, axis=0).astype(jnp.bfloat16)  # (R*N, Hp)
    acc = acc + jnp.dot(a, y_stacked, preferred_element_type=jnp.float32)

    out_ref[...] = acc                           # lane-dense (Hp) unmasked f32 store


# ------------------------------ glue / wrapper ------------------------------


def build_mean_adjacency(edge_index, edge_type, num_nodes, num_relations):
    """Dense (R, N, N) adjacency implementing PyG's per-relation mean aggregation."""
    # TODO(synk): sparse scatter-mean message passing has no clean Pallas gather/
    # scatter at this scale, so it is densified here (XLA scatter-add) and done as
    # a matmul in-kernel.
    counts = jnp.zeros((num_relations, num_nodes, num_nodes), jnp.float32)
    # message flows source (row 0) -> target (row 1)
    counts = counts.at[edge_type, edge_index[1], edge_index[0]].add(1.0)
    deg = counts.sum(axis=2, keepdims=True)
    return counts / jnp.maximum(deg, 1.0)


def rgcn_layers_forward(params, adj):
    """Runs basis reconstruction + fused conv1/ReLU/conv2 via two pallas_calls."""
    R, N, _ = adj.shape
    B = params["basis1"].shape[0]
    H = params["bias1"].shape[0]
    Hp = _round_up(H, LANE)
    pad_h = Hp - H
    f32 = jnp.float32
    bf16 = jnp.bfloat16

    # --- pad the hidden dim so every output/weight is lane-dense --------------
    basis1_p = jnp.pad(params["basis1"].astype(f32), ((0, 0), (0, 0), (0, pad_h)))
    basis2_p = jnp.pad(params["basis2"].astype(f32), ((0, 0), (0, pad_h), (0, pad_h)))
    root1_p = jnp.pad(params["root1"].astype(f32), ((0, 0), (0, pad_h)))
    root2_p = jnp.pad(params["root2"].astype(f32), ((0, pad_h), (0, pad_h)))
    bias1_p = jnp.pad(params["bias1"].astype(f32), ((0, pad_h),))
    bias2_p = jnp.pad(params["bias2"].astype(f32), ((0, pad_h),))

    rb1 = root1_p + bias1_p[None, :]             # root1 + bias1 hoisted (f32)

    # --- kernel 1: both basis reconstructions in one launch (bf16 in/out) ------
    w1_flat, w2_flat = pl.pallas_call(
        _combine_kernel,
        out_shape=(jax.ShapeDtypeStruct((R, N * Hp), bf16),
                   jax.ShapeDtypeStruct((R, Hp * Hp), bf16)),
        compiler_params=pltpu.CompilerParams(vmem_limit_bytes=32 * 1024 * 1024),
    )(params["comp1"].astype(bf16), basis1_p.reshape(B, N * Hp).astype(bf16),
      params["comp2"].astype(bf16), basis2_p.reshape(B, Hp * Hp).astype(bf16))

    # free, row-major relabelings (HBM reshape) into the stacked layouts
    w1_stacked = w1_flat.reshape(R * N, Hp)      # rows indexed by (r, j)
    w2_stacked = w2_flat.reshape(R * Hp, Hp)     # rows indexed by (r, h)

    # relation-major flattening of the adjacency, bf16 for the MXU:
    # A[i, r*N + j] = adj[r, i, j]
    a1 = jnp.transpose(adj, (1, 0, 2)).reshape(N, R * N).astype(bf16)

    # --- kernel 2: fused conv1 + ReLU + conv2 ----------------------------------
    x2_padded = pl.pallas_call(
        _fused_conv_kernel,
        out_shape=jax.ShapeDtypeStruct((N, Hp), f32),
        grid=(1,),
        in_specs=[
            pl.BlockSpec((N, R * N), lambda i: (0, 0)),       # A (bf16)
            pl.BlockSpec((R * N, Hp), lambda i: (0, 0)),      # W1 stacked (bf16)
            pl.BlockSpec((N, Hp), lambda i: (0, 0)),          # root1 + bias1 (f32)
            pl.BlockSpec((R * Hp, Hp), lambda i: (0, 0)),     # W2 stacked (bf16)
            pl.BlockSpec((Hp, Hp), lambda i: (0, 0)),         # root2 (bf16)
            pl.BlockSpec((1, Hp), lambda i: (0, 0)),          # bias2 (f32)
        ],
        out_specs=pl.BlockSpec((N, Hp), lambda i: (0, 0)),
        compiler_params=pltpu.CompilerParams(
            dimension_semantics=("arbitrary",),
            vmem_limit_bytes=32 * 1024 * 1024,
        ),
    )(a1, w1_stacked, rb1, w2_stacked, root2_p.astype(bf16),
      bias2_p.reshape(1, Hp))

    return x2_padded[:, :H]                      # strip hidden-dim padding


def rgcn_link_predict_forward(params, edge_index, edge_type, num_nodes, num_relations):
    adj = build_mean_adjacency(edge_index, edge_type, num_nodes, num_relations)
    x2 = rgcn_layers_forward(params, adj)
    # relation embedding lookup (plain JAX gather; padding_idx=0 row is zero,
    # and like the PyTorch module edge_type in [0, R) indexes the (R+1)-row table)
    rel_embedded = params["emb_rel"][edge_type]
    return x2, rel_embedded


def reference_forward(params, edge_index, edge_type, num_nodes, num_relations):
    adj = build_mean_adjacency(edge_index, edge_type, num_nodes, num_relations)
    w1 = jnp.einsum("rb,bio->rio", params["comp1"], params["basis1"])
    w2 = jnp.einsum("rb,bio->rio", params["comp2"], params["basis2"])
    x1 = jnp.maximum(
        jnp.einsum("rij,rjh->ih", adj, w1) + params["root1"] + params["bias1"], 0.0
    )
    x2 = (
        jnp.einsum("rij,jh,rhk->ik", adj, x1, w2)
        + x1 @ params["root2"]
        + params["bias2"]
    )
    return x2, params["emb_rel"][edge_type]


# ---------------------------------- main ------------------------------------

if __name__ == "__main__":
    # small synthetic graph consistent with the module's __init__
    N = 16       # graph.num_nodes  (= in_channels of conv1)
    R = 4        # graph.num_edge_features (num_relations)
    H = 32       # hidden_dim (module default 100, kept small)
    B = 30       # num_bases (fixed in the module)
    E = 24       # number of edges

    key = jax.random.PRNGKey(0)
    ks = jax.random.split(key, 10)

    edge_index = jax.random.randint(ks[0], (2, E), 0, N, dtype=jnp.int32)
    edge_type = jax.random.randint(ks[1], (E,), 0, R, dtype=jnp.int32)

    emb_rel = 0.1 * jax.random.normal(ks[2], (R + 1, H), jnp.float32)
    emb_rel = emb_rel.at[0].set(0.0)  # padding_idx=0

    params = {
        "emb_rel": emb_rel,
        # conv1: in_channels = N (num_nodes), out_channels = H
        "comp1": 0.1 * jax.random.normal(ks[3], (R, B), jnp.float32),
        "basis1": 0.1 * jax.random.normal(ks[4], (B, N, H), jnp.float32),
        "root1": 0.1 * jax.random.normal(ks[5], (N, H), jnp.float32),
        "bias1": 0.01 * jax.random.normal(ks[6], (H,), jnp.float32),
        # conv2: in_channels = H, out_channels = H
        "comp2": 0.1 * jax.random.normal(ks[7], (R, B), jnp.float32),
        "basis2": 0.1 * jax.random.normal(ks[8], (B, H, H), jnp.float32),
        "root2": 0.1 * jax.random.normal(ks[9], (H, H), jnp.float32),
        "bias2": jnp.zeros((H,), jnp.float32),
    }

    fwd = jax.jit(
        functools.partial(
            rgcn_link_predict_forward, num_nodes=N, num_relations=R
        )
    )
    x_out, rel_out = fwd(params, edge_index, edge_type)
    jax.block_until_ready((x_out, rel_out))

    x_ref, rel_ref = reference_forward(params, edge_index, edge_type, N, R)
    assert x_out.shape == (N, H) and rel_out.shape == (E, H)
    # adjacency / weights / activations feed the MXU in bf16 (f32 accumulation),
    # so allow a slightly looser tolerance than a pure-f32 pipeline.
    assert jnp.allclose(x_out, x_ref, atol=2e-2, rtol=2e-2)
    assert jnp.allclose(rel_out, rel_ref, atol=1e-6, rtol=1e-6)

    print("KERNEL_OK")
</pallas_src>

<mosaic_0001>
module attributes {stable_mosaic.version = 11 : i64} {
  func.func @_combine_kernel(%arg0: memref<4x30xbf16, #tpu.memory_space<vmem>>, %arg1: memref<30x2048xbf16, #tpu.memory_space<vmem>>, %arg2: memref<4x30xbf16, #tpu.memory_space<vmem>>, %arg3: memref<30x16384xbf16, #tpu.memory_space<vmem>>, %arg4: memref<4x2048xbf16, #tpu.memory_space<vmem>>, %arg5: memref<4x16384xbf16, #tpu.memory_space<vmem>>) attributes {dimension_semantics = [], scalar_prefetch = 0 : i64, scratch_operands = 0 : i64, tpu.core_type = #tpu.core_type<tc>} {
    %c0 = arith.constant 0 : index
    %c0_0 = arith.constant 0 : index
    %0 = vector.load %arg0[%c0, %c0_0] : memref<4x30xbf16, #tpu.memory_space<vmem>>, vector<4x30xbf16>
    %c0_1 = arith.constant 0 : index
    %c0_2 = arith.constant 0 : index
    %1 = vector.load %arg1[%c0_1, %c0_2] : memref<30x2048xbf16, #tpu.memory_space<vmem>>, vector<30x2048xbf16>
    %cst = arith.constant dense<0.000000e+00> : vector<4x2048xf32>
    %2 = tpu.matmul %0, %1, %cst {dimension_numbers = #tpu.dot_dimension_numbers<[1], [0], [0], [1], [0, 0, 1, 1], [], []>} : vector<4x30xbf16>, vector<30x2048xbf16>, vector<4x2048xf32> -> vector<4x2048xf32>
    %3 = arith.truncf %2 : vector<4x2048xf32> to vector<4x2048xbf16>
    %c0_3 = arith.constant 0 : index
    %c0_4 = arith.constant 0 : index
    %4 = vector.load %arg4[%c0_3, %c0_4] : memref<4x2048xbf16, #tpu.memory_space<vmem>>, vector<4x2048xbf16>
    tpu.vector_store %arg4[%c0_3, %c0_4], %3 {strides = array<i32>} : memref<4x2048xbf16, #tpu.memory_space<vmem>>, vector<4x2048xbf16>,
    %c0_5 = arith.constant 0 : index
    %c0_6 = arith.constant 0 : index
    %5 = vector.load %arg2[%c0_5, %c0_6] : memref<4x30xbf16, #tpu.memory_space<vmem>>, vector<4x30xbf16>
    %c0_7 = arith.constant 0 : index
    %c0_8 = arith.constant 0 : index
    %6 = vector.load %arg3[%c0_7, %c0_8] : memref<30x16384xbf16, #tpu.memory_space<vmem>>, vector<30x16384xbf16>
    %cst_9 = arith.constant dense<0.000000e+00> : vector<4x16384xf32>
    %7 = tpu.matmul %5, %6, %cst_9 {dimension_numbers = #tpu.dot_dimension_numbers<[1], [0], [0], [1], [0, 0, 1, 1], [], []>} : vector<4x30xbf16>, vector<30x16384xbf16>, vector<4x16384xf32> -> vector<4x16384xf32>
    %8 = arith.truncf %7 : vector<4x16384xf32> to vector<4x16384xbf16>
    %c0_10 = arith.constant 0 : index
    %c0_11 = arith.constant 0 : index
    %9 = vector.load %arg5[%c0_10, %c0_11] : memref<4x16384xbf16, #tpu.memory_space<vmem>>, vector<4x16384xbf16>
    tpu.vector_store %arg5[%c0_10, %c0_11], %8 {strides = array<i32>} : memref<4x16384xbf16, #tpu.memory_space<vmem>>, vector<4x16384xbf16>,
    return
  }
}

module attributes {stable_mosaic.version = 11 : i64} {
  func.func @_fused_conv_kernel(%arg0: i32, %arg1: memref<16x64xbf16, #tpu.memory_space<vmem>>, %arg2: memref<64x128xbf16, #tpu.memory_space<vmem>>, %arg3: memref<16x128xf32, #tpu.memory_space<vmem>>, %arg4: memref<512x128xbf16, #tpu.memory_space<vmem>>, %arg5: memref<128x128xbf16, #tpu.memory_space<vmem>>, %arg6: memref<1x128xf32, #tpu.memory_space<vmem>>, %arg7: memref<16x128xf32, #tpu.memory_space<vmem>>) attributes {dimension_semantics = [#tpu.dimension_semantics<arbitrary>], iteration_bounds = array<i64: 1>, scalar_prefetch = 0 : i64, scratch_operands = 0 : i64, tpu.core_type = #tpu.core_type<tc>, window_params = [{pipeline_mode = #tpu.pipeline_mode<synchronous>, transform_indices = @transform_0, window_bounds = array<i64: 16, 64>}, {pipeline_mode = #tpu.pipeline_mode<synchronous>, transform_indices = @transform_1, window_bounds = array<i64: 64, 128>}, {pipeline_mode = #tpu.pipeline_mode<synchronous>, transform_indices = @transform_2, window_bounds = array<i64: 16, 128>}, {pipeline_mode = #tpu.pipeline_mode<synchronous>, transform_indices = @transform_3, window_bounds = array<i64: 512, 128>}, {pipeline_mode = #tpu.pipeline_mode<synchronous>, transform_indices = @transform_4, window_bounds = array<i64: 128, 128>}, {pipeline_mode = #tpu.pipeline_mode<synchronous>, transform_indices = @transform_5, window_bounds = array<i64: 1, 128>}, {pipeline_mode = #tpu.pipeline_mode<synchronous>, transform_indices = @transform_6, window_bounds = array<i64: 16, 128>}]} {
    %c0 = arith.constant 0 : index
    %c0_0 = arith.constant 0 : index
    %0 = vector.load %arg1[%c0, %c0_0] : memref<16x64xbf16, #tpu.memory_space<vmem>>, vector<16x64xbf16>
    %c0_1 = arith.constant 0 : index
    %c0_2 = arith.constant 0 : index
    %1 = vector.load %arg2[%c0_1, %c0_2] : memref<64x128xbf16, #tpu.memory_space<vmem>>, vector<64x128xbf16>
    %cst = arith.constant dense<0.000000e+00> : vector<16x128xf32>
    %2 = tpu.matmul %0, %1, %cst {dimension_numbers = #tpu.dot_dimension_numbers<[1], [0], [0], [1], [0, 0, 1, 1], [], []>} : vector<16x64xbf16>, vector<64x128xbf16>, vector<16x128xf32> -> vector<16x128xf32>
    %c0_3 = arith.constant 0 : index
    %c0_4 = arith.constant 0 : index
    %3 = vector.load %arg3[%c0_3, %c0_4] : memref<16x128xf32, #tpu.memory_space<vmem>>, vector<16x128xf32>
    %4 = arith.addf %2, %3 : vector<16x128xf32>
    %cst_5 = arith.constant 0.000000e+00 : f32
    %5 = vector.broadcast %cst_5 : f32 to vector<16x128xf32>
    %6 = arith.maximumf %4, %5 : vector<16x128xf32>
    %7 = arith.truncf %6 : vector<16x128xf32> to vector<16x128xbf16>
    %c0_6 = arith.constant 0 : index
    %c0_7 = arith.constant 0 : index
    %8 = vector.load %arg5[%c0_6, %c0_7] : memref<128x128xbf16, #tpu.memory_space<vmem>>, vector<128x128xbf16>
    %cst_8 = arith.constant dense<0.000000e+00> : vector<16x128xf32>
    %9 = tpu.matmul %7, %8, %cst_8 {dimension_numbers = #tpu.dot_dimension_numbers<[1], [0], [0], [1], [0, 0, 1, 1], [], []>} : vector<16x128xbf16>, vector<128x128xbf16>, vector<16x128xf32> -> vector<16x128xf32>
    %c0_9 = arith.constant 0 : index
    %c0_10 = arith.constant 0 : index
    %10 = vector.load %arg6[%c0_9, %c0_10] : memref<1x128xf32, #tpu.memory_space<vmem>>, vector<1x128xf32>
    %11 = vector.broadcast %10 : vector<1x128xf32> to vector<16x128xf32>
    %12 = arith.addf %9, %11 : vector<16x128xf32>
    %c0_11 = arith.constant 0 : index
    %c0_12 = arith.constant 0 : index
    %13 = vector.load %arg4[%c0_11, %c0_12] : memref<512x128xbf16, #tpu.memory_space<vmem>>, vector<128x128xbf16>
    %cst_13 = arith.constant dense<0.000000e+00> : vector<16x128xf32>
    %14 = tpu.matmul %7, %13, %cst_13 {dimension_numbers = #tpu.dot_dimension_numbers<[1], [0], [0], [1], [0, 0, 1, 1], [], []>} : vector<16x128xbf16>, vector<128x128xbf16>, vector<16x128xf32> -> vector<16x128xf32>
    %c128 = arith.constant 128 : index
    %c0_14 = arith.constant 0 : index
    %15 = vector.load %arg4[%c128, %c0_14] : memref<512x128xbf16, #tpu.memory_space<vmem>>, vector<128x128xbf16>
    %cst_15 = arith.constant dense<0.000000e+00> : vector<16x128xf32>
    %16 = tpu.matmul %7, %15, %cst_15 {dimension_numbers = #tpu.dot_dimension_numbers<[1], [0], [0], [1], [0, 0, 1, 1], [], []>} : vector<16x128xbf16>, vector<128x128xbf16>, vector<16x128xf32> -> vector<16x128xf32>
    %c256 = arith.constant 256 : index
    %c0_16 = arith.constant 0 : index
    %17 = vector.load %arg4[%c256, %c0_16] : memref<512x128xbf16, #tpu.memory_space<vmem>>, vector<128x128xbf16>
    %cst_17 = arith.constant dense<0.000000e+00> : vector<16x128xf32>
    %18 = tpu.matmul %7, %17, %cst_17 {dimension_numbers = #tpu.dot_dimension_numbers<[1], [0], [0], [1], [0, 0, 1, 1], [], []>} : vector<16x128xbf16>, vector<128x128xbf16>, vector<16x128xf32> -> vector<16x128xf32>
    %c384 = arith.constant 384 : index
    %c0_18 = arith.constant 0 : index
    %19 = vector.load %arg4[%c384, %c0_18] : memref<512x128xbf16, #tpu.memory_space<vmem>>, vector<128x128xbf16>
    %cst_19 = arith.constant dense<0.000000e+00> : vector<16x128xf32>
    %20 = tpu.matmul %7, %19, %cst_19 {dimension_numbers = #tpu.dot_dimension_numbers<[1], [0], [0], [1], [0, 0, 1, 1], [], []>} : vector<16x128xbf16>, vector<128x128xbf16>, vector<16x128xf32> -> vector<16x128xf32>
    %21 = tpu.concatenate %14, %16, %18, %20 in 0 : vector<16x128xf32>, vector<16x128xf32>, vector<16x128xf32>, vector<16x128xf32> -> vector<64x128xf32>
    %22 = arith.truncf %21 : vector<64x128xf32> to vector<64x128xbf16>
    %cst_20 = arith.constant dense<0.000000e+00> : vector<16x128xf32>
    %23 = tpu.matmul %0, %22, %cst_20 {dimension_numbers = #tpu.dot_dimension_numbers<[1], [0], [0], [1], [0, 0, 1, 1], [], []>} : vector<16x64xbf16>, vector<64x128xbf16>, vector<16x128xf32> -> vector<16x128xf32>
    %24 = arith.addf %12, %23 : vector<16x128xf32>
    %c0_21 = arith.constant 0 : index
    %c0_22 = arith.constant 0 : index
    %25 = vector.load %arg7[%c0_21, %c0_22] : memref<16x128xf32, #tpu.memory_space<vmem>>, vector<16x128xf32>
    tpu.vector_store %arg7[%c0_21, %c0_22], %24 {strides = array<i32>} : memref<16x128xf32, #tpu.memory_space<vmem>>, vector<16x128xf32>,
    return
  }
  func.func @transform_0(%arg0: i32) -> (i32, i32) {
    %c0_i32 = arith.constant 0 : i32
    %c0_i32_0 = arith.constant 0 : i32
    %c0_i32_1 = arith.constant 0 : i32
    return %c0_i32, %c0_i32_0 : i32, i32
  }
  func.func @transform_1(%arg0: i32) -> (i32, i32) {
    %c0_i32 = arith.constant 0 : i32
    %c0_i32_0 = arith.constant 0 : i32
    %c0_i32_1 = arith.constant 0 : i32
    return %c0_i32, %c0_i32_0 : i32, i32
  }
  func.func @transform_2(%arg0: i32) -> (i32, i32) {
    %c0_i32 = arith.constant 0 : i32
    %c0_i32_0 = arith.constant 0 : i32
    %c0_i32_1 = arith.constant 0 : i32
    return %c0_i32, %c0_i32_0 : i32, i32
  }
  func.func @transform_3(%arg0: i32) -> (i32, i32) {
    %c0_i32 = arith.constant 0 : i32
    %c0_i32_0 = arith.constant 0 : i32
    %c0_i32_1 = arith.constant 0 : i32
    return %c0_i32, %c0_i32_0 : i32, i32
  }
  func.func @transform_4(%arg0: i32) -> (i32, i32) {
    %c0_i32 = arith.constant 0 : i32
    %c0_i32_0 = arith.constant 0 : i32
    %c0_i32_1 = arith.constant 0 : i32
    return %c0_i32, %c0_i32_0 : i32, i32
  }
  func.func @transform_5(%arg0: i32) -> (i32, i32) {
    %c0_i32 = arith.constant 0 : i32
    %c0_i32_0 = arith.constant 0 : i32
    %c0_i32_1 = arith.constant 0 : i32
    return %c0_i32, %c0_i32_0 : i32, i32
  }
  func.func @transform_6(%arg0: i32) -> (i32, i32) {
    %c0_i32 = arith.constant 0 : i32
    %c0_i32_0 = arith.constant 0 : i32
    %c0_i32_1 = arith.constant 0 : i32
    return %c0_i32, %c0_i32_0 : i32, i32
  }
}

</mosaic_0001>

<llo_original>
// kernel: rgcn_link_predict_forward.3
$region0: #{rgcn_link_predict_forward.3}
  #allocation0 [shape = 'u32[]', space=smem, size = 0x4, offset = 0x4, fixed_abs, tag = 'smem constant byte address 0x4 - core index']
  #allocation1 [shape = 'u32[144,128]{1,0:T(1,128)}', space=vmem, size = 0x12000, scoped, tag = 'internal scratch']
  %s0 = inlined_call_operand.vmem [shape: bf16[16,64], index: 0, kind: input, shape index: {}]
  %s1 = inlined_call_operand.vmem [shape: bf16[64,128], index: 1, kind: input, shape index: {}]
  %s2 = inlined_call_operand.vmem [shape: f32[16,128], index: 2, kind: input, shape index: {}]
  %s3 = inlined_call_operand.vmem [shape: bf16[512,128], index: 3, kind: input, shape index: {}]
  %s4 = inlined_call_operand.vmem [shape: bf16[128,128], index: 4, kind: input, shape index: {}]
  %s5 = inlined_call_operand.vmem [shape: f32[1,128], index: 5, kind: input, shape index: {}]
  %s6 = inlined_call_operand.hbm [shape: f32[16,128], index: 6, kind: output, shape index: {}]
  %s7 = sld [smem:[#allocation0]]
  $region34: #{rgcn_link_predict_forward.3} parent=0
    _
  %s9 = ssub.s32 1, %s7
  %s10 = scalar_select 0, %s9, %s7
  $region1: #{rgcn_link_predict_forward.3} parent=0
    #allocation2 [shape = 'u8[8192]{0}', space=vmem, size = 0x2000, scoped, tag = 'output window, operand 0, single buffered']
    #allocation3 [shape = 's32[1]{0}', space=sflag, size = 0x4, scoped, tag = 'scoped memory for rgcn_link_predict_forward.3']
    %11 = vsyncpa [#allocation3], 0
    // Predicated region
    $region2: #{rgcn_link_predict_forward.3} parent=1 // pred_check
      _
    $region3: #{rgcn_link_predict_forward.3} parent=1 // pred_check_branch
      %13 = sbr.rel (0) target = $region5
    $region4: #{rgcn_link_predict_forward.3} parent=1 // pred_region
      _
    $region5: #{rgcn_link_predict_forward.3} parent=1 // pred_fallthru
      _
    // Predicated region
    $region6: #{rgcn_link_predict_forward.3} parent=1 // pred_check
      _
    $region7: #{rgcn_link_predict_forward.3} parent=1 // pred_check_branch
      %15 = sbr.rel (0) target = $region9
    $region8: #{rgcn_link_predict_forward.3} parent=1 // pred_region
      _
    $region9: #{rgcn_link_predict_forward.3} parent=1 // pred_fallthru
      _
    // Predicated region
    $region10: #{rgcn_link_predict_forward.3} parent=1 // pred_check
      _
    $region11: #{rgcn_link_predict_forward.3} parent=1 // pred_check_branch
      %17 = sbr.rel (0) target = $region13
    $region12: #{rgcn_link_predict_forward.3} parent=1 // pred_region
      _
    $region13: #{rgcn_link_predict_forward.3} parent=1 // pred_fallthru
      _
    // Predicated region
    $region14: #{rgcn_link_predict_forward.3} parent=1 // pred_check
      _
    $region15: #{rgcn_link_predict_forward.3} parent=1 // pred_check_branch
      %19 = sbr.rel (0) target = $region17
    $region16: #{rgcn_link_predict_forward.3} parent=1 // pred_region
      _
    $region17: #{rgcn_link_predict_forward.3} parent=1 // pred_fallthru
      _
    // Predicated region
    $region18: #{rgcn_link_predict_forward.3} parent=1 // pred_check
      _
    $region19: #{rgcn_link_predict_forward.3} parent=1 // pred_check_branch
      %21 = sbr.rel (0) target = $region21
    $region20: #{rgcn_link_predict_forward.3} parent=1 // pred_region
      _
    $region21: #{rgcn_link_predict_forward.3} parent=1 // pred_fallthru
      _
    // Predicated region
    $region22: #{rgcn_link_predict_forward.3} parent=1 // pred_check
      _
    $region23: #{rgcn_link_predict_forward.3} parent=1 // pred_check_branch
      %23 = sbr.rel (0) target = $region25
    $region24: #{rgcn_link_predict_forward.3} parent=1 // pred_region
      _
    $region25: #{rgcn_link_predict_forward.3} parent=1 // pred_fallthru
      _
    %v25 = vld [vmem:[%s0] sm:$0xf]
    %v26 = vld [vmem:[%s0 + $0x4] sm:$0xf]
    %v27 = vld [vmem:[%s1] sm:$0xf]
    %v28 = vld [vmem:[%s1 + $0x4] sm:$0xf]
    %v29 = vld [vmem:[%s1 + $0x8] sm:$0xf]
    %v30 = vld [vmem:[%s1 + $0xc] sm:$0xf]
    %v31 = vld [vmem:[%s1 + $0x10] sm:$0xf]
    %v32 = vld [vmem:[%s1 + $0x14] sm:$0xf]
    %v33 = vld [vmem:[%s1 + $0x18] sm:$0xf]
    %v34 = vld [vmem:[%s1 + $0x1c] sm:$0xf]
    %v35 = vld [vmem:[%s2] sm:$0xff]
    %v36 = vld [vmem:[%s2 + $0x8] sm:$0xff]
    %v39 = vunpack.c.l.b16 %v25
    %v40 = vunpack.c.l.b16 %v26
    %v41 = vpack.c.b16 %v40, %v39
    %v50 = vunpack.c.l.b16 %v27
    %v51 = vunpack.c.l.b16 %v28
    %v52 = vunpack.c.l.b16 %v29
    %v53 = vunpack.c.l.b16 %v30
    %v54 = vunpack.c.l.b16 %v31
    %v55 = vunpack.c.l.b16 %v32
    %v56 = vunpack.c.l.b16 %v33
    %v57 = vunpack.c.l.b16 %v34
    %v58 = vpack.c.b16 %v51, %v50
    %v59 = vpack.c.b16 %v53, %v52
    %v60 = vpack.c.b16 %v55, %v54
    %v61 = vpack.c.b16 %v57, %v56
    %vm66 = vcmask 523264
    %v68 = vsel %vm66, %v41, 0
    %70 = vmatprep.subr.bf16.mxu0 0
    %71 = vmatpush1.bf16.msra.mxu0 %v58
    %72 = vmatprep.subr.bf16.mxu0 0
    %73 = vmatpush1.bf16.msra.mxu0 %v59
    %74 = vmatprep.subr.bf16.mxu0 0
    %75 = vmatpush1.bf16.msra.mxu0 %v60
    %76 = vmatprep.subr.bf16.mxu0 0
    %77 = vmatpush1.bf16.msra.mxu0 %v61
    %78 = vmatprep.subr.bf16.mxu0 0
    %79 = vmatpush1.bf16.msra.mxu0 0
    %80 = vmatprep.subr.bf16.mxu0 0
    %81 = vmatpush1.bf16.msra.mxu0 0
    %82 = vmatprep.subr.bf16.mxu0 0
    %83 = vmatpush1.bf16.msra.mxu0 0
    %84 = vmatprep.subr.bf16.mxu0 0
    %85 = vmatpush1.bf16.msra.mxu0 0
    %86 = vmatprep.subr.bf16.mxu0 0
    %87 = vmatpush1.bf16.msra.mxu0 0
    %88 = vmatprep.subr.bf16.mxu0 0
    %89 = vmatpush1.bf16.msra.mxu0 0
    %90 = vmatprep.subr.bf16.mxu0 0
    %91 = vmatpush1.bf16.msra.mxu0 0
    %92 = vmatprep.subr.bf16.mxu0 0
    %93 = vmatpush1.bf16.msra.mxu0 0
    %94 = vmatprep.subr.bf16.mxu0 0
    %95 = vmatpush1.bf16.msra.mxu0 0
    %96 = vmatprep.subr.bf16.mxu0 0
    %97 = vmatpush1.bf16.msra.mxu0 0
    %98 = vmatprep.subr.bf16.mxu0 0
    %99 = vmatpush1.bf16.msra.mxu0 0
    %100 = vmatprep.subr.bf16.mxu0 0
    %101 = vmatpush1.bf16.msra.mxu0 0
    %102 = vmatprep.mubr.bf16.mxu0 0
    %103 = vmatmul.mubr.bf16.gmra.mrb[0].mxu0 %v68
    %v104 = vpop.f32.mrb[0].mxu0
    %v105 = vadd.f32 %v35, %v104
    %v106 = vpop.f32.mrb[0].mxu0
    %v107 = vpop.f32.mrb[0].mxu0
    %v108 = vadd.f32 %v36, %v107
    %v109 = vpop.f32.mrb[0].mxu0
    %110 = vdwg.mxu0
    %v111 = vmax.f32 %v105, 0.0
    %v112 = vmax.f32 %v108, 0.0
    %v113 = vpack.c.bf16 %v112, %v111
    %v114 = vld [vmem:[%s4] sm:$0xf]
    %v115 = vld [vmem:[%s4 + $0x4] sm:$0xf]
    %v116 = vld [vmem:[%s4 + $0x8] sm:$0xf]
    %v117 = vld [vmem:[%s4 + $0xc] sm:$0xf]
    %v118 = vld [vmem:[%s4 + $0x10] sm:$0xf]
    %v119 = vld [vmem:[%s4 + $0x14] sm:$0xf]
    %v120 = vld [vmem:[%s4 + $0x18] sm:$0xf]
    %v121 = vld [vmem:[%s4 + $0x1c] sm:$0xf]
    %v122 = vld [vmem:[%s4 + $0x20] sm:$0xf]
    %v123 = vld [vmem:[%s4 + $0x24] sm:$0xf]
    %v124 = vld [vmem:[%s4 + $0x28] sm:$0xf]
    %v125 = vld [vmem:[%s4 + $0x2c] sm:$0xf]
    %v126 = vld [vmem:[%s4 + $0x30] sm:$0xf]
    %v127 = vld [vmem:[%s4 + $0x34] sm:$0xf]
    %v128 = vld [vmem:[%s4 + $0x38] sm:$0xf]
    %v129 = vld [vmem:[%s4 + $0x3c] sm:$0xf]
    %v130 = vld [vmem:[%s5] sm:$0x1]
    %v132 = vlaneseq
    %v133 = vshrl.u32 %v132, 7
    %v134 = vsub.s32 0, %v133
    %v135 = vrot.slane %v130, %v134
    %v153 = vunpack.c.l.b16 %v114
    %v154 = vunpack.c.l.b16 %v115
    %v155 = vunpack.c.l.b16 %v116
    %v156 = vunpack.c.l.b16 %v117
    %v157 = vunpack.c.l.b16 %v118
    %v158 = vunpack.c.l.b16 %v119
    %v159 = vunpack.c.l.b16 %v120
    %v160 = vunpack.c.l.b16 %v121
    %v161 = vunpack.c.l.b16 %v122
    %v162 = vunpack.c.l.b16 %v123
    %v163 = vunpack.c.l.b16 %v124
    %v164 = vunpack.c.l.b16 %v125
    %v165 = vunpack.c.l.b16 %v126
    %v166 = vunpack.c.l.b16 %v127
    %v167 = vunpack.c.l.b16 %v128
    %v168 = vunpack.c.l.b16 %v129
    %v169 = vpack.c.b16 %v154, %v153
    %v170 = vpack.c.b16 %v156, %v155
    %v171 = vpack.c.b16 %v158, %v157
    %v172 = vpack.c.b16 %v160, %v159
    %v173 = vpack.c.b16 %v162, %v161
    %v174 = vpack.c.b16 %v164, %v163
    %v175 = vpack.c.b16 %v166, %v165
    %v176 = vpack.c.b16 %v168, %v167
    %185 = vmatprep.subr.bf16.mxu0 0
    %186 = vmatpush1.bf16.msra.mxu0 %v169
    %187 = vmatprep.subr.bf16.mxu0 0
    %188 = vmatpush1.bf16.msra.mxu0 %v170
    %189 = vmatprep.subr.bf16.mxu0 0
    %190 = vmatpush1.bf16.msra.mxu0 %v171
    %191 = vmatprep.subr.bf16.mxu0 0
    %192 = vmatpush1.bf16.msra.mxu0 %v172
    %193 = vmatprep.subr.bf16.mxu0 0
    %194 = vmatpush1.bf16.msra.mxu0 %v173
    %195 = vmatprep.subr.bf16.mxu0 0
    %196 = vmatpush1.bf16.msra.mxu0 %v174
    %197 = vmatprep.subr.bf16.mxu0 0
    %198 = vmatpush1.bf16.msra.mxu0 %v175
    %199 = vmatprep.subr.bf16.mxu0 0
    %200 = vmatpush1.bf16.msra.mxu0 %v176
    %201 = vmatprep.subr.bf16.mxu0 0
    %202 = vmatpush1.bf16.msra.mxu0 0
    %203 = vmatprep.subr.bf16.mxu0 0
    %204 = vmatpush1.bf16.msra.mxu0 0
    %205 = vmatprep.subr.bf16.mxu0 0
    %206 = vmatpush1.bf16.msra.mxu0 0
    %207 = vmatprep.subr.bf16.mxu0 0
    %208 = vmatpush1.bf16.msra.mxu0 0
    %209 = vmatprep.subr.bf16.mxu0 0
    %210 = vmatpush1.bf16.msra.mxu0 0
    %211 = vmatprep.subr.bf16.mxu0 0
    %212 = vmatpush1.bf16.msra.mxu0 0
    %213 = vmatprep.subr.bf16.mxu0 0
    %214 = vmatpush1.bf16.msra.mxu0 0
    %215 = vmatprep.subr.bf16.mxu0 0
    %216 = vmatpush1.bf16.msra.mxu0 0
    %217 = vmatprep.mubr.bf16.mxu0 0
    %218 = vmatmul.mubr.bf16.gmra.mrb[0].mxu0 %v113
    %v219 = vpop.f32.mrb[0].mxu0
    %v220 = vadd.f32 %v135, %v219
    %v221 = vpop.f32.mrb[0].mxu0
    %v222 = vpop.f32.mrb[0].mxu0
    %v223 = vadd.f32 %v135, %v222
    %v224 = vpop.f32.mrb[0].mxu0
    %225 = vdwg.mxu0
    %v226 = vld [vmem:[%s3] sm:$0xf]
    %v227 = vld [vmem:[%s3 + $0x4] sm:$0xf]
    %v228 = vld [vmem:[%s3 + $0x8] sm:$0xf]
    %v229 = vld [vmem:[%s3 + $0xc] sm:$0xf]
    %v230 = vld [vmem:[%s3 + $0x10] sm:$0xf]
    %v231 = vld [vmem:[%s3 + $0x14] sm:$0xf]
    %v232 = vld [vmem:[%s3 + $0x18] sm:$0xf]
    %v233 = vld [vmem:[%s3 + $0x1c] sm:$0xf]
    %v234 = vld [vmem:[%s3 + $0x20] sm:$0xf]
    %v235 = vld [vmem:[%s3 + $0x24] sm:$0xf]
    %v236 = vld [vmem:[%s3 + $0x28] sm:$0xf]
    %v237 = vld [vmem:[%s3 + $0x2c] sm:$0xf]
    %v238 = vld [vmem:[%s3 + $0x30] sm:$0xf]
    %v239 = vld [vmem:[%s3 + $0x34] sm:$0xf]
    %v240 = vld [vmem:[%s3 + $0x38] sm:$0xf]
    %v241 = vld [vmem:[%s3 + $0x3c] sm:$0xf]
    %v258 = vunpack.c.l.b16 %v226
    %v259 = vunpack.c.l.b16 %v227
    %v260 = vunpack.c.l.b16 %v228
    %v261 = vunpack.c.l.b16 %v229
    %v262 = vunpack.c.l.b16 %v230
    %v263 = vunpack.c.l.b16 %v231
    %v264 = vunpack.c.l.b16 %v232
    %v265 = vunpack.c.l.b16 %v233
    %v266 = vunpack.c.l.b16 %v234
    %v267 = vunpack.c.l.b16 %v235
    %v268 = vunpack.c.l.b16 %v236
    %v269 = vunpack.c.l.b16 %v237
    %v270 = vunpack.c.l.b16 %v238
    %v271 = vunpack.c.l.b16 %v239
    %v272 = vunpack.c.l.b16 %v240
    %v273 = vunpack.c.l.b16 %v241
    %v274 = vpack.c.b16 %v259, %v258
    %v275 = vpack.c.b16 %v261, %v260
    %v276 = vpack.c.b16 %v263, %v262
    %v277 = vpack.c.b16 %v265, %v264
    %v278 = vpack.c.b16 %v267, %v266
    %v279 = vpack.c.b16 %v269, %v268
    %v280 = vpack.c.b16 %v271, %v270
    %v281 = vpack.c.b16 %v273, %v272
    %290 = vmatprep.subr.bf16.mxu0 0
    %291 = vmatpush1.bf16.msra.mxu0 %v274
    %292 = vmatprep.subr.bf16.mxu0 0
    %293 = vmatpush1.bf16.msra.mxu0 %v275
    %294 = vmatprep.subr.bf16.mxu0 0
    %295 = vmatpush1.bf16.msra.mxu0 %v276
    %296 = vmatprep.subr.bf16.mxu0 0
    %297 = vmatpush1.bf16.msra.mxu0 %v277
    %298 = vmatprep.subr.bf16.mxu0 0
    %299 = vmatpush1.bf16.msra.mxu0 %v278
    %300 = vmatprep.subr.bf16.mxu0 0
    %301 = vmatpush1.bf16.msra.mxu0 %v279
    %302 = vmatprep.subr.bf16.mxu0 0
    %303 = vmatpush1.bf16.msra.mxu0 %v280
    %304 = vmatprep.subr.bf16.mxu0 0
    %305 = vmatpush1.bf16.msra.mxu0 %v281
    %306 = vmatprep.subr.bf16.mxu0 0
    %307 = vmatpush1.bf16.msra.mxu0 0
    %308 = vmatprep.subr.bf16.mxu0 0
    %309 = vmatpush1.bf16.msra.mxu0 0
    %310 = vmatprep.subr.bf16.mxu0 0
    %311 = vmatpush1.bf16.msra.mxu0 0
    %312 = vmatprep.subr.bf16.mxu0 0
    %313 = vmatpush1.bf16.msra.mxu0 0
    %314 = vmatprep.subr.bf16.mxu0 0
    %315 = vmatpush1.bf16.msra.mxu0 0
    %316 = vmatprep.subr.bf16.mxu0 0
    %317 = vmatpush1.bf16.msra.mxu0 0
    %318 = vmatprep.subr.bf16.mxu0 0
    %319 = vmatpush1.bf16.msra.mxu0 0
    %320 = vmatprep.subr.bf16.mxu0 0
    %321 = vmatpush1.bf16.msra.mxu0 0
    %322 = vmatprep.mubr.bf16.mxu0 0
    %323 = vmatmul.mubr.bf16.gmra.mrb[0].mxu0 %v113
    %v324 = vpop.f32.mrb[0].mxu0
    %v325 = vadd.f32 0.0, %v324
    %v326 = vpop.f32.mrb[0].mxu0
    %v327 = vpop.f32.mrb[0].mxu0
    %v328 = vadd.f32 0.0, %v327
    %v329 = vpop.f32.mrb[0].mxu0
    %330 = vdwg.mxu0
    %v331 = vld [vmem:[%s3 + $0x40] sm:$0xf]
    %v332 = vld [vmem:[%s3 + $0x44] sm:$0xf]
    %v333 = vld [vmem:[%s3 + $0x48] sm:$0xf]
    %v334 = vld [vmem:[%s3 + $0x4c] sm:$0xf]
    %v335 = vld [vmem:[%s3 + $0x50] sm:$0xf]
    %v336 = vld [vmem:[%s3 + $0x54] sm:$0xf]
    %v337 = vld [vmem:[%s3 + $0x58] sm:$0xf]
    %v338 = vld [vmem:[%s3 + $0x5c] sm:$0xf]
    %v339 = vld [vmem:[%s3 + $0x60] sm:$0xf]
    %v340 = vld [vmem:[%s3 + $0x64] sm:$0xf]
    %v341 = vld [vmem:[%s3 + $0x68] sm:$0xf]
    %v342 = vld [vmem:[%s3 + $0x6c] sm:$0xf]
    %v343 = vld [vmem:[%s3 + $0x70] sm:$0xf]
    %v344 = vld [vmem:[%s3 + $0x74] sm:$0xf]
    %v345 = vld [vmem:[%s3 + $0x78] sm:$0xf]
    %v346 = vld [vmem:[%s3 + $0x7c] sm:$0xf]
    %v363 = vunpack.c.l.b16 %v331
    %v364 = vunpack.c.l.b16 %v332
    %v365 = vunpack.c.l.b16 %v333
    %v366 = vunpack.c.l.b16 %v334
    %v367 = vunpack.c.l.b16 %v335
    %v368 = vunpack.c.l.b16 %v336
    %v369 = vunpack.c.l.b16 %v337
    %v370 = vunpack.c.l.b16 %v338
    %v371 = vunpack.c.l.b16 %v339
    %v372 = vunpack.c.l.b16 %v340
    %v373 = vunpack.c.l.b16 %v341
    %v374 = vunpack.c.l.b16 %v342
    %v375 = vunpack.c.l.b16 %v343
    %v376 = vunpack.c.l.b16 %v344
    %v377 = vunpack.c.l.b16 %v345
    %v378 = vunpack.c.l.b16 %v346
    %v379 = vpack.c.b16 %v364, %v363
    %v380 = vpack.c.b16 %v366, %v365
    %v381 = vpack.c.b16 %v368, %v367
    %v382 = vpack.c.b16 %v370, %v369
    %v383 = vpack.c.b16 %v372, %v371
    %v384 = vpack.c.b16 %v374, %v373
    %v385 = vpack.c.b16 %v376, %v375
    %v386 = vpack.c.b16 %v378, %v377
    %395 = vmatprep.subr.bf16.mxu0 0
    %396 = vmatpush1.bf16.msra.mxu0 %v379
    %397 = vmatprep.subr.bf16.mxu0 0
    %398 = vmatpush1.bf16.msra.mxu0 %v380
    %399 = vmatprep.subr.bf16.mxu0 0
    %400 = vmatpush1.bf16.msra.mxu0 %v381
    %401 = vmatprep.subr.bf16.mxu0 0
    %402 = vmatpush1.bf16.msra.mxu0 %v382
    %403 = vmatprep.subr.bf16.mxu0 0
    %404 = vmatpush1.bf16.msra.mxu0 %v383
    %405 = vmatprep.subr.bf16.mxu0 0
    %406 = vmatpush1.bf16.msra.mxu0 %v384
    %407 = vmatprep.subr.bf16.mxu0 0
    %408 = vmatpush1.bf16.msra.mxu0 %v385
    %409 = vmatprep.subr.bf16.mxu0 0
    %410 = vmatpush1.bf16.msra.mxu0 %v386
    %411 = vmatprep.subr.bf16.mxu0 0
    %412 = vmatpush1.bf16.msra.mxu0 0
    %413 = vmatprep.subr.bf16.mxu0 0
    %414 = vmatpush1.bf16.msra.mxu0 0
    %415 = vmatprep.subr.bf16.mxu0 0
    %416 = vmatpush1.bf16.msra.mxu0 0
    %417 = vmatprep.subr.bf16.mxu0 0
    %418 = vmatpush1.bf16.msra.mxu0 0
    %419 = vmatprep.subr.bf16.mxu0 0
    %420 = vmatpush1.bf16.msra.mxu0 0
    %421 = vmatprep.subr.bf16.mxu0 0
    %422 = vmatpush1.bf16.msra.mxu0 0
    %423 = vmatprep.subr.bf16.mxu0 0
    %424 = vmatpush1.bf16.msra.mxu0 0
    %425 = vmatprep.subr.bf16.mxu0 0
    %426 = vmatpush1.bf16.msra.mxu0 0
    %427 = vmatprep.mubr.bf16.mxu0 0
    %428 = vmatmul.mubr.bf16.gmra.mrb[0].mxu0 %v113
    %v429 = vpop.f32.mrb[0].mxu0
    %v430 = vadd.f32 0.0, %v429
    %v431 = vpop.f32.mrb[0].mxu0
    %v432 = vpop.f32.mrb[0].mxu0
    %v433 = vadd.f32 0.0, %v432
    %v434 = vpop.f32.mrb[0].mxu0
    %435 = vdwg.mxu0
    %v436 = vld [vmem:[%s3 + $0x80] sm:$0xf]
    %v437 = vld [vmem:[%s3 + $0x84] sm:$0xf]
    %v438 = vld [vmem:[%s3 + $0x88] sm:$0xf]
    %v439 = vld [vmem:[%s3 + $0x8c] sm:$0xf]
    %v440 = vld [vmem:[%s3 + $0x90] sm:$0xf]
    %v441 = vld [vmem:[%s3 + $0x94] sm:$0xf]
    %v442 = vld [vmem:[%s3 + $0x98] sm:$0xf]
    %v443 = vld [vmem:[%s3 + $0x9c] sm:$0xf]
    %v444 = vld [vmem:[%s3 + $0xa0] sm:$0xf]
    %v445 = vld [vmem:[%s3 + $0xa4] sm:$0xf]
    %v446 = vld [vmem:[%s3 + $0xa8] sm:$0xf]
    %v447 = vld [vmem:[%s3 + $0xac] sm:$0xf]
    %v448 = vld [vmem:[%s3 + $0xb0] sm:$0xf]
    %v449 = vld [vmem:[%s3 + $0xb4] sm:$0xf]
    %v450 = vld [vmem:[%s3 + $0xb8] sm:$0xf]
    %v451 = vld [vmem:[%s3 + $0xbc] sm:$0xf]
    %v468 = vunpack.c.l.b16 %v436
    %v469 = vunpack.c.l.b16 %v437
    %v470 = vunpack.c.l.b16 %v438
    %v471 = vunpack.c.l.b16 %v439
    %v472 = vunpack.c.l.b16 %v440
    %v473 = vunpack.c.l.b16 %v441
    %v474 = vunpack.c.l.b16 %v442
    %v475 = vunpack.c.l.b16 %v443
    %v476 = vunpack.c.l.b16 %v444
    %v477 = vunpack.c.l.b16 %v445
    %v478 = vunpack.c.l.b16 %v446
    %v479 = vunpack.c.l.b16 %v447
    %v480 = vunpack.c.l.b16 %v448
    %v481 = vunpack.c.l.b16 %v449
    %v482 = vunpack.c.l.b16 %v450
    %v483 = vunpack.c.l.b16 %v451
    %v484 = vpack.c.b16 %v469, %v468
    %v485 = vpack.c.b16 %v471, %v470
    %v486 = vpack.c.b16 %v473, %v472
    %v487 = vpack.c.b16 %v475, %v474
    %v488 = vpack.c.b16 %v477, %v476
    %v489 = vpack.c.b16 %v479, %v478
    %v490 = vpack.c.b16 %v481, %v480
    %v491 = vpack.c.b16 %v483, %v482
    %500 = vmatprep.subr.bf16.mxu0 0
    %501 = vmatpush1.bf16.msra.mxu0 %v484
    %502 = vmatprep.subr.bf16.mxu0 0
    %503 = vmatpush1.bf16.msra.mxu0 %v485
    %504 = vmatprep.subr.bf16.mxu0 0
    %505 = vmatpush1.bf16.msra.mxu0 %v486
    %506 = vmatprep.subr.bf16.mxu0 0
    %507 = vmatpush1.bf16.msra.mxu0 %v487
    %508 = vmatprep.subr.bf16.mxu0 0
    %509 = vmatpush1.bf16.msra.mxu0 %v488
    %510 = vmatprep.subr.bf16.mxu0 0
    %511 = vmatpush1.bf16.msra.mxu0 %v489
    %512 = vmatprep.subr.bf16.mxu0 0
    %513 = vmatpush1.bf16.msra.mxu0 %v490
    %514 = vmatprep.subr.bf16.mxu0 0
    %515 = vmatpush1.bf16.msra.mxu0 %v491
    %516 = vmatprep.subr.bf16.mxu0 0
    %517 = vmatpush1.bf16.msra.mxu0 0
    %518 = vmatprep.subr.bf16.mxu0 0
    %519 = vmatpush1.bf16.msra.mxu0 0
    %520 = vmatprep.subr.bf16.mxu0 0
    %521 = vmatpush1.bf16.msra.mxu0 0
    %522 = vmatprep.subr.bf16.mxu0 0
    %523 = vmatpush1.bf16.msra.mxu0 0
    %524 = vmatprep.subr.bf16.mxu0 0
    %525 = vmatpush1.bf16.msra.mxu0 0
    %526 = vmatprep.subr.bf16.mxu0 0
    %527 = vmatpush1.bf16.msra.mxu0 0
    %528 = vmatprep.subr.bf16.mxu0 0
    %529 = vmatpush1.bf16.msra.mxu0 0
    %530 = vmatprep.subr.bf16.mxu0 0
    %531 = vmatpush1.bf16.msra.mxu0 0
    %532 = vmatprep.mubr.bf16.mxu0 0
    %533 = vmatmul.mubr.bf16.gmra.mrb[0].mxu0 %v113
    %v534 = vpop.f32.mrb[0].mxu0
    %v535 = vadd.f32 0.0, %v534
    %v536 = vpop.f32.mrb[0].mxu0
    %v537 = vpop.f32.mrb[0].mxu0
    %v538 = vadd.f32 0.0, %v537
    %v539 = vpop.f32.mrb[0].mxu0
    %540 = vdwg.mxu0
    %v541 = vld [vmem:[%s3 + $0xc0] sm:$0xf]
    %v542 = vld [vmem:[%s3 + $0xc4] sm:$0xf]
    %v543 = vld [vmem:[%s3 + $0xc8] sm:$0xf]
    %v544 = vld [vmem:[%s3 + $0xcc] sm:$0xf]
    %v545 = vld [vmem:[%s3 + $0xd0] sm:$0xf]
    %v546 = vld [vmem:[%s3 + $0xd4] sm:$0xf]
    %v547 = vld [vmem:[%s3 + $0xd8] sm:$0xf]
    %v548 = vld [vmem:[%s3 + $0xdc] sm:$0xf]
    %v549 = vld [vmem:[%s3 + $0xe0] sm:$0xf]
    %v550 = vld [vmem:[%s3 + $0xe4] sm:$0xf]
    %v551 = vld [vmem:[%s3 + $0xe8] sm:$0xf]
    %v552 = vld [vmem:[%s3 + $0xec] sm:$0xf]
    %v553 = vld [vmem:[%s3 + $0xf0] sm:$0xf]
    %v554 = vld [vmem:[%s3 + $0xf4] sm:$0xf]
    %v555 = vld [vmem:[%s3 + $0xf8] sm:$0xf]
    %v556 = vld [vmem:[%s3 + $0xfc] sm:$0xf]
    %v573 = vunpack.c.l.b16 %v541
    %v574 = vunpack.c.l.b16 %v542
    %v575 = vunpack.c.l.b16 %v543
    %v576 = vunpack.c.l.b16 %v544
    %v577 = vunpack.c.l.b16 %v545
    %v578 = vunpack.c.l.b16 %v546
    %v579 = vunpack.c.l.b16 %v547
    %v580 = vunpack.c.l.b16 %v548
    %v581 = vunpack.c.l.b16 %v549
    %v582 = vunpack.c.l.b16 %v550
    %v583 = vunpack.c.l.b16 %v551
    %v584 = vunpack.c.l.b16 %v552
    %v585 = vunpack.c.l.b16 %v553
    %v586 = vunpack.c.l.b16 %v554
    %v587 = vunpack.c.l.b16 %v555
    %v588 = vunpack.c.l.b16 %v556
    %v589 = vpack.c.b16 %v574, %v573
    %v590 = vpack.c.b16 %v576, %v575
    %v591 = vpack.c.b16 %v578, %v577
    %v592 = vpack.c.b16 %v580, %v579
    %v593 = vpack.c.b16 %v582, %v581
    %v594 = vpack.c.b16 %v584, %v583
    %v595 = vpack.c.b16 %v586, %v585
    %v596 = vpack.c.b16 %v588, %v587
    %605 = vmatprep.subr.bf16.mxu0 0
    %606 = vmatpush1.bf16.msra.mxu0 %v589
    %607 = vmatprep.subr.bf16.mxu0 0
    %608 = vmatpush1.bf16.msra.mxu0 %v590
    %609 = vmatprep.subr.bf16.mxu0 0
    %610 = vmatpush1.bf16.msra.mxu0 %v591
    %611 = vmatprep.subr.bf16.mxu0 0
    %612 = vmatpush1.bf16.msra.mxu0 %v592
    %613 = vmatprep.subr.bf16.mxu0 0
    %614 = vmatpush1.bf16.msra.mxu0 %v593
    %615 = vmatprep.subr.bf16.mxu0 0
    %616 = vmatpush1.bf16.msra.mxu0 %v594
    %617 = vmatprep.subr.bf16.mxu0 0
    %618 = vmatpush1.bf16.msra.mxu0 %v595
    %619 = vmatprep.subr.bf16.mxu0 0
    %620 = vmatpush1.bf16.msra.mxu0 %v596
    %621 = vmatprep.subr.bf16.mxu0 0
    %622 = vmatpush1.bf16.msra.mxu0 0
    %623 = vmatprep.subr.bf16.mxu0 0
    %624 = vmatpush1.bf16.msra.mxu0 0
    %625 = vmatprep.subr.bf16.mxu0 0
    %626 = vmatpush1.bf16.msra.mxu0 0
    %627 = vmatprep.subr.bf16.mxu0 0
    %628 = vmatpush1.bf16.msra.mxu0 0
    %629 = vmatprep.subr.bf16.mxu0 0
    %630 = vmatpush1.bf16.msra.mxu0 0
    %631 = vmatprep.subr.bf16.mxu0 0
    %632 = vmatpush1.bf16.msra.mxu0 0
    %633 = vmatprep.subr.bf16.mxu0 0
    %634 = vmatpush1.bf16.msra.mxu0 0
    %635 = vmatprep.subr.bf16.mxu0 0
    %636 = vmatpush1.bf16.msra.mxu0 0
    %637 = vmatprep.mubr.bf16.mxu0 0
    %638 = vmatmul.mubr.bf16.gmra.mrb[0].mxu0 %v113
    %v639 = vpop.f32.mrb[0].mxu0
    %v640 = vadd.f32 0.0, %v639
    %v641 = vpop.f32.mrb[0].mxu0
    %v642 = vpop.f32.mrb[0].mxu0
    %v643 = vadd.f32 0.0, %v642
    %v644 = vpop.f32.mrb[0].mxu0
    %645 = vdwg.mxu0
    %v646 = vpack.c.bf16 %v328, %v325
    %v647 = vpack.c.bf16 %v433, %v430
    %v648 = vpack.c.bf16 %v538, %v535
    %v649 = vpack.c.bf16 %v643, %v640
    %650 = vmatprep.subr.bf16.mxu0 0
    %651 = vmatpush1.bf16.msra.mxu0 %v646
    %652 = vmatprep.subr.bf16.mxu0 0
    %653 = vmatpush1.bf16.msra.mxu0 %v647
    %654 = vmatprep.subr.bf16.mxu0 0
    %655 = vmatpush1.bf16.msra.mxu0 %v648
    %656 = vmatprep.subr.bf16.mxu0 0
    %657 = vmatpush1.bf16.msra.mxu0 %v649
    %658 = vmatprep.subr.bf16.mxu0 0
    %659 = vmatpush1.bf16.msra.mxu0 0
    %660 = vmatprep.subr.bf16.mxu0 0
    %661 = vmatpush1.bf16.msra.mxu0 0
    %662 = vmatprep.subr.bf16.mxu0 0
    %663 = vmatpush1.bf16.msra.mxu0 0
    %664 = vmatprep.subr.bf16.mxu0 0
    %665 = vmatpush1.bf16.msra.mxu0 0
    %666 = vmatprep.subr.bf16.mxu0 0
    %667 = vmatpush1.bf16.msra.mxu0 0
    %668 = vmatprep.subr.bf16.mxu0 0
    %669 = vmatpush1.bf16.msra.mxu0 0
    %670 = vmatprep.subr.bf16.mxu0 0
    %671 = vmatpush1.bf16.msra.mxu0 0
    %672 = vmatprep.subr.bf16.mxu0 0
    %673 = vmatpush1.bf16.msra.mxu0 0
    %674 = vmatprep.subr.bf16.mxu0 0
    %675 = vmatpush1.bf16.msra.mxu0 0
    %676 = vmatprep.subr.bf16.mxu0 0
    %677 = vmatpush1.bf16.msra.mxu0 0
    %678 = vmatprep.subr.bf16.mxu0 0
    %679 = vmatpush1.bf16.msra.mxu0 0
    %680 = vmatprep.subr.bf16.mxu0 0
    %681 = vmatpush1.bf16.msra.mxu0 0
    %682 = vmatprep.mubr.bf16.mxu0 0
    %683 = vmatmul.mubr.bf16.gmra.mrb[0].mxu0 %v68
    %v684 = vpop.f32.mrb[0].mxu0
    %v685 = vadd.f32 0.0, %v684
    %v686 = vpop.f32.mrb[0].mxu0
    %v687 = vpop.f32.mrb[0].mxu0
    %v688 = vadd.f32 0.0, %v687
    %v689 = vpop.f32.mrb[0].mxu0
    %690 = vdwg.mxu0
    %v691 = vadd.f32 %v220, %v685
    %v692 = vadd.f32 %v223, %v688
    %693 = vst [vmem:[#allocation2] sm:$0xff] %v691
    %694 = vst [vmem:[#allocation2 + $0x8] sm:$0xff] %v692
    // Predicated region
    $region26: #{rgcn_link_predict_forward.3} parent=1 // pred_check
      _
    $region27: #{rgcn_link_predict_forward.3} parent=1 // pred_check_branch
      %696 = sbr.rel (0) target = $region29
    $region28: #{rgcn_link_predict_forward.3} parent=1 // pred_region
      %s698 = ssub.s32 256, 256
      %699 = vsyncadd [#allocation3], %s698
      %s700 = sshll.u32 [#allocation2], 4
      %s701 = int_to_ptr.vmem [resolvable:$true] %s700
      %706 = dma.vmem_to_hbm [thread:$0]  %s701, 256, %s6, [#allocation3], 128, 128, 8
    $region29: #{rgcn_link_predict_forward.3} parent=1 // pred_fallthru
      _
    // Predicated region
    $region30: #{rgcn_link_predict_forward.3} parent=1 // pred_check
      _
    $region31: #{rgcn_link_predict_forward.3} parent=1 // pred_check_branch
      %708 = sbr.rel (0) target = $region33
    $region32: #{rgcn_link_predict_forward.3} parent=1 // pred_region
      %709 = dma.done [#allocation3], 256
    $region33: #{rgcn_link_predict_forward.3} parent=1 // pred_fallthru
      _
    %710 = vsyncpa [#allocation3], 1

// kernel: rgcn_link_predict_forward.2
$region0: #{rgcn_link_predict_forward.2}
  #allocation0 [shape = 'u32[]', space=smem, size = 0x4, offset = 0x4, fixed_abs, tag = 'smem constant byte address 0x4 - core index']
  #allocation1 [shape = 'u32[144,128]{1,0:T(1,128)}', space=vmem, size = 0x12000, scoped, tag = 'internal scratch']
  %s0 = inlined_call_operand.vmem [shape: bf16[4,30], index: 0, kind: input, shape index: {}]
  %s1 = inlined_call_operand.vmem [shape: bf16[30,2048], index: 1, kind: input, shape index: {}]
  %s2 = inlined_call_operand.vmem [shape: bf16[4,30], index: 2, kind: input, shape index: {}]
  %s3 = inlined_call_operand.vmem [shape: bf16[30,16384], index: 3, kind: input, shape index: {}]
  %s4 = inlined_call_operand.vmem [shape: bf16[4,2048], index: 4, kind: output, shape index: {0}]
  %s5 = inlined_call_operand.vmem [shape: bf16[4,16384], index: 5, kind: output, shape index: {1}]
  %6 = xla_tuple %s4, %s5
  %s7 = sld [smem:[#allocation0]]
  $region34: #{rgcn_link_predict_forward.2} parent=0
    _
  %s9 = ssub.s32 1, %s7
  %s10 = scalar_select 0, %s9, %s7
  // Predicated region
  $region2: #{rgcn_link_predict_forward.2} parent=0 // pred_check
    _
  $region3: #{rgcn_link_predict_forward.2} parent=0 // pred_check_branch
    %12 = sbr.rel (0) target = $region5
  $region4: #{rgcn_link_predict_forward.2} parent=0 // pred_region
    _
  $region5: #{rgcn_link_predict_forward.2} parent=0 // pred_fallthru
    _
  // Predicated region
  $region6: #{rgcn_link_predict_forward.2} parent=0 // pred_check
    _
  $region7: #{rgcn_link_predict_forward.2} parent=0 // pred_check_branch
    %14 = sbr.rel (0) target = $region9
  $region8: #{rgcn_link_predict_forward.2} parent=0 // pred_region
    _
  $region9: #{rgcn_link_predict_forward.2} parent=0 // pred_fallthru
    _
  // Predicated region
  $region10: #{rgcn_link_predict_forward.2} parent=0 // pred_check
    _
  $region11: #{rgcn_link_predict_forward.2} parent=0 // pred_check_branch
    %16 = sbr.rel (0) target = $region13
  $region12: #{rgcn_link_predict_forward.2} parent=0 // pred_region
    _
  $region13: #{rgcn_link_predict_forward.2} parent=0 // pred_fallthru
    _
  // Predicated region
  $region14: #{rgcn_link_predict_forward.2} parent=0 // pred_check
    _
  $region15: #{rgcn_link_predict_forward.2} parent=0 // pred_check_branch
    %18 = sbr.rel (0) target = $region17
  $region16: #{rgcn_link_predict_forward.2} parent=0 // pred_region
    _
  $region17: #{rgcn_link_predict_forward.2} parent=0 // pred_fallthru
    _
  %v20 = vld [vmem:[%s0] sm:$0x3]
  %v21 = vld [vmem:[%s1] sm:$0xff]
  %v22 = vld [vmem:[%s1 + $0x8] sm:$0xff]
  %v23 = vld [vmem:[%s1 + $0x10] sm:$0xff]
  %v24 = vld [vmem:[%s1 + $0x18] sm:$0xff]
  %v25 = vld [vmem:[%s1 + $0x20] sm:$0xff]
  %v26 = vld [vmem:[%s1 + $0x28] sm:$0xff]
  %v27 = vld [vmem:[%s1 + $0x30] sm:$0xff]
  %v28 = vld [vmem:[%s1 + $0x38] sm:$0xff]
  %v29 = vld [vmem:[%s1 + $0x40] sm:$0xff]
  %v30 = vld [vmem:[%s1 + $0x48] sm:$0xff]
  %v31 = vld [vmem:[%s1 + $0x50] sm:$0xff]
  %v32 = vld [vmem:[%s1 + $0x58] sm:$0xff]
  %v33 = vld [vmem:[%s1 + $0x60] sm:$0xff]
  %v34 = vld [vmem:[%s1 + $0x68] sm:$0xff]
  %v35 = vld [vmem:[%s1 + $0x70] sm:$0xff]
  %v36 = vld [vmem:[%s1 + $0x78] sm:$0xff]
  %v37 = vld [vmem:[%s1 + $0x80] sm:$0xff]
  %v38 = vld [vmem:[%s1 + $0x88] sm:$0xff]
  %v39 = vld [vmem:[%s1 + $0x90] sm:$0xff]
  %v40 = vld [vmem:[%s1 + $0x98] sm:$0xff]
  %v41 = vld [vmem:[%s1 + $0xa0] sm:$0xff]
  %v42 = vld [vmem:[%s1 + $0xa8] sm:$0xff]
  %v43 = vld [vmem:[%s1 + $0xb0] sm:$0xff]
  %v44 = vld [vmem:[%s1 + $0xb8] sm:$0xff]
  %v45 = vld [vmem:[%s1 + $0xc0] sm:$0x77]
  %v46 = vld [vmem:[%s1 + $0xc8] sm:$0x77]
  %v47 = vld [vmem:[%s1 + $0xd0] sm:$0x77]
  %v48 = vld [vmem:[%s1 + $0xd8] sm:$0x77]
  %v49 = vld [vmem:[%s1 + $0xe0] sm:$0x77]
  %v50 = vld [vmem:[%s1 + $0xe8] sm:$0x77]
  %v51 = vld [vmem:[%s1 + $0xf0] sm:$0x77]
  %v52 = vld [vmem:[%s1 + $0xf8] sm:$0x77]
  %v85 = vunpack.c.l.b16 %v21
  %v86 = vunpack.c.h.b16 %v21
  %v87 = vunpack.c.l.b16 %v22
  %v88 = vunpack.c.h.b16 %v22
  %v89 = vunpack.c.l.b16 %v23
  %v90 = vunpack.c.h.b16 %v23
  %v91 = vunpack.c.l.b16 %v24
  %v92 = vunpack.c.h.b16 %v24
  %v93 = vunpack.c.l.b16 %v25
  %v94 = vunpack.c.h.b16 %v25
  %v95 = vunpack.c.l.b16 %v26
  %v96 = vunpack.c.h.b16 %v26
  %v97 = vunpack.c.l.b16 %v27
  %v98 = vunpack.c.h.b16 %v27
  %v99 = vunpack.c.l.b16 %v28
  %v100 = vunpack.c.h.b16 %v28
  %v101 = vunpack.c.l.b16 %v29
  %v102 = vunpack.c.h.b16 %v29
  %v103 = vunpack.c.l.b16 %v30
  %v104 = vunpack.c.h.b16 %v30
  %v105 = vunpack.c.l.b16 %v31
  %v106 = vunpack.c.h.b16 %v31
  %v107 = vunpack.c.l.b16 %v32
  %v108 = vunpack.c.h.b16 %v32
  %v109 = vunpack.c.l.b16 %v33
  %v110 = vunpack.c.h.b16 %v33
  %v111 = vunpack.c.l.b16 %v34
  %v112 = vunpack.c.h.b16 %v34
  %v113 = vunpack.c.l.b16 %v35
  %v114 = vunpack.c.h.b16 %v35
  %v115 = vunpack.c.l.b16 %v36
  %v116 = vunpack.c.h.b16 %v36
  %v117 = vunpack.c.l.b16 %v37
  %v118 = vunpack.c.h.b16 %v37
  %v119 = vunpack.c.l.b16 %v38
  %v120 = vunpack.c.h.b16 %v38
  %v121 = vunpack.c.l.b16 %v39
  %v122 = vunpack.c.h.b16 %v39
  %v123 = vunpack.c.l.b16 %v40
  %v124 = vunpack.c.h.b16 %v40
  %v125 = vunpack.c.l.b16 %v41
  %v126 = vunpack.c.h.b16 %v41
  %v127 = vunpack.c.l.b16 %v42
  %v128 = vunpack.c.h.b16 %v42
  %v129 = vunpack.c.l.b16 %v43
  %v130 = vunpack.c.h.b16 %v43
  %v131 = vunpack.c.l.b16 %v44
  %v132 = vunpack.c.h.b16 %v44
  %v133 = vunpack.c.l.b16 %v45
  %v134 = vunpack.c.h.b16 %v45
  %v135 = vunpack.c.l.b16 %v46
  %v136 = vunpack.c.h.b16 %v46
  %v137 = vunpack.c.l.b16 %v47
  %v138 = vunpack.c.h.b16 %v47
  %v139 = vunpack.c.l.b16 %v48
  %v140 = vunpack.c.h.b16 %v48
  %v141 = vunpack.c.l.b16 %v49
  %v142 = vunpack.c.h.b16 %v49
  %v143 = vunpack.c.l.b16 %v50
  %v144 = vunpack.c.h.b16 %v50
  %v145 = vunpack.c.l.b16 %v51
  %v146 = vunpack.c.h.b16 %v51
  %v147 = vunpack.c.l.b16 %v52
  %v148 = vunpack.c.h.b16 %v52
  %v149 = vpack.c.b16 %v101, %v85
  %v150 = vpack.c.b16 %v102, %v86
  %v151 = vpack.c.b16 %v103, %v87
  %v152 = vpack.c.b16 %v104, %v88
  %v153 = vpack.c.b16 %v105, %v89
  %v154 = vpack.c.b16 %v106, %v90
  %v155 = vpack.c.b16 %v107, %v91
  %v156 = vpack.c.b16 %v108, %v92
  %v157 = vpack.c.b16 %v109, %v93
  %v158 = vpack.c.b16 %v110, %v94
  %v159 = vpack.c.b16 %v111, %v95
  %v160 = vpack.c.b16 %v112, %v96
  %v161 = vpack.c.b16 %v113, %v97
  %v162 = vpack.c.b16 %v114, %v98
  %v163 = vpack.c.b16 %v115, %v99
  %v164 = vpack.c.b16 %v116, %v100
  %v165 = vpack.c.b16 %v133, %v117
  %v166 = vpack.c.b16 %v134, %v118
  %v167 = vpack.c.b16 %v135, %v119
  %v168 = vpack.c.b16 %v136, %v120
  %v169 = vpack.c.b16 %v137, %v121
  %v170 = vpack.c.b16 %v138, %v122
  %v171 = vpack.c.b16 %v139, %v123
  %v172 = vpack.c.b16 %v140, %v124
  %v173 = vpack.c.b16 %v141, %v125
  %v174 = vpack.c.b16 %v142, %v126
  %v175 = vpack.c.b16 %v143, %v127
  %v176 = vpack.c.b16 %v144, %v128
  %v177 = vpack.c.b16 %v145, %v129
  %v178 = vpack.c.b16 %v146, %v130
  %v179 = vpack.c.b16 %v147, %v131
  %v180 = vpack.c.b16 %v148, %v132
  %vm197 = vcmask 244736
  %v199 = vsel %vm197, %v20, 0
  %vm201 = vcmask 1046528
  %v203 = vsel %vm201, %v165, 0
  %v206 = vsel %vm201, %v166, 0
  %v209 = vsel %vm201, %v167, 0
  %v212 = vsel %vm201, %v168, 0
  %v215 = vsel %vm201, %v169, 0
  %v218 = vsel %vm201, %v170, 0
  %v221 = vsel %vm201, %v171, 0
  %v224 = vsel %vm201, %v172, 0
  %v227 = vsel %vm201, %v173, 0
  %v230 = vsel %vm201, %v174, 0
  %v233 = vsel %vm201, %v175, 0
  %v236 = vsel %vm201, %v176, 0
  %v239 = vsel %vm201, %v177, 0
  %v242 = vsel %vm201, %v178, 0
  %v245 = vsel %vm201, %v179, 0
  %v248 = vsel %vm201, %v180, 0
  %250 = vmatprep.subr.bf16.mxu0 %v150
  %251 = vmatpush1.bf16.msra.mxu0 %v149
  %252 = vmatprep.subr.bf16.mxu0 %v206
  %253 = vmatpush1.bf16.msra.mxu0 %v203
  %254 = vmatprep.subr.bf16.mxu0 0
  %255 = vmatpush1.bf16.msra.mxu0 0
  %256 = vmatprep.subr.bf16.mxu0 0
  %257 = vmatpush1.bf16.msra.mxu0 0
  %258 = vmatprep.subr.bf16.mxu0 0
  %259 = vmatpush1.bf16.msra.mxu0 0
  %260 = vmatprep.subr.bf16.mxu0 0
  %261 = vmatpush1.bf16.msra.mxu0 0
  %262 = vmatprep.subr.bf16.mxu0 0
  %263 = vmatpush1.bf16.msra.mxu0 0
  %264 = vmatprep.subr.bf16.mxu0 0
  %265 = vmatpush1.bf16.msra.mxu0 0
  %266 = vmatprep.subr.bf16.mxu0 0
  %267 = vmatpush1.bf16.msra.mxu0 0
  %268 = vmatprep.subr.bf16.mxu0 0
  %269 = vmatpush1.bf16.msra.mxu0 0
  %270 = vmatprep.subr.bf16.mxu0 0
  %271 = vmatpush1.bf16.msra.mxu0 0
  %272 = vmatprep.subr.bf16.mxu0 0
  %273 = vmatpush1.bf16.msra.mxu0 0
  %274 = vmatprep.subr.bf16.mxu0 0
  %275 = vmatpush1.bf16.msra.mxu0 0
  %276 = vmatprep.subr.bf16.mxu0 0
  %277 = vmatpush1.bf16.msra.mxu0 0
  %278 = vmatprep.subr.bf16.mxu0 0
  %279 = vmatpush1.bf16.msra.mxu0 0
  %280 = vmatprep.subr.bf16.mxu0 0
  %281 = vmatpush1.bf16.msra.mxu0 0
  %282 = vmatprep.mubr.bf16.mxu0 0
  %283 = vmatmul.mubr.bf16.gmra.mrb[0].mxu0 %v199
  %v284 = vpop.f32.mrb[0].mxu0
  %v285 = vadd.f32 0.0, %v284
  %v286 = vpop.f32.mrb[0].mxu0
  %v287 = vadd.f32 0.0, %v286
  %v288 = vpop.f32.mrb[0].mxu0
  %v289 = vpop.f32.mrb[0].mxu0
  %290 = vdwg.mxu0
  %291 = vmatprep.subr.bf16.mxu0 %v152
  %292 = vmatpush1.bf16.msra.mxu0 %v151
  %293 = vmatprep.subr.bf16.mxu0 %v212
  %294 = vmatpush1.bf16.msra.mxu0 %v209
  %295 = vmatprep.subr.bf16.mxu0 0
  %296 = vmatpush1.bf16.msra.mxu0 0
  %297 = vmatprep.subr.bf16.mxu0 0
  %298 = vmatpush1.bf16.msra.mxu0 0
  %299 = vmatprep.subr.bf16.mxu0 0
  %300 = vmatpush1.bf16.msra.mxu0 0
  %301 = vmatprep.subr.bf16.mxu0 0
  %302 = vmatpush1.bf16.msra.mxu0 0
  %303 = vmatprep.subr.bf16.mxu0 0
  %304 = vmatpush1.bf16.msra.mxu0 0
  %305 = vmatprep.subr.bf16.mxu0 0
  %306 = vmatpush1.bf16.msra.mxu0 0
  %307 = vmatprep.subr.bf16.mxu0 0
  %308 = vmatpush1.bf16.msra.mxu0 0
  %309 = vmatprep.subr.bf16.mxu0 0
  %310 = vmatpush1.bf16.msra.mxu0 0
  %311 = vmatprep.subr.bf16.mxu0 0
  %312 = vmatpush1.bf16.msra.mxu0 0
  %313 = vmatprep.subr.bf16.mxu0 0
  %314 = vmatpush1.bf16.msra.mxu0 0
  %315 = vmatprep.subr.bf16.mxu0 0
  %316 = vmatpush1.bf16.msra.mxu0 0
  %317 = vmatprep.subr.bf16.mxu0 0
  %318 = vmatpush1.bf16.msra.mxu0 0
  %319 = vmatprep.subr.bf16.mxu0 0
  %320 = vmatpush1.bf16.msra.mxu0 0
  %321 = vmatprep.subr.bf16.mxu0 0
  %322 = vmatpush1.bf16.msra.mxu0 0
  %323 = vmatprep.mubr.bf16.mxu0 0
  %324 = vmatmul.mubr.bf16.gmra.mrb[0].mxu0 %v199
  %v325 = vpop.f32.mrb[0].mxu0
  %v326 = vadd.f32 0.0, %v325
  %v327 = vpop.f32.mrb[0].mxu0
  %v328 = vadd.f32 0.0, %v327
  %v329 = vpop.f32.mrb[0].mxu0
  %v330 = vpop.f32.mrb[0].mxu0
  %331 = vdwg.mxu0
  %332 = vmatprep.subr.bf16.mxu0 %v154
  %333 = vmatpush1.bf16.msra.mxu0 %v153
  %334 = vmatprep.subr.bf16.mxu0 %v218
  %335 = vmatpush1.bf16.msra.mxu0 %v215
  %336 = vmatprep.subr.bf16.mxu0 0
  %337 = vmatpush1.bf16.msra.mxu0 0
  %338 = vmatprep.subr.bf16.mxu0 0
  %339 = vmatpush1.bf16.msra.mxu0 0
  %340 = vmatprep.subr.bf16.mxu0 0
  %341 = vmatpush1.bf16.msra.mxu0 0
  %342 = vmatprep.subr.bf16.mxu0 0
  %343 = vmatpush1.bf16.msra.mxu0 0
  %344 = vmatprep.subr.bf16.mxu0 0
  %345 = vmatpush1.bf16.msra.mxu0 0
  %346 = vmatprep.subr.bf16.mxu0 0
  %347 = vmatpush1.bf16.msra.mxu0 0
  %348 = vmatprep.subr.bf16.mxu0 0
  %349 = vmatpush1.bf16.msra.mxu0 0
  %350 = vmatprep.subr.bf16.mxu0 0
  %351 = vmatpush1.bf16.msra.mxu0 0
  %352 = vmatprep.subr.bf16.mxu0 0
  %353 = vmatpush1.bf16.msra.mxu0 0
  %354 = vmatprep.subr.bf16.mxu0 0
  %355 = vmatpush1.bf16.msra.mxu0 0
  %356 = vmatprep.subr.bf16.mxu0 0
  %357 = vmatpush1.bf16.msra.mxu0 0
  %358 = vmatprep.subr.bf16.mxu0 0
  %359 = vmatpush1.bf16.msra.mxu0 0
  %360 = vmatprep.subr.bf16.mxu0 0
  %361 = vmatpush1.bf16.msra.mxu0 0
  %362 = vmatprep.subr.bf16.mxu0 0
  %363 = vmatpush1.bf16.msra.mxu0 0
  %364 = vmatprep.mubr.bf16.mxu0 0
  %365 = vmatmul.mubr.bf16.gmra.mrb[0].mxu0 %v199
  %v366 = vpop.f32.mrb[0].mxu0
  %v367 = vadd.f32 0.0, %v366
  %v368 = vpop.f32.mrb[0].mxu0
  %v369 = vadd.f32 0.0, %v368
  %v370 = vpop.f32.mrb[0].mxu0
  %v371 = vpop.f32.mrb[0].mxu0
  %372 = vdwg.mxu0
  %373 = vmatprep.subr.bf16.mxu0 %v156
  %374 = vmatpush1.bf16.msra.mxu0 %v155
  %375 = vmatprep.subr.bf16.mxu0 %v224
  %376 = vmatpush1.bf16.msra.mxu0 %v221
  %377 = vmatprep.subr.bf16.mxu0 0
  %378 = vmatpush1.bf16.msra.mxu0 0
  %379 = vmatprep.subr.bf16.mxu0 0
  %380 = vmatpush1.bf16.msra.mxu0 0
  %381 = vmatprep.subr.bf16.mxu0 0
  %382 = vmatpush1.bf16.msra.mxu0 0
  %383 = vmatprep.subr.bf16.mxu0 0
  %384 = vmatpush1.bf16.msra.mxu0 0
  %385 = vmatprep.subr.bf16.mxu0 0
  %386 = vmatpush1.bf16.msra.mxu0 0
  %387 = vmatprep.subr.bf16.mxu0 0
  %388 = vmatpush1.bf16.msra.mxu0 0
  %389 = vmatprep.subr.bf16.mxu0 0
  %390 = vmatpush1.bf16.msra.mxu0 0
  %391 = vmatprep.subr.bf16.mxu0 0
  %392 = vmatpush1.bf16.msra.mxu0 0
  %393 = vmatprep.subr.bf16.mxu0 0
  %394 = vmatpush1.bf16.msra.mxu0 0
  %395 = vmatprep.subr.bf16.mxu0 0
  %396 = vmatpush1.bf16.msra.mxu0 0
  %397 = vmatprep.subr.bf16.mxu0 0
  %398 = vmatpush1.bf16.msra.mxu0 0
  %399 = vmatprep.subr.bf16.mxu0 0
  %400 = vmatpush1.bf16.msra.mxu0 0
  %401 = vmatprep.subr.bf16.mxu0 0
  %402 = vmatpush1.bf16.msra.mxu0 0
  %403 = vmatprep.subr.bf16.mxu0 0
  %404 = vmatpush1.bf16.msra.mxu0 0
  %405 = vmatprep.mubr.bf16.mxu0 0
  %406 = vmatmul.mubr.bf16.gmra.mrb[0].mxu0 %v199
  %v407 = vpop.f32.mrb[0].mxu0
  %v408 = vadd.f32 0.0, %v407
  %v409 = vpop.f32.mrb[0].mxu0
  %v410 = vadd.f32 0.0, %v409
  %v411 = vpop.f32.mrb[0].mxu0
  %v412 = vpop.f32.mrb[0].mxu0
  %413 = vdwg.mxu0
  %414 = vmatprep.subr.bf16.mxu0 %v158
  %415 = vmatpush1.bf16.msra.mxu0 %v157
  %416 = vmatprep.subr.bf16.mxu0 %v230
  %417 = vmatpush1.bf16.msra.mxu0 %v227
  %418 = vmatprep.subr.bf16.mxu0 0
  %419 = vmatpush1.bf16.msra.mxu0 0
  %420 = vmatprep.subr.bf16.mxu0 0
  %421 = vmatpush1.bf16.msra.mxu0 0
  %422 = vmatprep.subr.bf16.mxu0 0
  %423 = vmatpush1.bf16.msra.mxu0 0
  %424 = vmatprep.subr.bf16.mxu0 0
  %425 = vmatpush1.bf16.msra.mxu0 0
  %426 = vmatprep.subr.bf16.mxu0 0
  %427 = vmatpush1.bf16.msra.mxu0 0
  %428 = vmatprep.subr.bf16.mxu0 0
  %429 = vmatpush1.bf16.msra.mxu0 0
  %430 = vmatprep.subr.bf16.mxu0 0
  %431 = vmatpush1.bf16.msra.mxu0 0
  %432 = vmatprep.subr.bf16.mxu0 0
  %433 = vmatpush1.bf16.msra.mxu0 0
  %434 = vmatprep.subr.bf16.mxu0 0
  %435 = vmatpush1.bf16.msra.mxu0 0
  %436 = vmatprep.subr.bf16.mxu0 0
  %437 = vmatpush1.bf16.msra.mxu0 0
  %438 = vmatprep.subr.bf16.mxu0 0
  %439 = vmatpush1.bf16.msra.mxu0 0
  %440 = vmatprep.subr.bf16.mxu0 0
  %441 = vmatpush1.bf16.msra.mxu0 0
  %442 = vmatprep.subr.bf16.mxu0 0
  %443 = vmatpush1.bf16.msra.mxu0 0
  %444 = vmatprep.subr.bf16.mxu0 0
  %445 = vmatpush1.bf16.msra.mxu0 0
  %446 = vmatprep.mubr.bf16.mxu0 0
  %447 = vmatmul.mubr.bf16.gmra.mrb[0].mxu0 %v199
  %v448 = vpop.f32.mrb[0].mxu0
  %v449 = vadd.f32 0.0, %v448
  %v450 = vpop.f32.mrb[0].mxu0
  %v451 = vadd.f32 0.0, %v450
  %v452 = vpop.f32.mrb[0].mxu0
  %v453 = vpop.f32.mrb[0].mxu0
  %454 = vdwg.mxu0
  %455 = vmatprep.subr.bf16.mxu0 %v160
  %456 = vmatpush1.bf16.msra.mxu0 %v159
  %457 = vmatprep.subr.bf16.mxu0 %v236
  %458 = vmatpush1.bf16.msra.mxu0 %v233
  %459 = vmatprep.subr.bf16.mxu0 0
  %460 = vmatpush1.bf16.msra.mxu0 0
  %461 = vmatprep.subr.bf16.mxu0 0
  %462 = vmatpush1.bf16.msra.mxu0 0
  %463 = vmatprep.subr.bf16.mxu0 0
  %464 = vmatpush1.bf16.msra.mxu0 0
  %465 = vmatprep.subr.bf16.mxu0 0
  %466 = vmatpush1.bf16.msra.mxu0 0
  %467 = vmatprep.subr.bf16.mxu0 0
  %468 = vmatpush1.bf16.msra.mxu0 0
  %469 = vmatprep.subr.bf16.mxu0 0
  %470 = vmatpush1.bf16.msra.mxu0 0
  %471 = vmatprep.subr.bf16.mxu0 0
  %472 = vmatpush1.bf16.msra.mxu0 0
  %473 = vmatprep.subr.bf16.mxu0 0
  %474 = vmatpush1.bf16.msra.mxu0 0
  %475 = vmatprep.subr.bf16.mxu0 0
  %476 = vmatpush1.bf16.msra.mxu0 0
  %477 = vmatprep.subr.bf16.mxu0 0
  %478 = vmatpush1.bf16.msra.mxu0 0
  %479 = vmatprep.subr.bf16.mxu0 0
  %480 = vmatpush1.bf16.msra.mxu0 0
  %481 = vmatprep.subr.bf16.mxu0 0
  %482 = vmatpush1.bf16.msra.mxu0 0
  %483 = vmatprep.subr.bf16.mxu0 0
  %484 = vmatpush1.bf16.msra.mxu0 0
  %485 = vmatprep.subr.bf16.mxu0 0
  %486 = vmatpush1.bf16.msra.mxu0 0
  %487 = vmatprep.mubr.bf16.mxu0 0
  %488 = vmatmul.mubr.bf16.gmra.mrb[0].mxu0 %v199
  %v489 = vpop.f32.mrb[0].mxu0
  %v490 = vadd.f32 0.0, %v489
  %v491 = vpop.f32.mrb[0].mxu0
  %v492 = vadd.f32 0.0, %v491
  %v493 = vpop.f32.mrb[0].mxu0
  %v494 = vpop.f32.mrb[0].mxu0
  %495 = vdwg.mxu0
  %496 = vmatprep.subr.bf16.mxu0 %v162
  %497 = vmatpush1.bf16.msra.mxu0 %v161
  %498 = vmatprep.subr.bf16.mxu0 %v242
  %499 = vmatpush1.bf16.msra.mxu0 %v239
  %500 = vmatprep.subr.bf16.mxu0 0
  %501 = vmatpush1.bf16.msra.mxu0 0
  %502 = vmatprep.subr.bf16.mxu0 0
  %503 = vmatpush1.bf16.msra.mxu0 0
  %504 = vmatprep.subr.bf16.mxu0 0
  %505 = vmatpush1.bf16.msra.mxu0 0
  %506 = vmatprep.subr.bf16.mxu0 0
  %507 = vmatpush1.bf16.msra.mxu0 0
  %508 = vmatprep.subr.bf16.mxu0 0
  %509 = vmatpush1.bf16.msra.mxu0 0
  %510 = vmatprep.subr.bf16.mxu0 0
  %511 = vmatpush1.bf16.msra.mxu0 0
  %512 = vmatprep.subr.bf16.mxu0 0
  %513 = vmatpush1.bf16.msra.mxu0 0
  %514 = vmatprep.subr.bf16.mxu0 0
  %515 = vmatpush1.bf16.msra.mxu0 0
  %516 = vmatprep.subr.bf16.mxu0 0
  %517 = vmatpush1.bf16.msra.mxu0 0
  %518 = vmatprep.subr.bf16.mxu0 0
  %519 = vmatpush1.bf16.msra.mxu0 0
  %520 = vmatprep.subr.bf16.mxu0 0
  %521 = vmatpush1.bf16.msra.mxu0 0
  %522 = vmatprep.subr.bf16.mxu0 0
  %523 = vmatpush1.bf16.msra.mxu0 0
  %524 = vmatprep.subr.bf16.mxu0 0
  %525 = vmatpush1.bf16.msra.mxu0 0
  %526 = vmatprep.subr.bf16.mxu0 0
  %527 = vmatpush1.bf16.msra.mxu0 0
  %528 = vmatprep.mubr.bf16.mxu0 0
  %529 = vmatmul.mubr.bf16.gmra.mrb[0].mxu0 %v199
  %v530 = vpop.f32.mrb[0].mxu0
  %v531 = vadd.f32 0.0, %v530
  %v532 = vpop.f32.mrb[0].mxu0
  %v533 = vadd.f32 0.0, %v532
  %v534 = vpop.f32.mrb[0].mxu0
  %v535 = vpop.f32.mrb[0].mxu0
  %536 = vdwg.mxu0
  %537 = vmatprep.subr.bf16.mxu0 %v164
  %538 = vmatpush1.bf16.msra.mxu0 %v163
  %539 = vmatprep.subr.bf16.mxu0 %v248
  %540 = vmatpush1.bf16.msra.mxu0 %v245
  %541 = vmatprep.subr.bf16.mxu0 0
  %542 = vmatpush1.bf16.msra.mxu0 0
  %543 = vmatprep.subr.bf16.mxu0 0
  %544 = vmatpush1.bf16.msra.mxu0 0
  %545 = vmatprep.subr.bf16.mxu0 0
  %546 = vmatpush1.bf16.msra.mxu0 0
  %547 = vmatprep.subr.bf16.mxu0 0
  %548 = vmatpush1.bf16.msra.mxu0 0
  %549 = vmatprep.subr.bf16.mxu0 0
  %550 = vmatpush1.bf16.msra.mxu0 0
  %551 = vmatprep.subr.bf16.mxu0 0
  %552 = vmatpush1.bf16.msra.mxu0 0
  %553 = vmatprep.subr.bf16.mxu0 0
  %554 = vmatpush1.bf16.msra.mxu0 0
  %555 = vmatprep.subr.bf16.mxu0 0
  %556 = vmatpush1.bf16.msra.mxu0 0
  %557 = vmatprep.subr.bf16.mxu0 0
  %558 = vmatpush1.bf16.msra.mxu0 0
  %559 = vmatprep.subr.bf16.mxu0 0
  %560 = vmatpush1.bf16.msra.mxu0 0
  %561 = vmatprep.subr.bf16.mxu0 0
  %562 = vmatpush1.bf16.msra.mxu0 0
  %563 = vmatprep.subr.bf16.mxu0 0
  %564 = vmatpush1.bf16.msra.mxu0 0
  %565 = vmatprep.subr.bf16.mxu0 0
  %566 = vmatpush1.bf16.msra.mxu0 0
  %567 = vmatprep.subr.bf16.mxu0 0
  %568 = vmatpush1.bf16.msra.mxu0 0
  %569 = vmatprep.mubr.bf16.mxu0 0
  %570 = vmatmul.mubr.bf16.gmra.mrb[0].mxu0 %v199
  %v571 = vpop.f32.mrb[0].mxu0
  %v572 = vadd.f32 0.0, %v571
  %v573 = vpop.f32.mrb[0].mxu0
  %v574 = vadd.f32 0.0, %v573
  %v575 = vpop.f32.mrb[0].mxu0
  %v576 = vpop.f32.mrb[0].mxu0
  %577 = vdwg.mxu0
  %v578 = vpack.c.bf16 %v285, %v285
  %v579 = vpack.c.bf16 %v287, %v287
  %v580 = vpack.c.bf16 %v326, %v326
  %v581 = vpack.c.bf16 %v328, %v328
  %v582 = vpack.c.bf16 %v367, %v367
  %v583 = vpack.c.bf16 %v369, %v369
  %v584 = vpack.c.bf16 %v408, %v408
  %v585 = vpack.c.bf16 %v410, %v410
  %v586 = vpack.c.bf16 %v449, %v449
  %v587 = vpack.c.bf16 %v451, %v451
  %v588 = vpack.c.bf16 %v490, %v490
  %v589 = vpack.c.bf16 %v492, %v492
  %v590 = vpack.c.bf16 %v531, %v531
  %v591 = vpack.c.bf16 %v533, %v533
  %v592 = vpack.c.bf16 %v572, %v572
  %v593 = vpack.c.bf16 %v574, %v574
  %v610 = vcombine.low %v578, %v579
  %v611 = vcombine.low %v580, %v581
  %v613 = vunpack.c.l.s4 1983009808
  %v614 = vunpack.c.0.s8 %v613
  %v615 = vlaneseq
  %v616 = vshrl.u32 %v615, 7
  %v617 = vsub.s32 %v614, %v616
  %v618 = vrot.slane %v610, %v617
  %v620 = vunpack.c.l.s4 1983009808
  %v621 = vunpack.c.0.s8 %v620
  %v622 = vlaneseq
  %v623 = vshrl.u32 %v622, 7
  %v624 = vsub.s32 %v621, %v623
  %v625 = vrot.slane %v611, %v624
  %v626 = vcombine.low %v618, %v625
  %v627 = vcombine.low %v582, %v583
  %v628 = vcombine.low %v584, %v585
  %v630 = vunpack.c.l.s4 1983009808
  %v631 = vunpack.c.0.s8 %v630
  %v632 = vlaneseq
  %v633 = vshrl.u32 %v632, 7
  %v634 = vsub.s32 %v631, %v633
  %v635 = vrot.slane %v627, %v634
  %v637 = vunpack.c.l.s4 1983009808
  %v638 = vunpack.c.0.s8 %v637
  %v639 = vlaneseq
  %v640 = vshrl.u32 %v639, 7
  %v641 = vsub.s32 %v638, %v640
  %v642 = vrot.slane %v628, %v641
  %v643 = vcombine.low %v635, %v642
  %v644 = vcombine.low %v586, %v587
  %v645 = vcombine.low %v588, %v589
  %v647 = vunpack.c.l.s4 1983009808
  %v648 = vunpack.c.0.s8 %v647
  %v649 = vlaneseq
  %v650 = vshrl.u32 %v649, 7
  %v651 = vsub.s32 %v648, %v650
  %v652 = vrot.slane %v644, %v651
  %v654 = vunpack.c.l.s4 1983009808
  %v655 = vunpack.c.0.s8 %v654
  %v656 = vlaneseq
  %v657 = vshrl.u32 %v656, 7
  %v658 = vsub.s32 %v655, %v657
  %v659 = vrot.slane %v645, %v658
  %v660 = vcombine.low %v652, %v659
  %v661 = vcombine.low %v590, %v591
  %v662 = vcombine.low %v592, %v593
  %v664 = vunpack.c.l.s4 1983009808
  %v665 = vunpack.c.0.s8 %v664
  %v666 = vlaneseq
  %v667 = vshrl.u32 %v666, 7
  %v668 = vsub.s32 %v665, %v667
  %v669 = vrot.slane %v661, %v668
  %v671 = vunpack.c.l.s4 1983009808
  %v672 = vunpack.c.0.s8 %v671
  %v673 = vlaneseq
  %v674 = vshrl.u32 %v673, 7
  %v675 = vsub.s32 %v672, %v674
  %v676 = vrot.slane %v662, %v675
  %v677 = vcombine.low %v669, %v676
  %682 = vst [vmem:[%s4] sm:$0xff] %v626
  %683 = vst [vmem:[%s4 + $0x8] sm:$0xff] %v643
  %684 = vst [vmem:[%s4 + $0x10] sm:$0xff] %v660
  %685 = vst [vmem:[%s4 + $0x18] sm:$0xff] %v677
  %v686 = vld [vmem:[%s2] sm:$0x3]
  %v687 = vld [vmem:[%s3] sm:$0xff]
  %v688 = vld [vmem:[%s3 + $0x8] sm:$0xff]
  %v689 = vld [vmem:[%s3 + $0x10] sm:$0xff]
  %v690 = vld [vmem:[%s3 + $0x18] sm:$0xff]
  %v691 = vld [vmem:[%s3 + $0x20] sm:$0xff]
  %v692 = vld [vmem:[%s3 + $0x28] sm:$0xff]
  %v693 = vld [vmem:[%s3 + $0x30] sm:$0xff]
  %v694 = vld [vmem:[%s3 + $0x38] sm:$0xff]
  %v695 = vld [vmem:[%s3 + $0x40] sm:$0xff]
  %v696 = vld [vmem:[%s3 + $0x48] sm:$0xff]
  %v697 = vld [vmem:[%s3 + $0x50] sm:$0xff]
  %v698 = vld [vmem:[%s3 + $0x58] sm:$0xff]
  %v699 = vld [vmem:[%s3 + $0x60] sm:$0xff]
  %v700 = vld [vmem:[%s3 + $0x68] sm:$0xff]
  %v701 = vld [vmem:[%s3 + $0x70] sm:$0xff]
  %v702 = vld [vmem:[%s3 + $0x78] sm:$0xff]
  %v703 = vld [vmem:[%s3 + $0x80] sm:$0xff]
  %v704 = vld [vmem:[%s3 + $0x88] sm:$0xff]
  %v705 = vld [vmem:[%s3 + $0x90] sm:$0xff]
  %v706 = vld [vmem:[%s3 + $0x98] sm:$0xff]
  %v707 = vld [vmem:[%s3 + $0xa0] sm:$0xff]
  %v708 = vld [vmem:[%s3 + $0xa8] sm:$0xff]
  %v709 = vld [vmem:[%s3 + $0xb0] sm:$0xff]
  %v710 = vld [vmem:[%s3 + $0xb8] sm:$0xff]
  %v711 = vld [vmem:[%s3 + $0xc0] sm:$0xff]
  %v712 = vld [vmem:[%s3 + $0xc8] sm:$0xff]
  %v713 = vld [vmem:[%s3 + $0xd0] sm:$0xff]
  %v714 = vld [vmem:[%s3 + $0xd8] sm:$0xff]
  %v715 = vld [vmem:[%s3 + $0xe0] sm:$0xff]
  %v716 = vld [vmem:[%s3 + $0xe8] sm:$0xff]
  %v717 = vld [vmem:[%s3 + $0xf0] sm:$0xff]
  %v718 = vld [vmem:[%s3 + $0xf8] sm:$0xff]
  %v719 = vld [vmem:[%s3 + $0x100] sm:$0xff]
  %v720 = vld [vmem:[%s3 + $0x108] sm:$0xff]
  %v721 = vld [vmem:[%s3 + $0x110] sm:$0xff]
  %v722 = vld [vmem:[%s3 + $0x118] sm:$0xff]
  %v723 = vld [vmem:[%s3 + $0x120] sm:$0xff]
  %v724 = vld [vmem:[%s3 + $0x128] sm:$0xff]
  %v725 = vld [vmem:[%s3 + $0x130] sm:$0xff]
  %v726 = vld [vmem:[%s3 + $0x138] sm:$0xff]
  %v727 = vld [vmem:[%s3 + $0x140] sm:$0xff]
  %v728 = vld [vmem:[%s3 + $0x148] sm:$0xff]
  %v729 = vld [vmem:[%s3 + $0x150] sm:$0xff]
  %v730 = vld [vmem:[%s3 + $0x158] sm:$0xff]
  %v731 = vld [vmem:[%s3 + $0x160] sm:$0xff]
  %v732 = vld [vmem:[%s3 + $0x168] sm:$0xff]
  %v733 = vld [vmem:[%s3 + $0x170] sm:$0xff]
  %v734 = vld [vmem:[%s3 + $0x178] sm:$0xff]
  %v735 = vld [vmem:[%s3 + $0x180] sm:$0xff]
  %v736 = vld [vmem:[%s3 + $0x188] sm:$0xff]
  %v737 = vld [vmem:[%s3 + $0x190] sm:$0xff]
  %v738 = vld [vmem:[%s3 + $0x198] sm:$0xff]
  %v739 = vld [vmem:[%s3 + $0x1a0] sm:$0xff]
  %v740 = vld [vmem:[%s3 + $0x1a8] sm:$0xff]
  %v741 = vld [vmem:[%s3 + $0x1b0] sm:$0xff]
  %v742 = vld [vmem:[%s3 + $0x1b8] sm:$0xff]
  %v743 = vld [vmem:[%s3 + $0x1c0] sm:$0xff]
  %v744 = vld [vmem:[%s3 + $0x1c8] sm:$0xff]
  %v745 = vld [vmem:[%s3 + $0x1d0] sm:$0xff]
  %v746 = vld [vmem:[%s3 + $0x1d8] sm:$0xff]
  %v747 = vld [vmem:[%s3 + $0x1e0] sm:$0xff]
  %v748 = vld [vmem:[%s3 + $0x1e8] sm:$0xff]
  %v749 = vld [vmem:[%s3 + $0x1f0] sm:$0xff]
  %v750 = vld [vmem:[%s3 + $0x1f8] sm:$0xff]
  %v751 = vld [vmem:[%s3 + $0x200] sm:$0xff]
  %v752 = vld [vmem:[%s3 + $0x208] sm:$0xff]
  %v753 = vld [vmem:[%s3 + $0x210] sm:$0xff]
  %v754 = vld [vmem:[%s3 + $0x218] sm:$0xff]
  %v755 = vld [vmem:[%s3 + $0x220] sm:$0xff]
  %v756 = vld [vmem:[%s3 + $0x228] sm:$0xff]
  %v757 = vld [vmem:[%s3 + $0x230] sm:$0xff]
  %v758 = vld [vmem:[%s3 + $0x238] sm:$0xff]
  %v759 = vld [vmem:[%s3 + $0x240] sm:$0xff]
  %v760 = vld [vmem:[%s3 + $0x248] sm:$0xff]
  %v761 = vld [vmem:[%s3 + $0x250] sm:$0xff]
  %v762 = vld [vmem:[%s3 + $0x258] sm:$0xff]
  %v763 = vld [vmem:[%s3 + $0x260] sm:$0xff]
  %v764 = vld [vmem:[%s3 + $0x268] sm:$0xff]
  %v765 = vld [vmem:[%s3 + $0x270] sm:$0xff]
  %v766 = vld [vmem:[%s3 + $0x278] sm:$0xff]
  %v767 = vld [vmem:[%s3 + $0x280] sm:$0xff]
  %v768 = vld [vmem:[%s3 + $0x288] sm:$0xff]
  %v769 = vld [vmem:[%s3 + $0x290] sm:$0xff]
  %v770 = vld [vmem:[%s3 + $0x298] sm:$0xff]
  %v771 = vld [vmem:[%s3 + $0x2a0] sm:$0xff]
  %v772 = vld [vmem:[%s3 + $0x2a8] sm:$0xff]
  %v773 = vld [vmem:[%s3 + $0x2b0] sm:$0xff]
  %v774 = vld [vmem:[%s3 + $0x2b8] sm:$0xff]
  %v775 = vld [vmem:[%s3 + $0x2c0] sm:$0xff]
  %v776 = vld [vmem:[%s3 + $0x2c8] sm:$0xff]
  %v777 = vld [vmem:[%s3 + $0x2d0] sm:$0xff]
  %v778 = vld [vmem:[%s3 + $0x2d8] sm:$0xff]
  %v779 = vld [vmem:[%s3 + $0x2e0] sm:$0xff]
  %v780 = vld [vmem:[%s3 + $0x2e8] sm:$0xff]
  %v781 = vld [vmem:[%s3 + $0x2f0] sm:$0xff]
  %v782 = vld [vmem:[%s3 + $0x2f8] sm:$0xff]
  %v783 = vld [vmem:[%s3 + $0x300] sm:$0xff]
  %v784 = vld [vmem:[%s3 + $0x308] sm:$0xff]
  %v785 = vld [vmem:[%s3 + $0x310] sm:$0xff]
  %v786 = vld [vmem:[%s3 + $0x318] sm:$0xff]
  %v787 = vld [vmem:[%s3 + $0x320] sm:$0xff]
  %v788 = vld [vmem:[%s3 + $0x328] sm:$0xff]
  %v789 = vld [vmem:[%s3 + $0x330] sm:$0xff]
  %v790 = vld [vmem:[%s3 + $0x338] sm:$0xff]
  %v791 = vld [vmem:[%s3 + $0x340] sm:$0xff]
  %v792 = vld [vmem:[%s3 + $0x348] sm:$0xff]
  %v793 = vld [vmem:[%s3 + $0x350] sm:$0xff]
  %v794 = vld [vmem:[%s3 + $0x358] sm:$0xff]
  %v795 = vld [vmem:[%s3 + $0x360] sm:$0xff]
  %v796 = vld [vmem:[%s3 + $0x368] sm:$0xff]
  %v797 = vld [vmem:[%s3 + $0x370] sm:$0xff]
  %v798 = vld [vmem:[%s3 + $0x378] sm:$0xff]
  %v799 = vld [vmem:[%s3 + $0x380] sm:$0xff]
  %v800 = vld [vmem:[%s3 + $0x388] sm:$0xff]
  %v801 = vld [vmem:[%s3 + $0x390] sm:$0xff]
  %v802 = vld [vmem:[%s3 + $0x398] sm:$0xff]
  %v803 = vld [vmem:[%s3 + $0x3a0] sm:$0xff]
  %v804 = vld [vmem:[%s3 + $0x3a8] sm:$0xff]
  %v805 = vld [vmem:[%s3 + $0x3b0] sm:$0xff]
  %v806 = vld [vmem:[%s3 + $0x3b8] sm:$0xff]
  %v807 = vld [vmem:[%s3 + $0x3c0] sm:$0xff]
  %v808 = vld [vmem:[%s3 + $0x3c8] sm:$0xff]
  %v809 = vld [vmem:[%s3 + $0x3d0] sm:$0xff]
  %v810 = vld [vmem:[%s3 + $0x3d8] sm:$0xff]
  %v811 = vld [vmem:[%s3 + $0x3e0] sm:$0xff]
  %v812 = vld [vmem:[%s3 + $0x3e8] sm:$0xff]
  %v813 = vld [vmem:[%s3 + $0x3f0] sm:$0xff]
  %v814 = vld [vmem:[%s3 + $0x3f8] sm:$0xff]
  %v815 = vld [vmem:[%s3 + $0x400] sm:$0xff]
  %v816 = vld [vmem:[%s3 + $0x408] sm:$0xff]
  %v817 = vld [vmem:[%s3 + $0x410] sm:$0xff]
  %v818 = vld [vmem:[%s3 + $0x418] sm:$0xff]
  %v819 = vld [vmem:[%s3 + $0x420] sm:$0xff]
  %v820 = vld [vmem:[%s3 + $0x428] sm:$0xff]
  %v821 = vld [vmem:[%s3 + $0x430] sm:$0xff]
  %v822 = vld [vmem:[%s3 + $0x438] sm:$0xff]
  %v823 = vld [vmem:[%s3 + $0x440] sm:$0xff]
  %v824 = vld [vmem:[%s3 + $0x448] sm:$0xff]
  %v825 = vld [vmem:[%s3 + $0x450] sm:$0xff]
  %v826 = vld [vmem:[%s3 + $0x458] sm:$0xff]
  %v827 = vld [vmem:[%s3 + $0x460] sm:$0xff]
  %v828 = vld [vmem:[%s3 + $0x468] sm:$0xff]
  %v829 = vld [vmem:[%s3 + $0x470] sm:$0xff]
  %v830 = vld [vmem:[%s3 + $0x478] sm:$0xff]
  %v831 = vld [vmem:[%s3 + $0x480] sm:$0xff]
  %v832 = vld [vmem:[%s3 + $0x488] sm:$0xff]
  %v833 = vld [vmem:[%s3 + $0x490] sm:$0xff]
  %v834 = vld [vmem:[%s3 + $0x498] sm:$0xff]
  %v835 = vld [vmem:[%s3 + $0x4a0] sm:$0xff]
  %v836 = vld [vmem:[%s3 + $0x4a8] sm:$0xff]
  %v837 = vld [vmem:[%s3 + $0x4b0] sm:$0xff]
  %v838 = vld [vmem:[%s3 + $0x4b8] sm:$0xff]
  %v839 = vld [vmem:[%s3 + $0x4c0] sm:$0xff]
  %v840 = vld [vmem:[%s3 + $0x4c8] sm:$0xff]
  %v841 = vld [vmem:[%s3 + $0x4d0] sm:$0xff]
  %v842 = vld [vmem:[%s3 + $0x4d8] sm:$0xff]
  %v843 = vld [vmem:[%s3 + $0x4e0] sm:$0xff]
  %v844 = vld [vmem:[%s3 + $0x4e8] sm:$0xff]
  %v845 = vld [vmem:[%s3 + $0x4f0] sm:$0xff]
  %v846 = vld [vmem:[%s3 + $0x4f8] sm:$0xff]
  %v847 = vld [vmem:[%s3 + $0x500] sm:$0xff]
  %v848 = vld [vmem:[%s3 + $0x508] sm:$0xff]
  %v849 = vld [vmem:[%s3 + $0x510] sm:$0xff]
  %v850 = vld [vmem:[%s3 + $0x518] sm:$0xff]
  %v851 = vld [vmem:[%s3 + $0x520] sm:$0xff]
  %v852 = vld [vmem:[%s3 + $0x528] sm:$0xff]
  %v853 = vld [vmem:[%s3 + $0x530] sm:$0xff]
  %v854 = vld [vmem:[%s3 + $0x538] sm:$0xff]
  %v855 = vld [vmem:[%s3 + $0x540] sm:$0xff]
  %v856 = vld [vmem:[%s3 + $0x548] sm:$0xff]
  %v857 = vld [vmem:[%s3 + $0x550] sm:$0xff]
  %v858 = vld [vmem:[%s3 + $0x558] sm:$0xff]
  %v859 = vld [vmem:[%s3 + $0x560] sm:$0xff]
  %v860 = vld [vmem:[%s3 + $0x568] sm:$0xff]
  %v861 = vld [vmem:[%s3 + $0x570] sm:$0xff]
  %v862 = vld [vmem:[%s3 + $0x578] sm:$0xff]
  %v863 = vld [vmem:[%s3 + $0x580] sm:$0xff]
  %v864 = vld [vmem:[%s3 + $0x588] sm:$0xff]
  %v865 = vld [vmem:[%s3 + $0x590] sm:$0xff]
  %v866 = vld [vmem:[%s3 + $0x598] sm:$0xff]
  %v867 = vld [vmem:[%s3 + $0x5a0] sm:$0xff]
  %v868 = vld [vmem:[%s3 + $0x5a8] sm:$0xff]
  %v869 = vld [vmem:[%s3 + $0x5b0] sm:$0xff]
  %v870 = vld [vmem:[%s3 + $0x5b8] sm:$0xff]
  %v871 = vld [vmem:[%s3 + $0x5c0] sm:$0xff]
  %v872 = vld [vmem:[%s3 + $0x5c8] sm:$0xff]
  %v873 = vld [vmem:[%s3 + $0x5d0] sm:$0xff]
  %v874 = vld [vmem:[%s3 + $0x5d8] sm:$0xff]
  %v875 = vld [vmem:[%s3 + $0x5e0] sm:$0xff]
  %v876 = vld [vmem:[%s3 + $0x5e8] sm:$0xff]
  %v877 = vld [vmem:[%s3 + $0x5f0] sm:$0xff]
  %v878 = vld [vmem:[%s3 + $0x5f8] sm:$0xff]
  %v879 = vld [vmem:[%s3 + $0x600] sm:$0x77]
  %v880 = vld [vmem:[%s3 + $0x608] sm:$0x77]
  %v881 = vld [vmem:[%s3 + $0x610] sm:$0x77]
  %v882 = vld [vmem:[%s3 + $0x618] sm:$0x77]
  %v883 = vld [vmem:[%s3 + $0x620] sm:$0x77]
  %v884 = vld [vmem:[%s3 + $0x628] sm:$0x77]
  %v885 = vld [vmem:[%s3 + $0x630] sm:$0x77]
  %v886 = vld [vmem:[%s3 + $0x638] sm:$0x77]
  %v887 = vld [vmem:[%s3 + $0x640] sm:$0x77]
  %v888 = vld [vmem:[%s3 + $0x648] sm:$0x77]
  %v889 = vld [vmem:[%s3 + $0x650] sm:$0x77]
  %v890 = vld [vmem:[%s3 + $0x658] sm:$0x77]
  %v891 = vld [vmem:[%s3 + $0x660] sm:$0x77]
  %v892 = vld [vmem:[%s3 + $0x668] sm:$0x77]
  %v893 = vld [vmem:[%s3 + $0x670] sm:$0x77]
  %v894 = vld [vmem:[%s3 + $0x678] sm:$0x77]
  %v895 = vld [vmem:[%s3 + $0x680] sm:$0x77]
  %v896 = vld [vmem:[%s3 + $0x688] sm:$0x77]
  %v897 = vld [vmem:[%s3 + $0x690] sm:$0x77]
  %v898 = vld [vmem:[%s3 + $0x698] sm:$0x77]
  %v899 = vld [vmem:[%s3 + $0x6a0] sm:$0x77]
  %v900 = vld [vmem:[%s3 + $0x6a8] sm:$0x77]
  %v901 = vld [vmem:[%s3 + $0x6b0] sm:$0x77]
  %v902 = vld [vmem:[%s3 + $0x6b8] sm:$0x77]
  %v903 = vld [vmem:[%s3 + $0x6c0] sm:$0x77]
  %v904 = vld [vmem:[%s3 + $0x6c8] sm:$0x77]
  %v905 = vld [vmem:[%s3 + $0x6d0] sm:$0x77]
  %v906 = vld [vmem:[%s3 + $0x6d8] sm:$0x77]
  %v907 = vld [vmem:[%s3 + $0x6e0] sm:$0x77]
  %v908 = vld [vmem:[%s3 + $0x6e8] sm:$0x77]
  %v909 = vld [vmem:[%s3 + $0x6f0] sm:$0x77]
  %v910 = vld [vmem:[%s3 + $0x6f8] sm:$0x77]
  %v911 = vld [vmem:[%s3 + $0x700] sm:$0x77]
  %v912 = vld [vmem:[%s3 + $0x708] sm:$0x77]
  %v913 = vld [vmem:[%s3 + $0x710] sm:$0x77]
  %v914 = vld [vmem:[%s3 + $0x718] sm:$0x77]
  %v915 = vld [vmem:[%s3 + $0x720] sm:$0x77]
  %v916 = vld [vmem:[%s3 + $0x728] sm:$0x77]
  %v917 = vld [vmem:[%s3 + $0x730] sm:$0x77]
  %v918 = vld [vmem:[%s3 + $0x738] sm:$0x77]
  %v919 = vld [vmem:[%s3 + $0x740] sm:$0x77]
  %v920 = vld [vmem:[%s3 + $0x748] sm:$0x77]
  %v921 = vld [vmem:[%s3 + $0x750] sm:$0x77]
  %v922 = vld [vmem:[%s3 + $0x758] sm:$0x77]
  %v923 = vld [vmem:[%s3 + $0x760] sm:$0x77]
  %v924 = vld [vmem:[%s3 + $0x768] sm:$0x77]
  %v925 = vld [vmem:[%s3 + $0x770] sm:$0x77]
  %v926 = vld [vmem:[%s3 + $0x778] sm:$0x77]
  %v927 = vld [vmem:[%s3 + $0x780] sm:$0x77]
  %v928 = vld [vmem:[%s3 + $0x788] sm:$0x77]
  %v929 = vld [vmem:[%s3 + $0x790] sm:$0x77]
  %v930 = vld [vmem:[%s3 + $0x798] sm:$0x77]
  %v931 = vld [vmem:[%s3 + $0x7a0] sm:$0x77]
  %v932 = vld [vmem:[%s3 + $0x7a8] sm:$0x77]
  %v933 = vld [vmem:[%s3 + $0x7b0] sm:$0x77]
  %v934 = vld [vmem:[%s3 + $0x7b8] sm:$0x77]
  %v935 = vld [vmem:[%s3 + $0x7c0] sm:$0x77]
  %v936 = vld [vmem:[%s3 + $0x7c8] sm:$0x77]
  %v937 = vld [vmem:[%s3 + $0x7d0] sm:$0x77]
  %v938 = vld [vmem:[%s3 + $0x7d8] sm:$0x77]
  %v939 = vld [vmem:[%s3 + $0x7e0] sm:$0x77]
  %v940 = vld [vmem:[%s3 + $0x7e8] sm:$0x77]
  %v941 = vld [vmem:[%s3 + $0x7f0] sm:$0x77]
  %v942 = vld [vmem:[%s3 + $0x7f8] sm:$0x77]
  %v1199 = vunpack.c.l.b16 %v687
  %v1200 = vunpack.c.h.b16 %v687
  %v1201 = vunpack.c.l.b16 %v688
  %v1202 = vunpack.c.h.b16 %v688
  %v1203 = vunpack.c.l.b16 %v689
  %v1204 = vunpack.c.h.b16 %v689
  %v1205 = vunpack.c.l.b16 %v690
  %v1206 = vunpack.c.h.b16 %v690
  %v1207 = vunpack.c.l.b16 %v691
  %v1208 = vunpack.c.h.b16 %v691
  %v1209 = vunpack.c.l.b16 %v692
  %v1210 = vunpack.c.h.b16 %v692
  %v1211 = vunpack.c.l.b16 %v693
  %v1212 = vunpack.c.h.b16 %v693
  %v1213 = vunpack.c.l.b16 %v694
  %v1214 = vunpack.c.h.b16 %v694
  %v1215 = vunpack.c.l.b16 %v695
  %v1216 = vunpack.c.h.b16 %v695
  %v1217 = vunpack.c.l.b16 %v696
  %v1218 = vunpack.c.h.b16 %v696
  %v1219 = vunpack.c.l.b16 %v697
  %v1220 = vunpack.c.h.b16 %v697
  %v1221 = vunpack.c.l.b16 %v698
  %v1222 = vunpack.c.h.b16 %v698
  %v1223 = vunpack.c.l.b16 %v699
  %v1224 = vunpack.c.h.b16 %v699
  %v1225 = vunpack.c.l.b16 %v700
  %v1226 = vunpack.c.h.b16 %v700
  %v1227 = vunpack.c.l.b16 %v701
  %v1228 = vunpack.c.h.b16 %v701
  %v1229 = vunpack.c.l.b16 %v702
  %v1230 = vunpack.c.h.b16 %v702
  %v1231 = vunpack.c.l.b16 %v703
  %v1232 = vunpack.c.h.b16 %v703
  %v1233 = vunpack.c.l.b16 %v704
  %v1234 = vunpack.c.h.b16 %v704
  %v1235 = vunpack.c.l.b16 %v705
  %v1236 = vunpack.c.h.b16 %v705
  %v1237 = vunpack.c.l.b16 %v706
  %v1238 = vunpack.c.h.b16 %v706
  %v1239 = vunpack.c.l.b16 %v707
  %v1240 = vunpack.c.h.b16 %v707
  %v1241 = vunpack.c.l.b16 %v708
  %v1242 = vunpack.c.h.b16 %v708
  %v1243 = vunpack.c.l.b16 %v709
  %v1244 = vunpack.c.h.b16 %v709
  %v1245 = vunpack.c.l.b16 %v710
  %v1246 = vunpack.c.h.b16 %v710
  %v1247 = vunpack.c.l.b16 %v711
  %v1248 = vunpack.c.h.b16 %v711
  %v1249 = vunpack.c.l.b16 %v712
  %v1250 = vunpack.c.h.b16 %v712
  %v1251 = vunpack.c.l.b16 %v713
  %v1252 = vunpack.c.h.b16 %v713
  %v1253 = vunpack.c.l.b16 %v714
  %v1254 = vunpack.c.h.b16 %v714
  %v1255 = vunpack.c.l.b16 %v715
  %v1256 = vunpack.c.h.b16 %v715
  %v1257 = vunpack.c.l.b16 %v716
  %v1258 = vunpack.c.h.b16 %v716
  %v1259 = vunpack.c.l.b16 %v717
  %v1260 = vunpack.c.h.b16 %v717
  %v1261 = vunpack.c.l.b16 %v718
  %v1262 = vunpack.c.h.b16 %v718
  %v1263 = vunpack.c.l.b16 %v719
  %v1264 = vunpack.c.h.b16 %v719
  %v1265 = vunpack.c.l.b16 %v720
  %v1266 = vunpack.c.h.b16 %v720
  %v1267 = vunpack.c.l.b16 %v721
  %v1268 = vunpack.c.h.b16 %v721
  %v1269 = vunpack.c.l.b16 %v722
  %v1270 = vunpack.c.h.b16 %v722
  %v1271 = vunpack.c.l.b16 %v723
  %v1272 = vunpack.c.h.b16 %v723
  %v1273 = vunpack.c.l.b16 %v724
  %v1274 = vunpack.c.h.b16 %v724
  %v1275 = vunpack.c.l.b16 %v725
  %v1276 = vunpack.c.h.b16 %v725
  %v1277 = vunpack.c.l.b16 %v726
  %v1278 = vunpack.c.h.b16 %v726
  %v1279 = vunpack.c.l.b16 %v727
  %v1280 = vunpack.c.h.b16 %v727
  %v1281 = vunpack.c.l.b16 %v728
  %v1282 = vunpack.c.h.b16 %v728
  %v1283 = vunpack.c.l.b16 %v729
  %v1284 = vunpack.c.h.b16 %v729
  %v1285 = vunpack.c.l.b16 %v730
  %v1286 = vunpack.c.h.b16 %v730
  %v1287 = vunpack.c.l.b16 %v731
  %v1288 = vunpack.c.h.b16 %v731
  %v1289 = vunpack.c.l.b16 %v732
  %v1290 = vunpack.c.h.b16 %v732
  %v1291 = vunpack.c.l.b16 %v733
  %v1292 = vunpack.c.h.b16 %v733
  %v1293 = vunpack.c.l.b16 %v734
  %v1294 = vunpack.c.h.b16 %v734
  %v1295 = vunpack.c.l.b16 %v735
  %v1296 = vunpack.c.h.b16 %v735
  %v1297 = vunpack.c.l.b16 %v736
  %v1298 = vunpack.c.h.b16 %v736
  %v1299 = vunpack.c.l.b16 %v737
  %v1300 = vunpack.c.h.b16 %v737
  %v1301 = vunpack.c.l.b16 %v738
  %v1302 = vunpack.c.h.b16 %v738
  %v1303 = vunpack.c.l.b16 %v739
  %v1304 = vunpack.c.h.b16 %v739
  %v1305 = vunpack.c.l.b16 %v740
  %v1306 = vunpack.c.h.b16 %v740
  %v1307 = vunpack.c.l.b16 %v741
  %v1308 = vunpack.c.h.b16 %v741
  %v1309 = vunpack.c.l.b16 %v742
  %v1310 = vunpack.c.h.b16 %v742
  %v1311 = vunpack.c.l.b16 %v743
  %v1312 = vunpack.c.h.b16 %v743
  %v1313 = vunpack.c.l.b16 %v744
  %v1314 = vunpack.c.h.b16 %v744
  %v1315 = vunpack.c.l.b16 %v745
  %v1316 = vunpack.c.h.b16 %v745
  %v1317 = vunpack.c.l.b16 %v746
  %v1318 = vunpack.c.h.b16 %v746
  %v1319 = vunpack.c.l.b16 %v747
  %v1320 = vunpack.c.h.b16 %v747
  %v1321 = vunpack.c.l.b16 %v748
  %v1322 = vunpack.c.h.b16 %v748
  %v1323 = vunpack.c.l.b16 %v749
  %v1324 = vunpack.c.h.b16 %v749
  %v1325 = vunpack.c.l.b16 %v750
  %v1326 = vunpack.c.h.b16 %v750
  %v1327 = vunpack.c.l.b16 %v751
  %v1328 = vunpack.c.h.b16 %v751
  %v1329 = vunpack.c.l.b16 %v752
  %v1330 = vunpack.c.h.b16 %v752
  %v1331 = vunpack.c.l.b16 %v753
  %v1332 = vunpack.c.h.b16 %v753
  %v1333 = vunpack.c.l.b16 %v754
  %v1334 = vunpack.c.h.b16 %v754
  %v1335 = vunpack.c.l.b16 %v755
  %v1336 = vunpack.c.h.b16 %v755
  %v1337 = vunpack.c.l.b16 %v756
  %v1338 = vunpack.c.h.b16 %v756
  %v1339 = vunpack.c.l.b16 %v757
  %v1340 = vunpack.c.h.b16 %v757
  %v1341 = vunpack.c.l.b16 %v758
  %v1342 = vunpack.c.h.b16 %v758
  %v1343 = vunpack.c.l.b16 %v759
  %v1344 = vunpack.c.h.b16 %v759
  %v1345 = vunpack.c.l.b16 %v760
  %v1346 = vunpack.c.h.b16 %v760
  %v1347 = vunpack.c.l.b16 %v761
  %v1348 = vunpack.c.h.b16 %v761
  %v1349 = vunpack.c.l.b16 %v762
  %v1350 = vunpack.c.h.b16 %v762
  %v1351 = vunpack.c.l.b16 %v763
  %v1352 = vunpack.c.h.b16 %v763
  %v1353 = vunpack.c.l.b16 %v764
  %v1354 = vunpack.c.h.b16 %v764
  %v1355 = vunpack.c.l.b16 %v765
  %v1356 = vunpack.c.h.b16 %v765
  %v1357 = vunpack.c.l.b16 %v766
  %v1358 = vunpack.c.h.b16 %v766
  %v1359 = vunpack.c.l.b16 %v767
  %v1360 = vunpack.c.h.b16 %v767
  %v1361 = vunpack.c.l.b16 %v768
  %v1362 = vunpack.c.h.b16 %v768
  %v1363 = vunpack.c.l.b16 %v769
  %v1364 = vunpack.c.h.b16 %v769
  %v1365 = vunpack.c.l.b16 %v770
  %v1366 = vunpack.c.h.b16 %v770
  %v1367 = vunpack.c.l.b16 %v771
  %v1368 = vunpack.c.h.b16 %v771
  %v1369 = vunpack.c.l.b16 %v772
  %v1370 = vunpack.c.h.b16 %v772
  %v1371 = vunpack.c.l.b16 %v773
  %v1372 = vunpack.c.h.b16 %v773
  %v1373 = vunpack.c.l.b16 %v774
  %v1374 = vunpack.c.h.b16 %v774
  %v1375 = vunpack.c.l.b16 %v775
  %v1376 = vunpack.c.h.b16 %v775
  %v1377 = vunpack.c.l.b16 %v776
  %v1378 = vunpack.c.h.b16 %v776
  %v1379 = vunpack.c.l.b16 %v777
  %v1380 = vunpack.c.h.b16 %v777
  %v1381 = vunpack.c.l.b16 %v778
  %v1382 = vunpack.c.h.b16 %v778
  %v1383 = vunpack.c.l.b16 %v779
  %v1384 = vunpack.c.h.b16 %v779
  %v1385 = vunpack.c.l.b16 %v780
  %v1386 = vunpack.c.h.b16 %v780
  %v1387 = vunpack.c.l.b16 %v781
  %v1388 = vunpack.c.h.b16 %v781
  %v1389 = vunpack.c.l.b16 %v782
  %v1390 = vunpack.c.h.b16 %v782
  %v1391 = vunpack.c.l.b16 %v783
  %v1392 = vunpack.c.h.b16 %v783
  %v1393 = vunpack.c.l.b16 %v784
  %v1394 = vunpack.c.h.b16 %v784
  %v1395 = vunpack.c.l.b16 %v785
  %v1396 = vunpack.c.h.b16 %v785
  %v1397 = vunpack.c.l.b16 %v786
  %v1398 = vunpack.c.h.b16 %v786
  %v1399 = vunpack.c.l.b16 %v787
  %v1400 = vunpack.c.h.b16 %v787
  %v1401 = vunpack.c.l.b16 %v788
  %v1402 = vunpack.c.h.b16 %v788
  %v1403 = vunpack.c.l.b16 %v789
  %v1404 = vunpack.c.h.b16 %v789
  %v1405 = vunpack.c.l.b16 %v790
  %v1406 = vunpack.c.h.b16 %v790
  %v1407 = vunpack.c.l.b16 %v791
  %v1408 = vunpack.c.h.b16 %v791
  %v1409 = vunpack.c.l.b16 %v792
  %v1410 = vunpack.c.h.b16 %v792
  %v1411 = vunpack.c.l.b16 %v793
  %v1412 = vunpack.c.h.b16 %v793
  %v1413 = vunpack.c.l.b16 %v794
  %v1414 = vunpack.c.h.b16 %v794
  %v1415 = vunpack.c.l.b16 %v795
  %v1416 = vunpack.c.h.b16 %v795
  %v1417 = vunpack.c.l.b16 %v796
  %v1418 = vunpack.c.h.b16 %v796
  %v1419 = vunpack.c.l.b16 %v797
  %v1420 = vunpack.c.h.b16 %v797
  %v1421 = vunpack.c.l.b16 %v798
  %v1422 = vunpack.c.h.b16 %v798
  %v1423 = vunpack.c.l.b16 %v799
  %v1424 = vunpack.c.h.b16 %v799
  %v1425 = vunpack.c.l.b16 %v800
  %v1426 = vunpack.c.h.b16 %v800
  %v1427 = vunpack.c.l.b16 %v801
  %v1428 = vunpack.c.h.b16 %v801
  %v1429 = vunpack.c.l.b16 %v802
  %v1430 = vunpack.c.h.b16 %v802
  %v1431 = vunpack.c.l.b16 %v803
  %v1432 = vunpack.c.h.b16 %v803
  %v1433 = vunpack.c.l.b16 %v804
  %v1434 = vunpack.c.h.b16 %v804
  %v1435 = vunpack.c.l.b16 %v805
  %v1436 = vunpack.c.h.b16 %v805
  %v1437 = vunpack.c.l.b16 %v806
  %v1438 = vunpack.c.h.b16 %v806
  %v1439 = vunpack.c.l.b16 %v807
  %v1440 = vunpack.c.h.b16 %v807
  %v1441 = vunpack.c.l.b16 %v808
  %v1442 = vunpack.c.h.b16 %v808
  %v1443 = vunpack.c.l.b16 %v809
  %v1444 = vunpack.c.h.b16 %v809
  %v1445 = vunpack.c.l.b16 %v810
  %v1446 = vunpack.c.h.b16 %v810
  %v1447 = vunpack.c.l.b16 %v811
  %v1448 = vunpack.c.h.b16 %v811
  %v1449 = vunpack.c.l.b16 %v812
  %v1450 = vunpack.c.h.b16 %v812
  %v1451 = vunpack.c.l.b16 %v813
  %v1452 = vunpack.c.h.b16 %v813
  %v1453 = vunpack.c.l.b16 %v814
  %v1454 = vunpack.c.h.b16 %v814
  %v1455 = vunpack.c.l.b16 %v815
  %v1456 = vunpack.c.h.b16 %v815
  %v1457 = vunpack.c.l.b16 %v816
  %v1458 = vunpack.c.h.b16 %v816
  %v1459 = vunpack.c.l.b16 %v817
  %v1460 = vunpack.c.h.b16 %v817
  %v1461 = vunpack.c.l.b16 %v818
  %v1462 = vunpack.c.h.b16 %v818
  %v1463 = vunpack.c.l.b16 %v819
  %v1464 = vunpack.c.h.b16 %v819
  %v1465 = vunpack.c.l.b16 %v820
  %v1466 = vunpack.c.h.b16 %v820
  %v1467 = vunpack.c.l.b16 %v821
  %v1468 = vunpack.c.h.b16 %v821
  %v1469 = vunpack.c.l.b16 %v822
  %v1470 = vunpack.c.h.b16 %v822
  %v1471 = vunpack.c.l.b16 %v823
  %v1472 = vunpack.c.h.b16 %v823
  %v1473 = vunpack.c.l.b16 %v824
  %v1474 = vunpack.c.h.b16 %v824
  %v1475 = vunpack.c.l.b16 %v825
  %v1476 = vunpack.c.h.b16 %v825
  %v1477 = vunpack.c.l.b16 %v826
  %v1478 = vunpack.c.h.b16 %v826
  %v1479 = vunpack.c.l.b16 %v827
  %v1480 = vunpack.c.h.b16 %v827
  %v1481 = vunpack.c.l.b16 %v828
  %v1482 = vunpack.c.h.b16 %v828
  %v1483 = vunpack.c.l.b16 %v829
  %v1484 = vunpack.c.h.b16 %v829
  %v1485 = vunpack.c.l.b16 %v830
  %v1486 = vunpack.c.h.b16 %v830
  %v1487 = vunpack.c.l.b16 %v831
  %v1488 = vunpack.c.h.b16 %v831
  %v1489 = vunpack.c.l.b16 %v832
  %v1490 = vunpack.c.h.b16 %v832
  %v1491 = vunpack.c.l.b16 %v833
  %v1492 = vunpack.c.h.b16 %v833
  %v1493 = vunpack.c.l.b16 %v834
  %v1494 = vunpack.c.h.b16 %v834
  %v1495 = vunpack.c.l.b16 %v835
  %v1496 = vunpack.c.h.b16 %v835
  %v1497 = vunpack.c.l.b16 %v836
  %v1498 = vunpack.c.h.b16 %v836
  %v1499 = vunpack.c.l.b16 %v837
  %v1500 = vunpack.c.h.b16 %v837
  %v1501 = vunpack.c.l.b16 %v838
  %v1502 = vunpack.c.h.b16 %v838
  %v1503 = vunpack.c.l.b16 %v839
  %v1504 = vunpack.c.h.b16 %v839
  %v1505 = vunpack.c.l.b16 %v840
  %v1506 = vunpack.c.h.b16 %v840
  %v1507 = vunpack.c.l.b16 %v841
  %v1508 = vunpack.c.h.b16 %v841
  %v1509 = vunpack.c.l.b16 %v842
  %v1510 = vunpack.c.h.b16 %v842
  %v1511 = vunpack.c.l.b16 %v843
  %v1512 = vunpack.c.h.b16 %v843
  %v1513 = vunpack.c.l.b16 %v844
  %v1514 = vunpack.c.h.b16 %v844
  %v1515 = vunpack.c.l.b16 %v845
  %v1516 = vunpack.c.h.b16 %v845
  %v1517 = vunpack.c.l.b16 %v846
  %v1518 = vunpack.c.h.b16 %v846
  %v1519 = vunpack.c.l.b16 %v847
  %v1520 = vunpack.c.h.b16 %v847
  %v1521 = vunpack.c.l.b16 %v848
  %v1522 = vunpack.c.h.b16 %v848
  %v1523 = vunpack.c.l.b16 %v849
  %v1524 = vunpack.c.h.b16 %v849
  %v1525 = vunpack.c.l.b16 %v850
  %v1526 = vunpack.c.h.b16 %v850
  %v1527 = vunpack.c.l.b16 %v851
  %v1528 = vunpack.c.h.b16 %v851
  %v1529 = vunpack.c.l.b16 %v852
  %v1530 = vunpack.c.h.b16 %v852
  %v1531 = vunpack.c.l.b16 %v853
  %v1532 = vunpack.c.h.b16 %v853
  %v1533 = vunpack.c.l.b16 %v854
  %v1534 = vunpack.c.h.b16 %v854
  %v1535 = vunpack.c.l.b16 %v855
  %v1536 = vunpack.c.h.b16 %v855
  %v1537 = vunpack.c.l.b16 %v856
  %v1538 = vunpack.c.h.b16 %v856
  %v1539 = vunpack.c.l.b16 %v857
  %v1540 = vunpack.c.h.b16 %v857
  %v1541 = vunpack.c.l.b16 %v858
  %v1542 = vunpack.c.h.b16 %v858
  %v1543 = vunpack.c.l.b16 %v859
  %v1544 = vunpack.c.h.b16 %v859
  %v1545 = vunpack.c.l.b16 %v860
  %v1546 = vunpack.c.h.b16 %v860
  %v1547 = vunpack.c.l.b16 %v861
  %v1548 = vunpack.c.h.b16 %v861
  %v1549 = vunpack.c.l.b16 %v862
  %v1550 = vunpack.c.h.b16 %v862
  %v1551 = vunpack.c.l.b16 %v863
  %v1552 = vunpack.c.h.b16 %v863
  %v1553 = vunpack.c.l.b16 %v864
  %v1554 = vunpack.c.h.b16 %v864
  %v1555 = vunpack.c.l.b16 %v865
  %v1556 = vunpack.c.h.b16 %v865
  %v1557 = vunpack.c.l.b16 %v866
  %v1558 = vunpack.c.h.b16 %v866
  %v1559 = vunpack.c.l.b16 %v867
  %v1560 = vunpack.c.h.b16 %v867
  %v1561 = vunpack.c.l.b16 %v868
  %v1562 = vunpack.c.h.b16 %v868
  %v1563 = vunpack.c.l.b16 %v869
  %v1564 = vunpack.c.h.b16 %v869
  %v1565 = vunpack.c.l.b16 %v870
  %v1566 = vunpack.c.h.b16 %v870
  %v1567 = vunpack.c.l.b16 %v871
  %v1568 = vunpack.c.h.b16 %v871
  %v1569 = vunpack.c.l.b16 %v872
  %v1570 = vunpack.c.h.b16 %v872
  %v1571 = vunpack.c.l.b16 %v873
  %v1572 = vunpack.c.h.b16 %v873
  %v1573 = vunpack.c.l.b16 %v874
  %v1574 = vunpack.c.h.b16 %v874
  %v1575 = vunpack.c.l.b16 %v875
  %v1576 = vunpack.c.h.b16 %v875
  %v1577 = vunpack.c.l.b16 %v876
  %v1578 = vunpack.c.h.b16 %v876
  %v1579 = vunpack.c.l.b16 %v877
  %v1580 = vunpack.c.h.b16 %v877
  %v1581 = vunpack.c.l.b16 %v878
  %v1582 = vunpack.c.h.b16 %v878
  %v1583 = vunpack.c.l.b16 %v879
  %v1584 = vunpack.c.h.b16 %v879
  %v1585 = vunpack.c.l.b16 %v880
  %v1586 = vunpack.c.h.b16 %v880
  %v1587 = vunpack.c.l.b16 %v881
  %v1588 = vunpack.c.h.b16 %v881
  %v1589 = vunpack.c.l.b16 %v882
  %v1590 = vunpack.c.h.b16 %v882
  %v1591 = vunpack.c.l.b16 %v883
  %v1592 = vunpack.c.h.b16 %v883
  %v1593 = vunpack.c.l.b16 %v884
  %v1594 = vunpack.c.h.b16 %v884
  %v1595 = vunpack.c.l.b16 %v885
  %v1596 = vunpack.c.h.b16 %v885
  %v1597 = vunpack.c.l.b16 %v886
  %v1598 = vunpack.c.h.b16 %v886
  %v1599 = vunpack.c.l.b16 %v887
  %v1600 = vunpack.c.h.b16 %v887
  %v1601 = vunpack.c.l.b16 %v888
  %v1602 = vunpack.c.h.b16 %v888
  %v1603 = vunpack.c.l.b16 %v889
  %v1604 = vunpack.c.h.b16 %v889
  %v1605 = vunpack.c.l.b16 %v890
  %v1606 = vunpack.c.h.b16 %v890
  %v1607 = vunpack.c.l.b16 %v891
  %v1608 = vunpack.c.h.b16 %v891
  %v1609 = vunpack.c.l.b16 %v892
  %v1610 = vunpack.c.h.b16 %v892
  %v1611 = vunpack.c.l.b16 %v893
  %v1612 = vunpack.c.h.b16 %v893
  %v1613 = vunpack.c.l.b16 %v894
  %v1614 = vunpack.c.h.b16 %v894
  %v1615 = vunpack.c.l.b16 %v895
  %v1616 = vunpack.c.h.b16 %v895
  %v1617 = vunpack.c.l.b16 %v896
  %v1618 = vunpack.c.h.b16 %v896
  %v1619 = vunpack.c.l.b16 %v897
  %v1620 = vunpack.c.h.b16 %v897
  %v1621 = vunpack.c.l.b16 %v898
  %v1622 = vunpack.c.h.b16 %v898
  %v1623 = vunpack.c.l.b16 %v899
  %v1624 = vunpack.c.h.b16 %v899
  %v1625 = vunpack.c.l.b16 %v900
  %v1626 = vunpack.c.h.b16 %v900
  %v1627 = vunpack.c.l.b16 %v901
  %v1628 = vunpack.c.h.b16 %v901
  %v1629 = vunpack.c.l.b16 %v902
  %v1630 = vunpack.c.h.b16 %v902
  %v1631 = vunpack.c.l.b16 %v903
  %v1632 = vunpack.c.h.b16 %v903
  %v1633 = vunpack.c.l.b16 %v904
  %v1634 = vunpack.c.h.b16 %v904
  %v1635 = vunpack.c.l.b16 %v905
  %v1636 = vunpack.c.h.b16 %v905
  %v1637 = vunpack.c.l.b16 %v906
  %v1638 = vunpack.c.h.b16 %v906
  %v1639 = vunpack.c.l.b16 %v907
  %v1640 = vunpack.c.h.b16 %v907
  %v1641 = vunpack.c.l.b16 %v908
  %v1642 = vunpack.c.h.b16 %v908
  %v1643 = vunpack.c.l.b16 %v909
  %v1644 = vunpack.c.h.b16 %v909
  %v1645 = vunpack.c.l.b16 %v910
  %v1646 = vunpack.c.h.b16 %v910
  %v1647 = vunpack.c.l.b16 %v911
  %v1648 = vunpack.c.h.b16 %v911
  %v1649 = vunpack.c.l.b16 %v912
  %v1650 = vunpack.c.h.b16 %v912
  %v1651 = vunpack.c.l.b16 %v913
  %v1652 = vunpack.c.h.b16 %v913
  %v1653 = vunpack.c.l.b16 %v914
  %v1654 = vunpack.c.h.b16 %v914
  %v1655 = vunpack.c.l.b16 %v915
  %v1656 = vunpack.c.h.b16 %v915
  %v1657 = vunpack.c.l.b16 %v916
  %v1658 = vunpack.c.h.b16 %v916
  %v1659 = vunpack.c.l.b16 %v917
  %v1660 = vunpack.c.h.b16 %v917
  %v1661 = vunpack.c.l.b16 %v918
  %v1662 = vunpack.c.h.b16 %v918
  %v1663 = vunpack.c.l.b16 %v919
  %v1664 = vunpack.c.h.b16 %v919
  %v1665 = vunpack.c.l.b16 %v920
  %v1666 = vunpack.c.h.b16 %v920
  %v1667 = vunpack.c.l.b16 %v921
  %v1668 = vunpack.c.h.b16 %v921
  %v1669 = vunpack.c.l.b16 %v922
  %v1670 = vunpack.c.h.b16 %v922
  %v1671 = vunpack.c.l.b16 %v923
  %v1672 = vunpack.c.h.b16 %v923
  %v1673 = vunpack.c.l.b16 %v924
  %v1674 = vunpack.c.h.b16 %v924
  %v1675 = vunpack.c.l.b16 %v925
  %v1676 = vunpack.c.h.b16 %v925
  %v1677 = vunpack.c.l.b16 %v926
  %v1678 = vunpack.c.h.b16 %v926
  %v1679 = vunpack.c.l.b16 %v927
  %v1680 = vunpack.c.h.b16 %v927
  %v1681 = vunpack.c.l.b16 %v928
  %v1682 = vunpack.c.h.b16 %v928
  %v1683 = vunpack.c.l.b16 %v929
  %v1684 = vunpack.c.h.b16 %v929
  %v1685 = vunpack.c.l.b16 %v930
  %v1686 = vunpack.c.h.b16 %v930
  %v1687 = vunpack.c.l.b16 %v931
  %v1688 = vunpack.c.h.b16 %v931
  %v1689 = vunpack.c.l.b16 %v932
  %v1690 = vunpack.c.h.b16 %v932
  %v1691 = vunpack.c.l.b16 %v933
  %v1692 = vunpack.c.h.b16 %v933
  %v1693 = vunpack.c.l.b16 %v934
  %v1694 = vunpack.c.h.b16 %v934
  %v1695 = vunpack.c.l.b16 %v935
  %v1696 = vunpack.c.h.b16 %v935
  %v1697 = vunpack.c.l.b16 %v936
  %v1698 = vunpack.c.h.b16 %v936
  %v1699 = vunpack.c.l.b16 %v937
  %v1700 = vunpack.c.h.b16 %v937
  %v1701 = vunpack.c.l.b16 %v938
  %v1702 = vunpack.c.h.b16 %v938
  %v1703 = vunpack.c.l.b16 %v939
  %v1704 = vunpack.c.h.b16 %v939
  %v1705 = vunpack.c.l.b16 %v940
  %v1706 = vunpack.c.h.b16 %v940
  %v1707 = vunpack.c.l.b16 %v941
  %v1708 = vunpack.c.h.b16 %v941
  %v1709 = vunpack.c.l.b16 %v942
  %v1710 = vunpack.c.h.b16 %v942
  %v1711 = vpack.c.b16 %v1327, %v1199
  %v1712 = vpack.c.b16 %v1328, %v1200
  %v1713 = vpack.c.b16 %v1329, %v1201
  %v1714 = vpack.c.b16 %v1330, %v1202
  %v1715 = vpack.c.b16 %v1331, %v1203
  %v1716 = vpack.c.b16 %v1332, %v1204
  %v1717 = vpack.c.b16 %v1333, %v1205
  %v1718 = vpack.c.b16 %v1334, %v1206
  %v1719 = vpack.c.b16 %v1335, %v1207
  %v1720 = vpack.c.b16 %v1336, %v1208
  %v1721 = vpack.c.b16 %v1337, %v1209
  %v1722 = vpack.c.b16 %v1338, %v1210
  %v1723 = vpack.c.b16 %v1339, %v1211
  %v1724 = vpack.c.b16 %v1340, %v1212
  %v1725 = vpack.c.b16 %v1341, %v1213
  %v1726 = vpack.c.b16 %v1342, %v1214
  %v1727 = vpack.c.b16 %v1343, %v1215
  %v1728 = vpack.c.b16 %v1344, %v1216
  %v1729 = vpack.c.b16 %v1345, %v1217
  %v1730 = vpack.c.b16 %v1346, %v1218
  %v1731 = vpack.c.b16 %v1347, %v1219
  %v1732 = vpack.c.b16 %v1348, %v1220
  %v1733 = vpack.c.b16 %v1349, %v1221
  %v1734 = vpack.c.b16 %v1350, %v1222
  %v1735 = vpack.c.b16 %v1351, %v1223
  %v1736 = vpack.c.b16 %v1352, %v1224
  %v1737 = vpack.c.b16 %v1353, %v1225
  %v1738 = vpack.c.b16 %v1354, %v1226
  %v1739 = vpack.c.b16 %v1355, %v1227
  %v1740 = vpack.c.b16 %v1356, %v1228
  %v1741 = vpack.c.b16 %v1357, %v1229
  %v1742 = vpack.c.b16 %v1358, %v1230
  %v1743 = vpack.c.b16 %v1359, %v1231
  %v1744 = vpack.c.b16 %v1360, %v1232
  %v1745 = vpack.c.b16 %v1361, %v1233
  %v1746 = vpack.c.b16 %v1362, %v1234
  %v1747 = vpack.c.b16 %v1363, %v1235
  %v1748 = vpack.c.b16 %v1364, %v1236
  %v1749 = vpack.c.b16 %v1365, %v1237
  %v1750 = vpack.c.b16 %v1366, %v1238
  %v1751 = vpack.c.b16 %v1367, %v1239
  %v1752 = vpack.c.b16 %v1368, %v1240
  %v1753 = vpack.c.b16 %v1369, %v1241
  %v1754 = vpack.c.b16 %v1370, %v1242
  %v1755 = vpack.c.b16 %v1371, %v1243
  %v1756 = vpack.c.b16 %v1372, %v1244
  %v1757 = vpack.c.b16 %v1373, %v1245
  %v1758 = vpack.c.b16 %v1374, %v1246
  %v1759 = vpack.c.b16 %v1375, %v1247
  %v1760 = vpack.c.b16 %v1376, %v1248
  %v1761 = vpack.c.b16 %v1377, %v1249
  %v1762 = vpack.c.b16 %v1378, %v1250
  %v1763 = vpack.c.b16 %v1379, %v1251
  %v1764 = vpack.c.b16 %v1380, %v1252
  %v1765 = vpack.c.b16 %v1381, %v1253
  %v1766 = vpack.c.b16 %v1382, %v1254
  %v1767 = vpack.c.b16 %v1383, %v1255
  %v1768 = vpack.c.b16 %v1384, %v1256
  %v1769 = vpack.c.b16 %v1385, %v1257
  %v1770 = vpack.c.b16 %v1386, %v1258
  %v1771 = vpack.c.b16 %v1387, %v1259
  %v1772 = vpack.c.b16 %v1388, %v1260
  %v1773 = vpack.c.b16 %v1389, %v1261
  %v1774 = vpack.c.b16 %v1390, %v1262
  %v1775 = vpack.c.b16 %v1391, %v1263
  %v1776 = vpack.c.b16 %v1392, %v1264
  %v1777 = vpack.c.b16 %v1393, %v1265
  %v1778 = vpack.c.b16 %v1394, %v1266
  %v1779 = vpack.c.b16 %v1395, %v1267
  %v1780 = vpack.c.b16 %v1396, %v1268
  %v1781 = vpack.c.b16 %v1397, %v1269
  %v1782 = vpack.c.b16 %v1398, %v1270
  %v1783 = vpack.c.b16 %v1399, %v1271
  %v1784 = vpack.c.b16 %v1400, %v1272
  %v1785 = vpack.c.b16 %v1401, %v1273
  %v1786 = vpack.c.b16 %v1402, %v1274
  %v1787 = vpack.c.b16 %v1403, %v1275
  %v1788 = vpack.c.b16 %v1404, %v1276
  %v1789 = vpack.c.b16 %v1405, %v1277
  %v1790 = vpack.c.b16 %v1406, %v1278
  %v1791 = vpack.c.b16 %v1407, %v1279
  %v1792 = vpack.c.b16 %v1408, %v1280
  %v1793 = vpack.c.b16 %v1409, %v1281
  %v1794 = vpack.c.b16 %v1410, %v1282
  %v1795 = vpack.c.b16 %v1411, %v1283
  %v1796 = vpack.c.b16 %v1412, %v1284
  %v1797 = vpack.c.b16 %v1413, %v1285
  %v1798 = vpack.c.b16 %v1414, %v1286
  %v1799 = vpack.c.b16 %v1415, %v1287
  %v1800 = vpack.c.b16 %v1416, %v1288
  %v1801 = vpack.c.b16 %v1417, %v1289
  %v1802 = vpack.c.b16 %v1418, %v1290
  %v1803 = vpack.c.b16 %v1419, %v1291
  %v1804 = vpack.c.b16 %v1420, %v1292
  %v1805 = vpack.c.b16 %v1421, %v1293
  %v1806 = vpack.c.b16 %v1422, %v1294
  %v1807 = vpack.c.b16 %v1423, %v1295
  %v1808 = vpack.c.b16 %v1424, %v1296
  %v1809 = vpack.c.b16 %v1425, %v1297
  %v1810 = vpack.c.b16 %v1426, %v1298
  %v1811 = vpack.c.b16 %v1427, %v1299
  %v1812 = vpack.c.b16 %v1428, %v1300
  %v1813 = vpack.c.b16 %v1429, %v1301
  %v1814 = vpack.c.b16 %v1430, %v1302
  %v1815 = vpack.c.b16 %v1431, %v1303
  %v1816 = vpack.c.b16 %v1432, %v1304
  %v1817 = vpack.c.b16 %v1433, %v1305
  %v1818 = vpack.c.b16 %v1434, %v1306
  %v1819 = vpack.c.b16 %v1435, %v1307
  %v1820 = vpack.c.b16 %v1436, %v1308
  %v1821 = vpack.c.b16 %v1437, %v1309
  %v1822 = vpack.c.b16 %v1438, %v1310
  %v1823 = vpack.c.b16 %v1439, %v1311
  %v1824 = vpack.c.b16 %v1440, %v1312
  %v1825 = vpack.c.b16 %v1441, %v1313
  %v1826 = vpack.c.b16 %v1442, %v1314
  %v1827 = vpack.c.b16 %v1443, %v1315
  %v1828 = vpack.c.b16 %v1444, %v1316
  %v1829 = vpack.c.b16 %v1445, %v1317
  %v1830 = vpack.c.b16 %v1446, %v1318
  %v1831 = vpack.c.b16 %v1447, %v1319
  %v1832 = vpack.c.b16 %v1448, %v1320
  %v1833 = vpack.c.b16 %v1449, %v1321
  %v1834 = vpack.c.b16 %v1450, %v1322
  %v1835 = vpack.c.b16 %v1451, %v1323
  %v1836 = vpack.c.b16 %v1452, %v1324
  %v1837 = vpack.c.b16 %v1453, %v1325
  %v1838 = vpack.c.b16 %v1454, %v1326
  %v1839 = vpack.c.b16 %v1583, %v1455
  %v1840 = vpack.c.b16 %v1584, %v1456
  %v1841 = vpack.c.b16 %v1585, %v1457
  %v1842 = vpack.c.b16 %v1586, %v1458
  %v1843 = vpack.c.b16 %v1587, %v1459
  %v1844 = vpack.c.b16 %v1588, %v1460
  %v1845 = vpack.c.b16 %v1589, %v1461
  %v1846 = vpack.c.b16 %v1590, %v1462
  %v1847 = vpack.c.b16 %v1591, %v1463
  %v1848 = vpack.c.b16 %v1592, %v1464
  %v1849 = vpack.c.b16 %v1593, %v1465
  %v1850 = vpack.c.b16 %v1594, %v1466
  %v1851 = vpack.c.b16 %v1595, %v1467
  %v1852 = vpack.c.b16 %v1596, %v1468
  %v1853 = vpack.c.b16 %v1597, %v1469
  %v1854 = vpack.c.b16 %v1598, %v1470
  %v1855 = vpack.c.b16 %v1599, %v1471
  %v1856 = vpack.c.b16 %v1600, %v1472
  %v1857 = vpack.c.b16 %v1601, %v1473
  %v1858 = vpack.c.b16 %v1602, %v1474
  %v1859 = vpack.c.b16 %v1603, %v1475
  %v1860 = vpack.c.b16 %v1604, %v1476
  %v1861 = vpack.c.b16 %v1605, %v1477
  %v1862 = vpack.c.b16 %v1606, %v1478
  %v1863 = vpack.c.b16 %v1607, %v1479
  %v1864 = vpack.c.b16 %v1608, %v1480
  %v1865 = vpack.c.b16 %v1609, %v1481
  %v1866 = vpack.c.b16 %v1610, %v1482
  %v1867 = vpack.c.b16 %v1611, %v1483
  %v1868 = vpack.c.b16 %v1612, %v1484
  %v1869 = vpack.c.b16 %v1613, %v1485
  %v1870 = vpack.c.b16 %v1614, %v1486
  %v1871 = vpack.c.b16 %v1615, %v1487
  %v1872 = vpack.c.b16 %v1616, %v1488
  %v1873 = vpack.c.b16 %v1617, %v1489
  %v1874 = vpack.c.b16 %v1618, %v1490
  %v1875 = vpack.c.b16 %v1619, %v1491
  %v1876 = vpack.c.b16 %v1620, %v1492
  %v1877 = vpack.c.b16 %v1621, %v1493
  %v1878 = vpack.c.b16 %v1622, %v1494
  %v1879 = vpack.c.b16 %v1623, %v1495
  %v1880 = vpack.c.b16 %v1624, %v1496
  %v1881 = vpack.c.b16 %v1625, %v1497
  %v1882 = vpack.c.b16 %v1626, %v1498
  %v1883 = vpack.c.b16 %v1627, %v1499
  %v1884 = vpack.c.b16 %v1628, %v1500
  %v1885 = vpack.c.b16 %v1629, %v1501
  %v1886 = vpack.c.b16 %v1630, %v1502
  %v1887 = vpack.c.b16 %v1631, %v1503
  %v1888 = vpack.c.b16 %v1632, %v1504
  %v1889 = vpack.c.b16 %v1633, %v1505
  %v1890 = vpack.c.b16 %v1634, %v1506
  %v1891 = vpack.c.b16 %v1635, %v1507
  %v1892 = vpack.c.b16 %v1636, %v1508
  %v1893 = vpack.c.b16 %v1637, %v1509
  %v1894 = vpack.c.b16 %v1638, %v1510
  %v1895 = vpack.c.b16 %v1639, %v1511
  %v1896 = vpack.c.b16 %v1640, %v1512
  %v1897 = vpack.c.b16 %v1641, %v1513
  %v1898 = vpack.c.b16 %v1642, %v1514
  %v1899 = vpack.c.b16 %v1643, %v1515
  %v1900 = vpack.c.b16 %v1644, %v1516
  %v1901 = vpack.c.b16 %v1645, %v1517
  %v1902 = vpack.c.b16 %v1646, %v1518
  %v1903 = vpack.c.b16 %v1647, %v1519
  %v1904 = vpack.c.b16 %v1648, %v1520
  %v1905 = vpack.c.b16 %v1649, %v1521
  %v1906 = vpack.c.b16 %v1650, %v1522
  %v1907 = vpack.c.b16 %v1651, %v1523
  %v1908 = vpack.c.b16 %v1652, %v1524
  %v1909 = vpack.c.b16 %v1653, %v1525
  %v1910 = vpack.c.b16 %v1654, %v1526
  %v1911 = vpack.c.b16 %v1655, %v1527
  %v1912 = vpack.c.b16 %v1656, %v1528
  %v1913 = vpack.c.b16 %v1657, %v1529
  %v1914 = vpack.c.b16 %v1658, %v1530
  %v1915 = vpack.c.b16 %v1659, %v1531
  %v1916 = vpack.c.b16 %v1660, %v1532
  %v1917 = vpack.c.b16 %v1661, %v1533
  %v1918 = vpack.c.b16 %v1662, %v1534
  %v1919 = vpack.c.b16 %v1663, %v1535
  %v1920 = vpack.c.b16 %v1664, %v1536
  %v1921 = vpack.c.b16 %v1665, %v1537
  %v1922 = vpack.c.b16 %v1666, %v1538
  %v1923 = vpack.c.b16 %v1667, %v1539
  %v1924 = vpack.c.b16 %v1668, %v1540
  %v1925 = vpack.c.b16 %v1669, %v1541
  %v1926 = vpack.c.b16 %v1670, %v1542
  %v1927 = vpack.c.b16 %v1671, %v1543
  %v1928 = vpack.c.b16 %v1672, %v1544
  %v1929 = vpack.c.b16 %v1673, %v1545
  %v1930 = vpack.c.b16 %v1674, %v1546
  %v1931 = vpack.c.b16 %v1675, %v1547
  %v1932 = vpack.c.b16 %v1676, %v1548
  %v1933 = vpack.c.b16 %v1677, %v1549
  %v1934 = vpack.c.b16 %v1678, %v1550
  %v1935 = vpack.c.b16 %v1679, %v1551
  %v1936 = vpack.c.b16 %v1680, %v1552
  %v1937 = vpack.c.b16 %v1681, %v1553
  %v1938 = vpack.c.b16 %v1682, %v1554
  %v1939 = vpack.c.b16 %v1683, %v1555
  %v1940 = vpack.c.b16 %v1684, %v1556
  %v1941 = vpack.c.b16 %v1685, %v1557
  %v1942 = vpack.c.b16 %v1686, %v1558
  %v1943 = vpack.c.b16 %v1687, %v1559
  %v1944 = vpack.c.b16 %v1688, %v1560
  %v1945 = vpack.c.b16 %v1689, %v1561
  %v1946 = vpack.c.b16 %v1690, %v1562
  %v1947 = vpack.c.b16 %v1691, %v1563
  %v1948 = vpack.c.b16 %v1692, %v1564
  %v1949 = vpack.c.b16 %v1693, %v1565
  %v1950 = vpack.c.b16 %v1694, %v1566
  %v1951 = vpack.c.b16 %v1695, %v1567
  %v1952 = vpack.c.b16 %v1696, %v1568
  %v1953 = vpack.c.b16 %v1697, %v1569
  %v1954 = vpack.c.b16 %v1698, %v1570
  %v1955 = vpack.c.b16 %v1699, %v1571
  %v1956 = vpack.c.b16 %v1700, %v1572
  %v1957 = vpack.c.b16 %v1701, %v1573
  %v1958 = vpack.c.b16 %v1702, %v1574
  %v1959 = vpack.c.b16 %v1703, %v1575
  %v1960 = vpack.c.b16 %v1704, %v1576
  %v1961 = vpack.c.b16 %v1705, %v1577
  %v1962 = vpack.c.b16 %v1706, %v1578
  %v1963 = vpack.c.b16 %v1707, %v1579
  %v1964 = vpack.c.b16 %v1708, %v1580
  %v1965 = vpack.c.b16 %v1709, %v1581
  %v1966 = vpack.c.b16 %v1710, %v1582
  %v2096 = vsel %vm197, %v686, 0
  %v2099 = vsel %vm201, %v1839, 0
  %v2102 = vsel %vm201, %v1840, 0
  %v2105 = vsel %vm201, %v1841, 0
  %v2108 = vsel %vm201, %v1842, 0
  %v2111 = vsel %vm201, %v1843, 0
  %v2114 = vsel %vm201, %v1844, 0
  %v2117 = vsel %vm201, %v1845, 0
  %v2120 = vsel %vm201, %v1846, 0
  %v2123 = vsel %vm201, %v1847, 0
  %v2126 = vsel %vm201, %v1848, 0
  %v2129 = vsel %vm201, %v1849, 0
  %v2132 = vsel %vm201, %v1850, 0
  %v2135 = vsel %vm201, %v1851, 0
  %v2138 = vsel %vm201, %v1852, 0
  %v2141 = vsel %vm201, %v1853, 0
  %v2144 = vsel %vm201, %v1854, 0
  %v2147 = vsel %vm201, %v1855, 0
  %v2150 = vsel %vm201, %v1856, 0
  %v2153 = vsel %vm201, %v1857, 0
  %v2156 = vsel %vm201, %v1858, 0
  %v2159 = vsel %vm201, %v1859, 0
  %v2162 = vsel %vm201, %v1860, 0
  %v2165 = vsel %vm201, %v1861, 0
  %v2168 = vsel %vm201, %v1862, 0
  %v2171 = vsel %vm201, %v1863, 0
  %v2174 = vsel %vm201, %v1864, 0
  %v2177 = vsel %vm201, %v1865, 0
  %v2180 = vsel %vm201, %v1866, 0
  %v2183 = vsel %vm201, %v1867, 0
  %v2186 = vsel %vm201, %v1868, 0
  %v2189 = vsel %vm201, %v1869, 0
  %v2192 = vsel %vm201, %v1870, 0
  %v2195 = vsel %vm201, %v1871, 0
  %v2198 = vsel %vm201, %v1872, 0
  %v2201 = vsel %vm201, %v1873, 0
  %v2204 = vsel %vm201, %v1874, 0
  %v2207 = vsel %vm201, %v1875, 0
  %v2210 = vsel %vm201, %v1876, 0
  %v2213 = vsel %vm201, %v1877, 0
  %v2216 = vsel %vm201, %v1878, 0
  %v2219 = vsel %vm201, %v1879, 0
  %v2222 = vsel %vm201, %v1880, 0
  %v2225 = vsel %vm201, %v1881, 0
  %v2228 = vsel %vm201, %v1882, 0
  %v2231 = vsel %vm201, %v1883, 0
  %v2234 = vsel %vm201, %v1884, 0
  %v2237 = vsel %vm201, %v1885, 0
  %v2240 = vsel %vm201, %v1886, 0
  %v2243 = vsel %vm201, %v1887, 0
  %v2246 = vsel %vm201, %v1888, 0
  %v2249 = vsel %vm201, %v1889, 0
  %v2252 = vsel %vm201, %v1890, 0
  %v2255 = vsel %vm201, %v1891, 0
  %v2258 = vsel %vm201, %v1892, 0
  %v2261 = vsel %vm201, %v1893, 0
  %v2264 = vsel %vm201, %v1894, 0
  %v2267 = vsel %vm201, %v1895, 0
  %v2270 = vsel %vm201, %v1896, 0
  %v2273 = vsel %vm201, %v1897, 0
  %v2276 = vsel %vm201, %v1898, 0
  %v2279 = vsel %vm201, %v1899, 0
  %v2282 = vsel %vm201, %v1900, 0
  %v2285 = vsel %vm201, %v1901, 0
  %v2288 = vsel %vm201, %v1902, 0
  %v2291 = vsel %vm201, %v1903, 0
  %v2294 = vsel %vm201, %v1904, 0
  %v2297 = vsel %vm201, %v1905, 0
  %v2300 = vsel %vm201, %v1906, 0
  %v2303 = vsel %vm201, %v1907, 0
  %v2306 = vsel %vm201, %v1908, 0
  %v2309 = vsel %vm201, %v1909, 0
  %v2312 = vsel %vm201, %v1910, 0
  %v2315 = vsel %vm201, %v1911, 0
  %v2318 = vsel %vm201, %v1912, 0
  %v2321 = vsel %vm201, %v1913, 0
  %v2324 = vsel %vm201, %v1914, 0
  %v2327 = vsel %vm201, %v1915, 0
  %v2330 = vsel %vm201, %v1916, 0
  %v2333 = vsel %vm201, %v1917, 0
  %v2336 = vsel %vm201, %v1918, 0
  %v2339 = vsel %vm201, %v1919, 0
  %v2342 = vsel %vm201, %v1920, 0
  %v2345 = vsel %vm201, %v1921, 0
  %v2348 = vsel %vm201, %v1922, 0
  %v2351 = vsel %vm201, %v1923, 0
  %v2354 = vsel %vm201, %v1924, 0
  %v2357 = vsel %vm201, %v1925, 0
  %v2360 = vsel %vm201, %v1926, 0
  %v2363 = vsel %vm201, %v1927, 0
  %v2366 = vsel %vm201, %v1928, 0
  %v2369 = vsel %vm201, %v1929, 0
  %v2372 = vsel %vm201, %v1930, 0
  %v2375 = vsel %vm201, %v1931, 0
  %v2378 = vsel %vm201, %v1932, 0
  %v2381 = vsel %vm201, %v1933, 0
  %v2384 = vsel %vm201, %v1934, 0
  %v2387 = vsel %vm201, %v1935, 0
  %v2390 = vsel %vm201, %v1936, 0
  %v2393 = vsel %vm201, %v1937, 0
  %v2396 = vsel %vm201, %v1938, 0
  %v2399 = vsel %vm201, %v1939, 0
  %v2402 = vsel %vm201, %v1940, 0
  %v2405 = vsel %vm201, %v1941, 0
  %v2408 = vsel %vm201, %v1942, 0
  %v2411 = vsel %vm201, %v1943, 0
  %v2414 = vsel %vm201, %v1944, 0
  %v2417 = vsel %vm201, %v1945, 0
  %v2420 = vsel %vm201, %v1946, 0
  %v2423 = vsel %vm201, %v1947, 0
  %v2426 = vsel %vm201, %v1948, 0
  %v2429 = vsel %vm201, %v1949, 0
  %v2432 = vsel %vm201, %v1950, 0
  %v2435 = vsel %vm201, %v1951, 0
  %v2438 = vsel %vm201, %v1952, 0
  %v2441 = vsel %vm201, %v1953, 0
  %v2444 = vsel %vm201, %v1954, 0
  %v2447 = vsel %vm201, %v1955, 0
  %v2450 = vsel %vm201, %v1956, 0
  %v2453 = vsel %vm201, %v1957, 0
  %v2456 = vsel %vm201, %v1958, 0
  %v2459 = vsel %vm201, %v1959, 0
  %v2462 = vsel %vm201, %v1960, 0
  %v2465 = vsel %vm201, %v1961, 0
  %v2468 = vsel %vm201, %v1962, 0
  %v2471 = vsel %vm201, %v1963, 0
  %v2474 = vsel %vm201, %v1964, 0
  %v2477 = vsel %vm201, %v1965, 0
  %v2480 = vsel %vm201, %v1966, 0
  %2482 = vmatprep.subr.bf16.mxu0 %v1712
  %2483 = vmatpush1.bf16.msra.mxu0 %v1711
  %2484 = vmatprep.subr.bf16.mxu0 %v2102
  %2485 = vmatpush1.bf16.msra.mxu0 %v2099
  %2486 = vmatprep.subr.bf16.mxu0 0
  %2487 = vmatpush1.bf16.msra.mxu0 0
  %2488 = vmatprep.subr.bf16.mxu0 0
  %2489 = vmatpush1.bf16.msra.mxu0 0
  %2490 = vmatprep.subr.bf16.mxu0 0
  %2491 = vmatpush1.bf16.msra.mxu0 0
  %2492 = vmatprep.subr.bf16.mxu0 0
  %2493 = vmatpush1.bf16.msra.mxu0 0
  %2494 = vmatprep.subr.bf16.mxu0 0
  %2495 = vmatpush1.bf16.msra.mxu0 0
  %2496 = vmatprep.subr.bf16.mxu0 0
  %2497 = vmatpush1.bf16.msra.mxu0 0
  %2498 = vmatprep.subr.bf16.mxu0 0
  %2499 = vmatpush1.bf16.msra.mxu0 0
  %2500 = vmatprep.subr.bf16.mxu0 0
  %2501 = vmatpush1.bf16.msra.mxu0 0
  %2502 = vmatprep.subr.bf16.mxu0 0
  %2503 = vmatpush1.bf16.msra.mxu0 0
  %2504 = vmatprep.subr.bf16.mxu0 0
  %2505 = vmatpush1.bf16.msra.mxu0 0
  %2506 = vmatprep.subr.bf16.mxu0 0
  %2507 = vmatpush1.bf16.msra.mxu0 0
  %2508 = vmatprep.subr.bf16.mxu0 0
  %2509 = vmatpush1.bf16.msra.mxu0 0
  %2510 = vmatprep.subr.bf16.mxu0 0
  %2511 = vmatpush1.bf16.msra.mxu0 0
  %2512 = vmatprep.subr.bf16.mxu0 0
  %2513 = vmatpush1.bf16.msra.mxu0 0
  %2514 = vmatprep.mubr.bf16.mxu0 0
  %2515 = vmatmul.mubr.bf16.gmra.mrb[0].mxu0 %v2096
  %v2516 = vpop.f32.mrb[0].mxu0
  %v2517 = vadd.f32 0.0, %v2516
  %v2518 = vpop.f32.mrb[0].mxu0
  %v2519 = vadd.f32 0.0, %v2518
  %v2520 = vpop.f32.mrb[0].mxu0
  %v2521 = vpop.f32.mrb[0].mxu0
  %2522 = vdwg.mxu0
  %2523 = vmatprep.subr.bf16.mxu0 %v1714
  %2524 = vmatpush1.bf16.msra.mxu0 %v1713
  %2525 = vmatprep.subr.bf16.mxu0 %v2108
  %2526 = vmatpush1.bf16.msra.mxu0 %v2105
  %2527 = vmatprep.subr.bf16.mxu0 0
  %2528 = vmatpush1.bf16.msra.mxu0 0
  %2529 = vmatprep.subr.bf16.mxu0 0
  %2530 = vmatpush1.bf16.msra.mxu0 0
  %2531 = vmatprep.subr.bf16.mxu0 0
  %2532 = vmatpush1.bf16.msra.mxu0 0
  %2533 = vmatprep.subr.bf16.mxu0 0
  %2534 = vmatpush1.bf16.msra.mxu0 0
  %2535 = vmatprep.subr.bf16.mxu0 0
  %2536 = vmatpush1.bf16.msra.mxu0 0
  %2537 = vmatprep.subr.bf16.mxu0 0
  %2538 = vmatpush1.bf16.msra.mxu0 0
  %2539 = vmatprep.subr.bf16.mxu0 0
  %2540 = vmatpush1.bf16.msra.mxu0 0
  %2541 = vmatprep.subr.bf16.mxu0 0
  %2542 = vmatpush1.bf16.msra.mxu0 0
  %2543 = vmatprep.subr.bf16.mxu0 0
  %2544 = vmatpush1.bf16.msra.mxu0 0
  %2545 = vmatprep.subr.bf16.mxu0 0
  %2546 = vmatpush1.bf16.msra.mxu0 0
  %2547 = vmatprep.subr.bf16.mxu0 0
  %2548 = vmatpush1.bf16.msra.mxu0 0
  %2549 = vmatprep.subr.bf16.mxu0 0
  %2550 = vmatpush1.bf16.msra.mxu0 0
  %2551 = vmatprep.subr.bf16.mxu0 0
  %2552 = vmatpush1.bf16.msra.mxu0 0
  %2553 = vmatprep.subr.bf16.mxu0 0
  %2554 = vmatpush1.bf16.msra.mxu0 0
  %2555 = vmatprep.mubr.bf16.mxu0 0
  %2556 = vmatmul.mubr.bf16.gmra.mrb[0].mxu0 %v2096
  %v2557 = vpop.f32.mrb[0].mxu0
  %v2558 = vadd.f32 0.0, %v2557
  %v2559 = vpop.f32.mrb[0].mxu0
  %v2560 = vadd.f32 0.0, %v2559
  %v2561 = vpop.f32.mrb[0].mxu0
  %v2562 = vpop.f32.mrb[0].mxu0
  %2563 = vdwg.mxu0
  %2564 = vmatprep.subr.bf16.mxu0 %v1716
  %2565 = vmatpush1.bf16.msra.mxu0 %v1715
  %2566 = vmatprep.subr.bf16.mxu0 %v2114
  %2567 = vmatpush1.bf16.msra.mxu0 %v2111
  %2568 = vmatprep.subr.bf16.mxu0 0
  %2569 = vmatpush1.bf16.msra.mxu0 0
  %2570 = vmatprep.subr.bf16.mxu0 0
  %2571 = vmatpush1.bf16.msra.mxu0 0
  %2572 = vmatprep.subr.bf16.mxu0 0
  %2573 = vmatpush1.bf16.msra.mxu0 0
  %2574 = vmatprep.subr.bf16.mxu0 0
  %2575 = vmatpush1.bf16.msra.mxu0 0
  %2576 = vmatprep.subr.bf16.mxu0 0
  %2577 = vmatpush1.bf16.msra.mxu0 0
  %2578 = vmatprep.subr.bf16.mxu0 0
  %2579 = vmatpush1.bf16.msra.mxu0 0
  %2580 = vmatprep.subr.bf16.mxu0 0
  %2581 = vmatpush1.bf16.msra.mxu0 0
  %2582 = vmatprep.subr.bf16.mxu0 0
  %2583 = vmatpush1.bf16.msra.mxu0 0
  %2584 = vmatprep.subr.bf16.mxu0 0
  %2585 = vmatpush1.bf16.msra.mxu0 0
  %2586 = vmatprep.subr.bf16.mxu0 0
  %2587 = vmatpush1.bf16.msra.mxu0 0
  %2588 = vmatprep.subr.bf16.mxu0 0
  %2589 = vmatpush1.bf16.msra.mxu0 0
  %2590 = vmatprep.subr.bf16.mxu0 0
  %2591 = vmatpush1.bf16.msra.mxu0 0
  %2592 = vmatprep.subr.bf16.mxu0 0
  %2593 = vmatpush1.bf16.msra.mxu0 0
  %2594 = vmatprep.subr.bf16.mxu0 0
  %2595 = vmatpush1.bf16.msra.mxu0 0
  %2596 = vmatprep.mubr.bf16.mxu0 0
  %2597 = vmatmul.mubr.bf16.gmra.mrb[0].mxu0 %v2096
  %v2598 = vpop.f32.mrb[0].mxu0
  %v2599 = vadd.f32 0.0, %v2598
  %v2600 = vpop.f32.mrb[0].mxu0
  %v2601 = vadd.f32 0.0, %v2600
  %v2602 = vpop.f32.mrb[0].mxu0
  %v2603 = vpop.f32.mrb[0].mxu0
  %2604 = vdwg.mxu0
  %2605 = vmatprep.subr.bf16.mxu0 %v1718
  %2606 = vmatpush1.bf16.msra.mxu0 %v1717
  %2607 = vmatprep.subr.bf16.mxu0 %v2120
  %2608 = vmatpush1.bf16.msra.mxu0 %v2117
  %2609 = vmatprep.subr.bf16.mxu0 0
  %2610 = vmatpush1.bf16.msra.mxu0 0
  %2611 = vmatprep.subr.bf16.mxu0 0
  %2612 = vmatpush1.bf16.msra.mxu0 0
  %2613 = vmatprep.subr.bf16.mxu0 0
  %2614 = vmatpush1.bf16.msra.mxu0 0
  %2615 = vmatprep.subr.bf16.mxu0 0
  %2616 = vmatpush1.bf16.msra.mxu0 0
  %2617 = vmatprep.subr.bf16.mxu0 0
  %2618 = vmatpush1.bf16.msra.mxu0 0
  %2619 = vmatprep.subr.bf16.mxu0 0
  %2620 = vmatpush1.bf16.msra.mxu0 0
  %2621 = vmatprep.subr.bf16.mxu0 0
  %2622 = vmatpush1.bf16.msra.mxu0 0
  %2623 = vmatprep.subr.bf16.mxu0 0
  %2624 = vmatpush1.bf16.msra.mxu0 0
  %2625 = vmatprep.subr.bf16.mxu0 0
  %2626 = vmatpush1.bf16.msra.mxu0 0
  %2627 = vmatprep.subr.bf16.mxu0 0
  %2628 = vmatpush1.bf16.msra.mxu0 0
  %2629 = vmatprep.subr.bf16.mxu0 0
  %2630 = vmatpush1.bf16.msra.mxu0 0
  %2631 = vmatprep.subr.bf16.mxu0 0
  %2632 = vmatpush1.bf16.msra.mxu0 0
  %2633 = vmatprep.subr.bf16.mxu0 0
  %2634 = vmatpush1.bf16.msra.mxu0 0
  %2635 = vmatprep.subr.bf16.mxu0 0
  %2636 = vmatpush1.bf16.msra.mxu0 0
  %2637 = vmatprep.mubr.bf16.mxu0 0
  %2638 = vmatmul.mubr.bf16.gmra.mrb[0].mxu0 %v2096
  %v2639 = vpop.f32.mrb[0].mxu0
  %v2640 = vadd.f32 0.0, %v2639
  %v2641 = vpop.f32.mrb[0].mxu0
  %v2642 = vadd.f32 0.0, %v2641
  %v2643 = vpop.f32.mrb[0].mxu0
  %v2644 = vpop.f32.mrb[0].mxu0
  %2645 = vdwg.mxu0
  %2646 = vmatprep.subr.bf16.mxu0 %v1720
  %2647 = vmatpush1.bf16.msra.mxu0 %v1719
  %2648 = vmatprep.subr.bf16.mxu0 %v2126
  %2649 = vmatpush1.bf16.msra.mxu0 %v2123
  %2650 = vmatprep.subr.bf16.mxu0 0
  %2651 = vmatpush1.bf16.msra.mxu0 0
  %2652 = vmatprep.subr.bf16.mxu0 0
  %2653 = vmatpush1.bf16.msra.mxu0 0
  %2654 = vmatprep.subr.bf16.mxu0 0
  %2655 = vmatpush1.bf16.msra.mxu0 0
  %2656 = vmatprep.subr.bf16.mxu0 0
  %2657 = vmatpush1.bf16.msra.mxu0 0
  %2658 = vmatprep.subr.bf16.mxu0 0
  %2659 = vmatpush1.bf16.msra.mxu0 0
  %2660 = vmatprep.subr.bf16.mxu0 0
  %2661 = vmatpush1.bf16.msra.mxu0 0
  %2662 = vmatprep.subr.bf16.mxu0 0
  %2663 = vmatpush1.bf16.msra.mxu0 0
  %2664 = vmatprep.subr.bf16.mxu0 0
  %2665 = vmatpush1.bf16.msra.mxu0 0
  %2666 = vmatprep.subr.bf16.mxu0 0
  %2667 = vmatpush1.bf16.msra.mxu0 0
  %2668 = vmatprep.subr.bf16.mxu0 0
  %2669 = vmatpush1.bf16.msra.mxu0 0
  %2670 = vmatprep.subr.bf16.mxu0 0
  %2671 = vmatpush1.bf16.msra.mxu0 0
  %2672 = vmatprep.subr.bf16.mxu0 0
  %2673 = vmatpush1.bf16.msra.mxu0 0
  %2674 = vmatprep.subr.bf16.mxu0 0
  %2675 = vmatpush1.bf16.msra.mxu0 0
  %2676 = vmatprep.subr.bf16.mxu0 0
  %2677 = vmatpush1.bf16.msra.mxu0 0
  %2678 = vmatprep.mubr.bf16.mxu0 0
  %2679 = vmatmul.mubr.bf16.gmra.mrb[0].mxu0 %v2096
  %v2680 = vpop.f32.mrb[0].mxu0
  %v2681 = vadd.f32 0.0, %v2680
  %v2682 = vpop.f32.mrb[0].mxu0
  %v2683 = vadd.f32 0.0, %v2682
  %v2684 = vpop.f32.mrb[0].mxu0
  %v2685 = vpop.f32.mrb[0].mxu0
  %2686 = vdwg.mxu0
  %2687 = vmatprep.subr.bf16.mxu0 %v1722
  %2688 = vmatpush1.bf16.msra.mxu0 %v1721
  %2689 = vmatprep.subr.bf16.mxu0 %v2132
  %2690 = vmatpush1.bf16.msra.mxu0 %v2129
  %2691 = vmatprep.subr.bf16.mxu0 0
  %2692 = vmatpush1.bf16.msra.mxu0 0
  %2693 = vmatprep.subr.bf16.mxu0 0
  %2694 = vmatpush1.bf16.msra.mxu0 0
  %2695 = vmatprep.subr.bf16.mxu0 0
  %2696 = vmatpush1.bf16.msra.mxu0 0
  %2697 = vmatprep.subr.bf16.mxu0 0
  %2698 = vmatpush1.bf16.msra.mxu0 0
  %2699 = vmatprep.subr.bf16.mxu0 0
  %2700 = vmatpush1.bf16.msra.mxu0 0
  %2701 = vmatprep.subr.bf16.mxu0 0
  %2702 = vmatpush1.bf16.msra.mxu0 0
  %2703 = vmatprep.subr.bf16.mxu0 0
  %2704 = vmatpush1.bf16.msra.mxu0 0
  %2705 = vmatprep.subr.bf16.mxu0 0
  %2706 = vmatpush1.bf16.msra.mxu0 0
  %2707 = vmatprep.subr.bf16.mxu0 0
  %2708 = vmatpush1.bf16.msra.mxu0 0
  %2709 = vmatprep.subr.bf16.mxu0 0
  %2710 = vmatpush1.bf16.msra.mxu0 0
  %2711 = vmatprep.subr.bf16.mxu0 0
  %2712 = vmatpush1.bf16.msra.mxu0 0
  %2713 = vmatprep.subr.bf16.mxu0 0
  %2714 = vmatpush1.bf16.msra.mxu0 0
  %2715 = vmatprep.subr.bf16.mxu0 0
  %2716 = vmatpush1.bf16.msra.mxu0 0
  %2717 = vmatprep.subr.bf16.mxu0 0
  %2718 = vmatpush1.bf16.msra.mxu0 0
  %2719 = vmatprep.mubr.bf16.mxu0 0
  %2720 = vmatmul.mubr.bf16.gmra.mrb[0].mxu0 %v2096
  %v2721 = vpop.f32.mrb[0].mxu0
  %v2722 = vadd.f32 0.0, %v2721
  %v2723 = vpop.f32.mrb[0].mxu0
  %v2724 = vadd.f32 0.0, %v2723
  %v2725 = vpop.f32.mrb[0].mxu0
  %v2726 = vpop.f32.mrb[0].mxu0
  %2727 = vdwg.mxu0
  %2728 = vmatprep.subr.bf16.mxu0 %v1724
  %2729 = vmatpush1.bf16.msra.mxu0 %v1723
  %2730 = vmatprep.subr.bf16.mxu0 %v2138
  %2731 = vmatpush1.bf16.msra.mxu0 %v2135
  %2732 = vmatprep.subr.bf16.mxu0 0
  %2733 = vmatpush1.bf16.msra.mxu0 0
  %2734 = vmatprep.subr.bf16.mxu0 0
  %2735 = vmatpush1.bf16.msra.mxu0 0
  %2736 = vmatprep.subr.bf16.mxu0 0
  %2737 = vmatpush1.bf16.msra.mxu0 0
  %2738 = vmatprep.subr.bf16.mxu0 0
  %2739 = vmatpush1.bf16.msra.mxu0 0
  %2740 = vmatprep.subr.bf16.mxu0 0
  %2741 = vmatpush1.bf16.msra.mxu0 0
  %2742 = vmatprep.subr.bf16.mxu0 0
  %2743 = vmatpush1.bf16.msra.mxu0 0
  %2744 = vmatprep.subr.bf16.mxu0 0
  %2745 = vmatpush1.bf16.msra.mxu0 0
  %2746 = vmatprep.subr.bf16.mxu0 0
  %2747 = vmatpush1.bf16.msra.mxu0 0
  %2748 = vmatprep.subr.bf16.mxu0 0
  %2749 = vmatpush1.bf16.msra.mxu0 0
  %2750 = vmatprep.subr.bf16.mxu0 0
  %2751 = vmatpush1.bf16.msra.mxu0 0
  %2752 = vmatprep.subr.bf16.mxu0 0
  %2753 = vmatpush1.bf16.msra.mxu0 0
  %2754 = vmatprep.subr.bf16.mxu0 0
  %2755 = vmatpush1.bf16.msra.mxu0 0
  %2756 = vmatprep.subr.bf16.mxu0 0
  %2757 = vmatpush1.bf16.msra.mxu0 0
  %2758 = vmatprep.subr.bf16.mxu0 0
  %2759 = vmatpush1.bf16.msra.mxu0 0
  %2760 = vmatprep.mubr.bf16.mxu0 0
  %2761 = vmatmul.mubr.bf16.gmra.mrb[0].mxu0 %v2096
  %v2762 = vpop.f32.mrb[0].mxu0
  %v2763 = vadd.f32 0.0, %v2762
  %v2764 = vpop.f32.mrb[0].mxu0
  %v2765 = vadd.f32 0.0, %v2764
  %v2766 = vpop.f32.mrb[0].mxu0
  %v2767 = vpop.f32.mrb[0].mxu0
  %2768 = vdwg.mxu0
  %2769 = vmatprep.subr.bf16.mxu0 %v1726
  %2770 = vmatpush1.bf16.msra.mxu0 %v1725
  %2771 = vmatprep.subr.bf16.mxu0 %v2144
  %2772 = vmatpush1.bf16.msra.mxu0 %v2141
  %2773 = vmatprep.subr.bf16.mxu0 0
  %2774 = vmatpush1.bf16.msra.mxu0 0
  %2775 = vmatprep.subr.bf16.mxu0 0
  %2776 = vmatpush1.bf16.msra.mxu0 0
  %2777 = vmatprep.subr.bf16.mxu0 0
  %2778 = vmatpush1.bf16.msra.mxu0 0
  %2779 = vmatprep.subr.bf16.mxu0 0
  %2780 = vmatpush1.bf16.msra.mxu0 0
  %2781 = vmatprep.subr.bf16.mxu0 0
  %2782 = vmatpush1.bf16.msra.mxu0 0
  %2783 = vmatprep.subr.bf16.mxu0 0
  %2784 = vmatpush1.bf16.msra.mxu0 0
  %2785 = vmatprep.subr.bf16.mxu0 0
  %2786 = vmatpush1.bf16.msra.mxu0 0
  %2787 = vmatprep.subr.bf16.mxu0 0
  %2788 = vmatpush1.bf16.msra.mxu0 0
  %2789 = vmatprep.subr.bf16.mxu0 0
  %2790 = vmatpush1.bf16.msra.mxu0 0
  %2791 = vmatprep.subr.bf16.mxu0 0
  %2792 = vmatpush1.bf16.msra.mxu0 0
  %2793 = vmatprep.subr.bf16.mxu0 0
  %2794 = vmatpush1.bf16.msra.mxu0 0
  %2795 = vmatprep.subr.bf16.mxu0 0
  %2796 = vmatpush1.bf16.msra.mxu0 0
  %2797 = vmatprep.subr.bf16.mxu0 0
  %2798 = vmatpush1.bf16.msra.mxu0 0
  %2799 = vmatprep.subr.bf16.mxu0 0
  %2800 = vmatpush1.bf16.msra.mxu0 0
  %2801 = vmatprep.mubr.bf16.mxu0 0
  %2802 = vmatmul.mubr.bf16.gmra.mrb[0].mxu0 %v2096
  %v2803 = vpop.f32.mrb[0].mxu0
  %v2804 = vadd.f32 0.0, %v2803
  %v2805 = vpop.f32.mrb[0].mxu0
  %v2806 = vadd.f32 0.0, %v2805
  %v2807 = vpop.f32.mrb[0].mxu0
  %v2808 = vpop.f32.mrb[0].mxu0
  %2809 = vdwg.mxu0
  %2810 = vmatprep.subr.bf16.mxu0 %v1728
  %2811 = vmatpush1.bf16.msra.mxu0 %v1727
  %2812 = vmatprep.subr.bf16.mxu0 %v2150
  %2813 = vmatpush1.bf16.msra.mxu0 %v2147
  %2814 = vmatprep.subr.bf16.mxu0 0
  %2815 = vmatpush1.bf16.msra.mxu0 0
  %2816 = vmatprep.subr.bf16.mxu0 0
  %2817 = vmatpush1.bf16.msra.mxu0 0
  %2818 = vmatprep.subr.bf16.mxu0 0
  %2819 = vmatpush1.bf16.msra.mxu0 0
  %2820 = vmatprep.subr.bf16.mxu0 0
  %2821 = vmatpush1.bf16.msra.mxu0 0
  %2822 = vmatprep.subr.bf16.mxu0 0
  %2823 = vmatpush1.bf16.msra.mxu0 0
  %2824 = vmatprep.subr.bf16.mxu0 0
  %2825 = vmatpush1.bf16.msra.mxu0 0
  %2826 = vmatprep.subr.bf16.mxu0 0
  %2827 = vmatpush1.bf16.msra.mxu0 0
  %2828 = vmatprep.subr.bf16.mxu0 0
  %2829 = vmatpush1.bf16.msra.mxu0 0
  %2830 = vmatprep.subr.bf16.mxu0 0
  %2831 = vmatpush1.bf16.msra.mxu0 0
  %2832 = vmatprep.subr.bf16.mxu0 0
  %2833 = vmatpush1.bf16.msra.mxu0 0
  %2834 = vmatprep.subr.bf16.mxu0 0
  %2835 = vmatpush1.bf16.msra.mxu0 0
  %2836 = vmatprep.subr.bf16.mxu0 0
  %2837 = vmatpush1.bf16.msra.mxu0 0
  %2838 = vmatprep.subr.bf16.mxu0 0
  %2839 = vmatpush1.bf16.msra.mxu0 0
  %2840 = vmatprep.subr.bf16.mxu0 0
  %2841 = vmatpush1.bf16.msra.mxu0 0
  %2842 = vmatprep.mubr.bf16.mxu0 0
  %2843 = vmatmul.mubr.bf16.gmra.mrb[0].mxu0 %v2096
  %v2844 = vpop.f32.mrb[0].mxu0
  %v2845 = vadd.f32 0.0, %v2844
  %v2846 = vpop.f32.mrb[0].mxu0
  %v2847 = vadd.f32 0.0, %v2846
  %v2848 = vpop.f32.mrb[0].mxu0
  %v2849 = vpop.f32.mrb[0].mxu0
  %2850 = vdwg.mxu0
  %2851 = vmatprep.subr.bf16.mxu0 %v1730
  %2852 = vmatpush1.bf16.msra.mxu0 %v1729
  %2853 = vmatprep.subr.bf16.mxu0 %v2156
  %2854 = vmatpush1.bf16.msra.mxu0 %v2153
  %2855 = vmatprep.subr.bf16.mxu0 0
  %2856 = vmatpush1.bf16.msra.mxu0 0
  %2857 = vmatprep.subr.bf16.mxu0 0
  %2858 = vmatpush1.bf16.msra.mxu0 0
  %2859 = vmatprep.subr.bf16.mxu0 0
  %2860 = vmatpush1.bf16.msra.mxu0 0
  %2861 = vmatprep.subr.bf16.mxu0 0
  %2862 = vmatpush1.bf16.msra.mxu0 0
  %2863 = vmatprep.subr.bf16.mxu0 0
  %2864 = vmatpush1.bf16.msra.mxu0 0
  %2865 = vmatprep.subr.bf16.mxu0 0
  %2866 = vmatpush1.bf16.msra.mxu0 0
  %2867 = vmatprep.subr.bf16.mxu0 0
  %2868 = vmatpush1.bf16.msra.mxu0 0
  %2869 = vmatprep.subr.bf16.mxu0 0
  %2870 = vmatpush1.bf16.msra.mxu0 0
  %2871 = vmatprep.subr.bf16.mxu0 0
  %2872 = vmatpush1.bf16.msra.mxu0 0
  %2873 = vmatprep.subr.bf16.mxu0 0
  %2874 = vmatpush1.bf16.msra.mxu0 0
  %2875 = vmatprep.subr.bf16.mxu0 0
  %2876 = vmatpush1.bf16.msra.mxu0 0
  %2877 = vmatprep.subr.bf16.mxu0 0
  %2878 = vmatpush1.bf16.msra.mxu0 0
  %2879 = vmatprep.subr.bf16.mxu0 0
  %2880 = vmatpush1.bf16.msra.mxu0 0
  %2881 = vmatprep.subr.bf16.mxu0 0
  %2882 = vmatpush1.bf16.msra.mxu0 0
  %2883 = vmatprep.mubr.bf16.mxu0 0
  %2884 = vmatmul.mubr.bf16.gmra.mrb[0].mxu0 %v2096
  %v2885 = vpop.f32.mrb[0].mxu0
  %v2886 = vadd.f32 0.0, %v2885
  %v2887 = vpop.f32.mrb[0].mxu0
  %v2888 = vadd.f32 0.0, %v2887
  %v2889 = vpop.f32.mrb[0].mxu0
  %v2890 = vpop.f32.mrb[0].mxu0
  %2891 = vdwg.mxu0
  %2892 = vmatprep.subr.bf16.mxu0 %v1732
  %2893 = vmatpush1.bf16.msra.mxu0 %v1731
  %2894 = vmatprep.subr.bf16.mxu0 %v2162
  %2895 = vmatpush1.bf16.msra.mxu0 %v2159
  %2896 = vmatprep.subr.bf16.mxu0 0
  %2897 = vmatpush1.bf16.msra.mxu0 0
  %2898 = vmatprep.subr.bf16.mxu0 0
  %2899 = vmatpush1.bf16.msra.mxu0 0
  %2900 = vmatprep.subr.bf16.mxu0 0
  %2901 = vmatpush1.bf16.msra.mxu0 0
  %2902 = vmatprep.subr.bf16.mxu0 0
  %2903 = vmatpush1.bf16.msra.mxu0 0
  %2904 = vmatprep.subr.bf16.mxu0 0
  %2905 = vmatpush1.bf16.msra.mxu0 0
  %2906 = vmatprep.subr.bf16.mxu0 0
  %2907 = vmatpush1.bf16.msra.mxu0 0
  %2908 = vmatprep.subr.bf16.mxu0 0
  %2909 = vmatpush1.bf16.msra.mxu0 0
  %2910 = vmatprep.subr.bf16.mxu0 0
  %2911 = vmatpush1.bf16.msra.mxu0 0
  %2912 = vmatprep.subr.bf16.mxu0 0
  %2913 = vmatpush1.bf16.msra.mxu0 0
  %2914 = vmatprep.subr.bf16.mxu0 0
  %2915 = vmatpush1.bf16.msra.mxu0 0
  %2916 = vmatprep.subr.bf16.mxu0 0
  %2917 = vmatpush1.bf16.msra.mxu0 0
  %2918 = vmatprep.subr.bf16.mxu0 0
  %2919 = vmatpush1.bf16.msra.mxu0 0
  %2920 = vmatprep.subr.bf16.mxu0 0
  %2921 = vmatpush1.bf16.msra.mxu0 0
  %2922 = vmatprep.subr.bf16.mxu0 0
  %2923 = vmatpush1.bf16.msra.mxu0 0
  %2924 = vmatprep.mubr.bf16.mxu0 0
  %2925 = vmatmul.mubr.bf16.gmra.mrb[0].mxu0 %v2096
  %v2926 = vpop.f32.mrb[0].mxu0
  %v2927 = vadd.f32 0.0, %v2926
  %v2928 = vpop.f32.mrb[0].mxu0
  %v2929 = vadd.f32 0.0, %v2928
  %v2930 = vpop.f32.mrb[0].mxu0
  %v2931 = vpop.f32.mrb[0].mxu0
  %2932 = vdwg.mxu0
  %2933 = vmatprep.subr.bf16.mxu0 %v1734
  %2934 = vmatpush1.bf16.msra.mxu0 %v1733
  %2935 = vmatprep.subr.bf16.mxu0 %v2168
  %2936 = vmatpush1.bf16.msra.mxu0 %v2165
  %2937 = vmatprep.subr.bf16.mxu0 0
  %2938 = vmatpush1.bf16.msra.mxu0 0
  %2939 = vmatprep.subr.bf16.mxu0 0
  %2940 = vmatpush1.bf16.msra.mxu0 0
  %2941 = vmatprep.subr.bf16.mxu0 0
  %2942 = vmatpush1.bf16.msra.mxu0 0
  %2943 = vmatprep.subr.bf16.mxu0 0
  %2944 = vmatpush1.bf16.msra.mxu0 0
  %2945 = vmatprep.subr.bf16.mxu0 0
  %2946 = vmatpush1.bf16.msra.mxu0 0
  %2947 = vmatprep.subr.bf16.mxu0 0
  %2948 = vmatpush1.bf16.msra.mxu0 0
  %2949 = vmatprep.subr.bf16.mxu0 0
  %2950 = vmatpush1.bf16.msra.mxu0 0
  %2951 = vmatprep.subr.bf16.mxu0 0
  %2952 = vmatpush1.bf16.msra.mxu0 0
  %2953 = vmatprep.subr.bf16.mxu0 0
  %2954 = vmatpush1.bf16.msra.mxu0 0
  %2955 = vmatprep.subr.bf16.mxu0 0
  %2956 = vmatpush1.bf16.msra.mxu0 0
  %2957 = vmatprep.subr.bf16.mxu0 0
  %2958 = vmatpush1.bf16.msra.mxu0 0
  %2959 = vmatprep.subr.bf16.mxu0 0
  %2960 = vmatpush1.bf16.msra.mxu0 0
  %2961 = vmatprep.subr.bf16.mxu0 0
  %2962 = vmatpush1.bf16.msra.mxu0 0
  %2963 = vmatprep.subr.bf16.mxu0 0
  %2964 = vmatpush1.bf16.msra.mxu0 0
  %2965 = vmatprep.mubr.bf16.mxu0 0
  %2966 = vmatmul.mubr.bf16.gmra.mrb[0].mxu0 %v2096
  %v2967 = vpop.f32.mrb[0].mxu0
  %v2968 = vadd.f32 0.0, %v2967
  %v2969 = vpop.f32.mrb[0].mxu0
  %v2970 = vadd.f32 0.0, %v2969
  %v2971 = vpop.f32.mrb[0].mxu0
  %v2972 = vpop.f32.mrb[0].mxu0
  %2973 = vdwg.mxu0
  %2974 = vmatprep.subr.bf16.mxu0 %v1736
  %2975 = vmatpush1.bf16.msra.mxu0 %v1735
  %2976 = vmatprep.subr.bf16.mxu0 %v2174
  %2977 = vmatpush1.bf16.msra.mxu0 %v2171
  %2978 = vmatprep.subr.bf16.mxu0 0
  %2979 = vmatpush1.bf16.msra.mxu0 0
  %2980 = vmatprep.subr.bf16.mxu0 0
  %2981 = vmatpush1.bf16.msra.mxu0 0
  %2982 = vmatprep.subr.bf16.mxu0 0
  %2983 = vmatpush1.bf16.msra.mxu0 0
  %2984 = vmatprep.subr.bf16.mxu0 0
  %2985 = vmatpush1.bf16.msra.mxu0 0
  %2986 = vmatprep.subr.bf16.mxu0 0
  %2987 = vmatpush1.bf16.msra.mxu0 0
  %2988 = vmatprep.subr.bf16.mxu0 0
  %2989 = vmatpush1.bf16.msra.mxu0 0
  %2990 = vmatprep.subr.bf16.mxu0 0
  %2991 = vmatpush1.bf16.msra.mxu0 0
  %2992 = vmatprep.subr.bf16.mxu0 0
  %2993 = vmatpush1.bf16.msra.mxu0 0
  %2994 = vmatprep.subr.bf16.mxu0 0
  %2995 = vmatpush1.bf16.msra.mxu0 0
  %2996 = vmatprep.subr.bf16.mxu0 0
  %2997 = vmatpush1.bf16.msra.mxu0 0
  %2998 = vmatprep.subr.bf16.mxu0 0
  %2999 = vmatpush1.bf16.msra.mxu0 0
  %3000 = vmatprep.subr.bf16.mxu0 0
  %3001 = vmatpush1.bf16.msra.mxu0 0
  %3002 = vmatprep.subr.bf16.mxu0 0
  %3003 = vmatpush1.bf16.msra.mxu0 0
  %3004 = vmatprep.subr.bf16.mxu0 0
  %3005 = vmatpush1.bf16.msra.mxu0 0
  %3006 = vmatprep.mubr.bf16.mxu0 0
  %3007 = vmatmul.mubr.bf16.gmra.mrb[0].mxu0 %v2096
  %v3008 = vpop.f32.mrb[0].mxu0
  %v3009 = vadd.f32 0.0, %v3008
  %v3010 = vpop.f32.mrb[0].mxu0
  %v3011 = vadd.f32 0.0, %v3010
  %v3012 = vpop.f32.mrb[0].mxu0
  %v3013 = vpop.f32.mrb[0].mxu0
  %3014 = vdwg.mxu0
  %3015 = vmatprep.subr.bf16.mxu0 %v1738
  %3016 = vmatpush1.bf16.msra.mxu0 %v1737
  %3017 = vmatprep.subr.bf16.mxu0 %v2180
  %3018 = vmatpush1.bf16.msra.mxu0 %v2177
  %3019 = vmatprep.subr.bf16.mxu0 0
  %3020 = vmatpush1.bf16.msra.mxu0 0
  %3021 = vmatprep.subr.bf16.mxu0 0
  %3022 = vmatpush1.bf16.msra.mxu0 0
  %3023 = vmatprep.subr.bf16.mxu0 0
  %3024 = vmatpush1.bf16.msra.mxu0 0
  %3025 = vmatprep.subr.bf16.mxu0 0
  %3026 = vmatpush1.bf16.msra.mxu0 0
  %3027 = vmatprep.subr.bf16.mxu0 0
  %3028 = vmatpush1.bf16.msra.mxu0 0
  %3029 = vmatprep.subr.bf16.mxu0 0
  %3030 = vmatpush1.bf16.msra.mxu0 0
  %3031 = vmatprep.subr.bf16.mxu0 0
  %3032 = vmatpush1.bf16.msra.mxu0 0
  %3033 = vmatprep.subr.bf16.mxu0 0
  %3034 = vmatpush1.bf16.msra.mxu0 0
  %3035 = vmatprep.subr.bf16.mxu0 0
  %3036 = vmatpush1.bf16.msra.mxu0 0
  %3037 = vmatprep.subr.bf16.mxu0 0
  %3038 = vmatpush1.bf16.msra.mxu0 0
  %3039 = vmatprep.subr.bf16.mxu0 0
  %3040 = vmatpush1.bf16.msra.mxu0 0
  %3041 = vmatprep.subr.bf16.mxu0 0
  %3042 = vmatpush1.bf16.msra.mxu0 0
  %3043 = vmatprep.subr.bf16.mxu0 0
  %3044 = vmatpush1.bf16.msra.mxu0 0
  %3045 = vmatprep.subr.bf16.mxu0 0
  %3046 = vmatpush1.bf16.msra.mxu0 0
  %3047 = vmatprep.mubr.bf16.mxu0 0
  %3048 = vmatmul.mubr.bf16.gmra.mrb[0].mxu0 %v2096
  %v3049 = vpop.f32.mrb[0].mxu0
  %v3050 = vadd.f32 0.0, %v3049
  %v3051 = vpop.f32.mrb[0].mxu0
  %v3052 = vadd.f32 0.0, %v3051
  %v3053 = vpop.f32.mrb[0].mxu0
  %v3054 = vpop.f32.mrb[0].mxu0
  %3055 = vdwg.mxu0
  %3056 = vmatprep.subr.bf16.mxu0 %v1740
  %3057 = vmatpush1.bf16.msra.mxu0 %v1739
  %3058 = vmatprep.subr.bf16.mxu0 %v2186
  %3059 = vmatpush1.bf16.msra.mxu0 %v2183
  %3060 = vmatprep.subr.bf16.mxu0 0
  %3061 = vmatpush1.bf16.msra.mxu0 0
  %3062 = vmatprep.subr.bf16.mxu0 0
  %3063 = vmatpush1.bf16.msra.mxu0 0
  %3064 = vmatprep.subr.bf16.mxu0 0
  %3065 = vmatpush1.bf16.msra.mxu0 0
  %3066 = vmatprep.subr.bf16.mxu0 0
  %3067 = vmatpush1.bf16.msra.mxu0 0
  %3068 = vmatprep.subr.bf16.mxu0 0
  %3069 = vmatpush1.bf16.msra.mxu0 0
  %3070 = vmatprep.subr.bf16.mxu0 0
  %3071 = vmatpush1.bf16.msra.mxu0 0
  %3072 = vmatprep.subr.bf16.mxu0 0
  %3073 = vmatpush1.bf16.msra.mxu0 0
  %3074 = vmatprep.subr.bf16.mxu0 0
  %3075 = vmatpush1.bf16.msra.mxu0 0
  %3076 = vmatprep.subr.bf16.mxu0 0
  %3077 = vmatpush1.bf16.msra.mxu0 0
  %3078 = vmatprep.subr.bf16.mxu0 0
  %3079 = vmatpush1.bf16.msra.mxu0 0
  %3080 = vmatprep.subr.bf16.mxu0 0
  %3081 = vmatpush1.bf16.msra.mxu0 0
  %3082 = vmatprep.subr.bf16.mxu0 0
  %3083 = vmatpush1.bf16.msra.mxu0 0
  %3084 = vmatprep.subr.bf16.mxu0 0
  %3085 = vmatpush1.bf16.msra.mxu0 0
  %3086 = vmatprep.subr.bf16.mxu0 0
  %3087 = vmatpush1.bf16.msra.mxu0 0
  %3088 = vmatprep.mubr.bf16.mxu0 0
  %3089 = vmatmul.mubr.bf16.gmra.mrb[0].mxu0 %v2096
  %v3090 = vpop.f32.mrb[0].mxu0
  %v3091 = vadd.f32 0.0, %v3090
  %v3092 = vpop.f32.mrb[0].mxu0
  %v3093 = vadd.f32 0.0, %v3092
  %v3094 = vpop.f32.mrb[0].mxu0
  %v3095 = vpop.f32.mrb[0].mxu0
  %3096 = vdwg.mxu0
  %3097 = vmatprep.subr.bf16.mxu0 %v1742
  %3098 = vmatpush1.bf16.msra.mxu0 %v1741
  %3099 = vmatprep.subr.bf16.mxu0 %v2192
  %3100 = vmatpush1.bf16.msra.mxu0 %v2189
  %3101 = vmatprep.subr.bf16.mxu0 0
  %3102 = vmatpush1.bf16.msra.mxu0 0
  %3103 = vmatprep.subr.bf16.mxu0 0
  %3104 = vmatpush1.bf16.msra.mxu0 0
  %3105 = vmatprep.subr.bf16.mxu0 0
  %3106 = vmatpush1.bf16.msra.mxu0 0
  %3107 = vmatprep.subr.bf16.mxu0 0
  %3108 = vmatpush1.bf16.msra.mxu0 0
  %3109 = vmatprep.subr.bf16.mxu0 0
  %3110 = vmatpush1.bf16.msra.mxu0 0
  %3111 = vmatprep.subr.bf16.mxu0 0
  %3112 = vmatpush1.bf16.msra.mxu0 0
  %3113 = vmatprep.subr.bf16.mxu0 0
  %3114 = vmatpush1.bf16.msra.mxu0 0
  %3115 = vmatprep.subr.bf16.mxu0 0
  %3116 = vmatpush1.bf16.msra.mxu0 0
  %3117 = vmatprep.subr.bf16.mxu0 0
  %3118 = vmatpush1.bf16.msra.mxu0 0
  %3119 = vmatprep.subr.bf16.mxu0 0
  %3120 = vmatpush1.bf16.msra.mxu0 0
  %3121 = vmatprep.subr.bf16.mxu0 0
  %3122 = vmatpush1.bf16.msra.mxu0 0
  %3123 = vmatprep.subr.bf16.mxu0 0
  %3124 = vmatpush1.bf16.msra.mxu0 0
  %3125 = vmatprep.subr.bf16.mxu0 0
  %3126 = vmatpush1.bf16.msra.mxu0 0
  %3127 = vmatprep.subr.bf16.mxu0 0
  %3128 = vmatpush1.bf16.msra.mxu0 0
  %3129 = vmatprep.mubr.bf16.mxu0 0
  %3130 = vmatmul.mubr.bf16.gmra.mrb[0].mxu0 %v2096
  %v3131 = vpop.f32.mrb[0].mxu0
  %v3132 = vadd.f32 0.0, %v3131
  %v3133 = vpop.f32.mrb[0].mxu0
  %v3134 = vadd.f32 0.0, %v3133
  %v3135 = vpop.f32.mrb[0].mxu0
  %v3136 = vpop.f32.mrb[0].mxu0
  %3137 = vdwg.mxu0
  %3138 = vmatprep.subr.bf16.mxu0 %v1744
  %3139 = vmatpush1.bf16.msra.mxu0 %v1743
  %3140 = vmatprep.subr.bf16.mxu0 %v2198
  %3141 = vmatpush1.bf16.msra.mxu0 %v2195
  %3142 = vmatprep.subr.bf16.mxu0 0
  %3143 = vmatpush1.bf16.msra.mxu0 0
  %3144 = vmatprep.subr.bf16.mxu0 0
  %3145 = vmatpush1.bf16.msra.mxu0 0
  %3146 = vmatprep.subr.bf16.mxu0 0
  %3147 = vmatpush1.bf16.msra.mxu0 0
  %3148 = vmatprep.subr.bf16.mxu0 0
  %3149 = vmatpush1.bf16.msra.mxu0 0
  %3150 = vmatprep.subr.bf16.mxu0 0
  %3151 = vmatpush1.bf16.msra.mxu0 0
  %3152 = vmatprep.subr.bf16.mxu0 0
  %3153 = vmatpush1.bf16.msra.mxu0 0
  %3154 = vmatprep.subr.bf16.mxu0 0
  %3155 = vmatpush1.bf16.msra.mxu0 0
  %3156 = vmatprep.subr.bf16.mxu0 0
  %3157 = vmatpush1.bf16.msra.mxu0 0
  %3158 = vmatprep.subr.bf16.mxu0 0
  %3159 = vmatpush1.bf16.msra.mxu0 0
  %3160 = vmatprep.subr.bf16.mxu0 0
  %3161 = vmatpush1.bf16.msra.mxu0 0
  %3162 = vmatprep.subr.bf16.mxu0 0
  %3163 = vmatpush1.bf16.msra.mxu0 0
  %3164 = vmatprep.subr.bf16.mxu0 0
  %3165 = vmatpush1.bf16.msra.mxu0 0
  %3166 = vmatprep.subr.bf16.mxu0 0
  %3167 = vmatpush1.bf16.msra.mxu0 0
  %3168 = vmatprep.subr.bf16.mxu0 0
  %3169 = vmatpush1.bf16.msra.mxu0 0
  %3170 = vmatprep.mubr.bf16.mxu0 0
  %3171 = vmatmul.mubr.bf16.gmra.mrb[0].mxu0 %v2096
  %v3172 = vpop.f32.mrb[0].mxu0
  %v3173 = vadd.f32 0.0, %v3172
  %v3174 = vpop.f32.mrb[0].mxu0
  %v3175 = vadd.f32 0.0, %v3174
  %v3176 = vpop.f32.mrb[0].mxu0
  %v3177 = vpop.f32.mrb[0].mxu0
  %3178 = vdwg.mxu0
  %3179 = vmatprep.subr.bf16.mxu0 %v1746
  %3180 = vmatpush1.bf16.msra.mxu0 %v1745
  %3181 = vmatprep.subr.bf16.mxu0 %v2204
  %3182 = vmatpush1.bf16.msra.mxu0 %v2201
  %3183 = vmatprep.subr.bf16.mxu0 0
  %3184 = vmatpush1.bf16.msra.mxu0 0
  %3185 = vmatprep.subr.bf16.mxu0 0
  %3186 = vmatpush1.bf16.msra.mxu0 0
  %3187 = vmatprep.subr.bf16.mxu0 0
  %3188 = vmatpush1.bf16.msra.mxu0 0
  %3189 = vmatprep.subr.bf16.mxu0 0
  %3190 = vmatpush1.bf16.msra.mxu0 0
  %3191 = vmatprep.subr.bf16.mxu0 0
  %3192 = vmatpush1.bf16.msra.mxu0 0
  %3193 = vmatprep.subr.bf16.mxu0 0
  %3194 = vmatpush1.bf16.msra.mxu0 0
  %3195 = vmatprep.subr.bf16.mxu0 0
  %3196 = vmatpush1.bf16.msra.mxu0 0
  %3197 = vmatprep.subr.bf16.mxu0 0
  %3198 = vmatpush1.bf16.msra.mxu0 0
  %3199 = vmatprep.subr.bf16.mxu0 0
  %3200 = vmatpush1.bf16.msra.mxu0 0
  %3201 = vmatprep.subr.bf16.mxu0 0
  %3202 = vmatpush1.bf16.msra.mxu0 0
  %3203 = vmatprep.subr.bf16.mxu0 0
  %3204 = vmatpush1.bf16.msra.mxu0 0
  %3205 = vmatprep.subr.bf16.mxu0 0
  %3206 = vmatpush1.bf16.msra.mxu0 0
  %3207 = vmatprep.subr.bf16.mxu0 0
  %3208 = vmatpush1.bf16.msra.mxu0 0
  %3209 = vmatprep.subr.bf16.mxu0 0
  %3210 = vmatpush1.bf16.msra.mxu0 0
  %3211 = vmatprep.mubr.bf16.mxu0 0
  %3212 = vmatmul.mubr.bf16.gmra.mrb[0].mxu0 %v2096
  %v3213 = vpop.f32.mrb[0].mxu0
  %v3214 = vadd.f32 0.0, %v3213
  %v3215 = vpop.f32.mrb[0].mxu0
  %v3216 = vadd.f32 0.0, %v3215
  %v3217 = vpop.f32.mrb[0].mxu0
  %v3218 = vpop.f32.mrb[0].mxu0
  %3219 = vdwg.mxu0
  %3220 = vmatprep.subr.bf16.mxu0 %v1748
  %3221 = vmatpush1.bf16.msra.mxu0 %v1747
  %3222 = vmatprep.subr.bf16.mxu0 %v2210
  %3223 = vmatpush1.bf16.msra.mxu0 %v2207
  %3224 = vmatprep.subr.bf16.mxu0 0
  %3225 = vmatpush1.bf16.msra.mxu0 0
  %3226 = vmatprep.subr.bf16.mxu0 0
  %3227 = vmatpush1.bf16.msra.mxu0 0
  %3228 = vmatprep.subr.bf16.mxu0 0
  %3229 = vmatpush1.bf16.msra.mxu0 0
  %3230 = vmatprep.subr.bf16.mxu0 0
  %3231 = vmatpush1.bf16.msra.mxu0 0
  %3232 = vmatprep.subr.bf16.mxu0 0
  %3233 = vmatpush1.bf16.msra.mxu0 0
  %3234 = vmatprep.subr.bf16.mxu0 0
  %3235 = vmatpush1.bf16.msra.mxu0 0
  %3236 = vmatprep.subr.bf16.mxu0 0
  %3237 = vmatpush1.bf16.msra.mxu0 0
  %3238 = vmatprep.subr.bf16.mxu0 0
  %3239 = vmatpush1.bf16.msra.mxu0 0
  %3240 = vmatprep.subr.bf16.mxu0 0
  %3241 = vmatpush1.bf16.msra.mxu0 0
  %3242 = vmatprep.subr.bf16.mxu0 0
  %3243 = vmatpush1.bf16.msra.mxu0 0
  %3244 = vmatprep.subr.bf16.mxu0 0
  %3245 = vmatpush1.bf16.msra.mxu0 0
  %3246 = vmatprep.subr.bf16.mxu0 0
  %3247 = vmatpush1.bf16.msra.mxu0 0
  %3248 = vmatprep.subr.bf16.mxu0 0
  %3249 = vmatpush1.bf16.msra.mxu0 0
  %3250 = vmatprep.subr.bf16.mxu0 0
  %3251 = vmatpush1.bf16.msra.mxu0 0
  %3252 = vmatprep.mubr.bf16.mxu0 0
  %3253 = vmatmul.mubr.bf16.gmra.mrb[0].mxu0 %v2096
  %v3254 = vpop.f32.mrb[0].mxu0
  %v3255 = vadd.f32 0.0, %v3254
  %v3256 = vpop.f32.mrb[0].mxu0
  %v3257 = vadd.f32 0.0, %v3256
  %v3258 = vpop.f32.mrb[0].mxu0
  %v3259 = vpop.f32.mrb[0].mxu0
  %3260 = vdwg.mxu0
  %3261 = vmatprep.subr.bf16.mxu0 %v1750
  %3262 = vmatpush1.bf16.msra.mxu0 %v1749
  %3263 = vmatprep.subr.bf16.mxu0 %v2216
  %3264 = vmatpush1.bf16.msra.mxu0 %v2213
  %3265 = vmatprep.subr.bf16.mxu0 0
  %3266 = vmatpush1.bf16.msra.mxu0 0
  %3267 = vmatprep.subr.bf16.mxu0 0
  %3268 = vmatpush1.bf16.msra.mxu0 0
  %3269 = vmatprep.subr.bf16.mxu0 0
  %3270 = vmatpush1.bf16.msra.mxu0 0
  %3271 = vmatprep.subr.bf16.mxu0 0
  %3272 = vmatpush1.bf16.msra.mxu0 0
  %3273 = vmatprep.subr.bf16.mxu0 0
  %3274 = vmatpush1.bf16.msra.mxu0 0
  %3275 = vmatprep.subr.bf16.mxu0 0
  %3276 = vmatpush1.bf16.msra.mxu0 0
  %3277 = vmatprep.subr.bf16.mxu0 0
  %3278 = vmatpush1.bf16.msra.mxu0 0
  %3279 = vmatprep.subr.bf16.mxu0 0
  %3280 = vmatpush1.bf16.msra.mxu0 0
  %3281 = vmatprep.subr.bf16.mxu0 0
  %3282 = vmatpush1.bf16.msra.mxu0 0
  %3283 = vmatprep.subr.bf16.mxu0 0
  %3284 = vmatpush1.bf16.msra.mxu0 0
  %3285 = vmatprep.subr.bf16.mxu0 0
  %3286 = vmatpush1.bf16.msra.mxu0 0
  %3287 = vmatprep.subr.bf16.mxu0 0
  %3288 = vmatpush1.bf16.msra.mxu0 0
  %3289 = vmatprep.subr.bf16.mxu0 0
  %3290 = vmatpush1.bf16.msra.mxu0 0
  %3291 = vmatprep.subr.bf16.mxu0 0
  %3292 = vmatpush1.bf16.msra.mxu0 0
  %3293 = vmatprep.mubr.bf16.mxu0 0
  %3294 = vmatmul.mubr.bf16.gmra.mrb[0].mxu0 %v2096
  %v3295 = vpop.f32.mrb[0].mxu0
  %v3296 = vadd.f32 0.0, %v3295
  %v3297 = vpop.f32.mrb[0].mxu0
  %v3298 = vadd.f32 0.0, %v3297
  %v3299 = vpop.f32.mrb[0].mxu0
  %v3300 = vpop.f32.mrb[0].mxu0
  %3301 = vdwg.mxu0
  %3302 = vmatprep.subr.bf16.mxu0 %v1752
  %3303 = vmatpush1.bf16.msra.mxu0 %v1751
  %3304 = vmatprep.subr.bf16.mxu0 %v2222
  %3305 = vmatpush1.bf16.msra.mxu0 %v2219
  %3306 = vmatprep.subr.bf16.mxu0 0
  %3307 = vmatpush1.bf16.msra.mxu0 0
  %3308 = vmatprep.subr.bf16.mxu0 0
  %3309 = vmatpush1.bf16.msra.mxu0 0
  %3310 = vmatprep.subr.bf16.mxu0 0
  %3311 = vmatpush1.bf16.msra.mxu0 0
  %3312 = vmatprep.subr.bf16.mxu0 0
  %3313 = vmatpush1.bf16.msra.mxu0 0
  %3314 = vmatprep.subr.bf16.mxu0 0
  %3315 = vmatpush1.bf16.msra.mxu0 0
  %3316 = vmatprep.subr.bf16.mxu0 0
  %3317 = vmatpush1.bf16.msra.mxu0 0
  %3318 = vmatprep.subr.bf16.mxu0 0
  %3319 = vmatpush1.bf16.msra.mxu0 0
  %3320 = vmatprep.subr.bf16.mxu0 0
  %3321 = vmatpush1.bf16.msra.mxu0 0
  %3322 = vmatprep.subr.bf16.mxu0 0
  %3323 = vmatpush1.bf16.msra.mxu0 0
  %3324 = vmatprep.subr.bf16.mxu0 0
  %3325 = vmatpush1.bf16.msra.mxu0 0
  %3326 = vmatprep.subr.bf16.mxu0 0
  %3327 = vmatpush1.bf16.msra.mxu0 0
  %3328 = vmatprep.subr.bf16.mxu0 0
  %3329 = vmatpush1.bf16.msra.mxu0 0
  %3330 = vmatprep.subr.bf16.mxu0 0
  %3331 = vmatpush1.bf16.msra.mxu0 0
  %3332 = vmatprep.subr.bf16.mxu0 0
  %3333 = vmatpush1.bf16.msra.mxu0 0
  %3334 = vmatprep.mubr.bf16.mxu0 0
  %3335 = vmatmul.mubr.bf16.gmra.mrb[0].mxu0 %v2096
  %v3336 = vpop.f32.mrb[0].mxu0
  %v3337 = vadd.f32 0.0, %v3336
  %v3338 = vpop.f32.mrb[0].mxu0
  %v3339 = vadd.f32 0.0, %v3338
  %v3340 = vpop.f32.mrb[0].mxu0
  %v3341 = vpop.f32.mrb[0].mxu0
  %3342 = vdwg.mxu0
  %3343 = vmatprep.subr.bf16.mxu0 %v1754
  %3344 = vmatpush1.bf16.msra.mxu0 %v1753
  %3345 = vmatprep.subr.bf16.mxu0 %v2228
  %3346 = vmatpush1.bf16.msra.mxu0 %v2225
  %3347 = vmatprep.subr.bf16.mxu0 0
  %3348 = vmatpush1.bf16.msra.mxu0 0
  %3349 = vmatprep.subr.bf16.mxu0 0
  %3350 = vmatpush1.bf16.msra.mxu0 0
  %3351 = vmatprep.subr.bf16.mxu0 0
  %3352 = vmatpush1.bf16.msra.mxu0 0
  %3353 = vmatprep.subr.bf16.mxu0 0
  %3354 = vmatpush1.bf16.msra.mxu0 0
  %3355 = vmatprep.subr.bf16.mxu0 0
  %3356 = vmatpush1.bf16.msra.mxu0 0
  %3357 = vmatprep.subr.bf16.mxu0 0
  %3358 = vmatpush1.bf16.msra.mxu0 0
  %3359 = vmatprep.subr.bf16.mxu0 0
  %3360 = vmatpush1.bf16.msra.mxu0 0
  %3361 = vmatprep.subr.bf16.mxu0 0
  %3362 = vmatpush1.bf16.msra.mxu0 0
  %3363 = vmatprep.subr.bf16.mxu0 0
  %3364 = vmatpush1.bf16.msra.mxu0 0
  %3365 = vmatprep.subr.bf16.mxu0 0
  %3366 = vmatpush1.bf16.msra.mxu0 0
  %3367 = vmatprep.subr.bf16.mxu0 0
  %3368 = vmatpush1.bf16.msra.mxu0 0
  %3369 = vmatprep.subr.bf16.mxu0 0
  %3370 = vmatpush1.bf16.msra.mxu0 0
  %3371 = vmatprep.subr.bf16.mxu0 0
  %3372 = vmatpush1.bf16.msra.mxu0 0
  %3373 = vmatprep.subr.bf16.mxu0 0
  %3374 = vmatpush1.bf16.msra.mxu0 0
  %3375 = vmatprep.mubr.bf16.mxu0 0
  %3376 = vmatmul.mubr.bf16.gmra.mrb[0].mxu0 %v2096
  %v3377 = vpop.f32.mrb[0].mxu0
  %v3378 = vadd.f32 0.0, %v3377
  %v3379 = vpop.f32.mrb[0].mxu0
  %v3380 = vadd.f32 0.0, %v3379
  %v3381 = vpop.f32.mrb[0].mxu0
  %v3382 = vpop.f32.mrb[0].mxu0
  %3383 = vdwg.mxu0
  %3384 = vmatprep.subr.bf16.mxu0 %v1756
  %3385 = vmatpush1.bf16.msra.mxu0 %v1755
  %3386 = vmatprep.subr.bf16.mxu0 %v2234
  %3387 = vmatpush1.bf16.msra.mxu0 %v2231
  %3388 = vmatprep.subr.bf16.mxu0 0
  %3389 = vmatpush1.bf16.msra.mxu0 0
  %3390 = vmatprep.subr.bf16.mxu0 0
  %3391 = vmatpush1.bf16.msra.mxu0 0
  %3392 = vmatprep.subr.bf16.mxu0 0
  %3393 = vmatpush1.bf16.msra.mxu0 0
  %3394 = vmatprep.subr.bf16.mxu0 0
  %3395 = vmatpush1.bf16.msra.mxu0 0
  %3396 = vmatprep.subr.bf16.mxu0 0
  %3397 = vmatpush1.bf16.msra.mxu0 0
  %3398 = vmatprep.subr.bf16.mxu0 0
  %3399 = vmatpush1.bf16.msra.mxu0 0
  %3400 = vmatprep.subr.bf16.mxu0 0
  %3401 = vmatpush1.bf16.msra.mxu0 0
  %3402 = vmatprep.subr.bf16.mxu0 0
  %3403 = vmatpush1.bf16.msra.mxu0 0
  %3404 = vmatprep.subr.bf16.mxu0 0
  %3405 = vmatpush1.bf16.msra.mxu0 0
  %3406 = vmatprep.subr.bf16.mxu0 0
  %3407 = vmatpush1.bf16.msra.mxu0 0
  %3408 = vmatprep.subr.bf16.mxu0 0
  %3409 = vmatpush1.bf16.msra.mxu0 0
  %3410 = vmatprep.subr.bf16.mxu0 0
  %3411 = vmatpush1.bf16.msra.mxu0 0
  %3412 = vmatprep.subr.bf16.mxu0 0
  %3413 = vmatpush1.bf16.msra.mxu0 0
  %3414 = vmatprep.subr.bf16.mxu0 0
  %3415 = vmatpush1.bf16.msra.mxu0 0
  %3416 = vmatprep.mubr.bf16.mxu0 0
  %3417 = vmatmul.mubr.bf16.gmra.mrb[0].mxu0 %v2096
  %v3418 = vpop.f32.mrb[0].mxu0
  %v3419 = vadd.f32 0.0, %v3418
  %v3420 = vpop.f32.mrb[0].mxu0
  %v3421 = vadd.f32 0.0, %v3420
  %v3422 = vpop.f32.mrb[0].mxu0
  %v3423 = vpop.f32.mrb[0].mxu0
  %3424 = vdwg.mxu0
  %3425 = vmatprep.subr.bf16.mxu0 %v1758
  %3426 = vmatpush1.bf16.msra.mxu0 %v1757
  %3427 = vmatprep.subr.bf16.mxu0 %v2240
  %3428 = vmatpush1.bf16.msra.mxu0 %v2237
  %3429 = vmatprep.subr.bf16.mxu0 0
  %3430 = vmatpush1.bf16.msra.mxu0 0
  %3431 = vmatprep.subr.bf16.mxu0 0
  %3432 = vmatpush1.bf16.msra.mxu0 0
  %3433 = vmatprep.subr.bf16.mxu0 0
  %3434 = vmatpush1.bf16.msra.mxu0 0
  %3435 = vmatprep.subr.bf16.mxu0 0
  %3436 = vmatpush1.bf16.msra.mxu0 0
  %3437 = vmatprep.subr.bf16.mxu0 0
  %3438 = vmatpush1.bf16.msra.mxu0 0
  %3439 = vmatprep.subr.bf16.mxu0 0
  %3440 = vmatpush1.bf16.msra.mxu0 0
  %3441 = vmatprep.subr.bf16.mxu0 0
  %3442 = vmatpush1.bf16.msra.mxu0 0
  %3443 = vmatprep.subr.bf16.mxu0 0
  %3444 = vmatpush1.bf16.msra.mxu0 0
  %3445 = vmatprep.subr.bf16.mxu0 0
  %3446 = vmatpush1.bf16.msra.mxu0 0
  %3447 = vmatprep.subr.bf16.mxu0 0
  %3448 = vmatpush1.bf16.msra.mxu0 0
  %3449 = vmatprep.subr.bf16.mxu0 0
  %3450 = vmatpush1.bf16.msra.mxu0 0
  %3451 = vmatprep.subr.bf16.mxu0 0
  %3452 = vmatpush1.bf16.msra.mxu0 0
  %3453 = vmatprep.subr.bf16.mxu0 0
  %3454 = vmatpush1.bf16.msra.mxu0 0
  %3455 = vmatprep.subr.bf16.mxu0 0
  %3456 = vmatpush1.bf16.msra.mxu0 0
  %3457 = vmatprep.mubr.bf16.mxu0 0
  %3458 = vmatmul.mubr.bf16.gmra.mrb[0].mxu0 %v2096
  %v3459 = vpop.f32.mrb[0].mxu0
  %v3460 = vadd.f32 0.0, %v3459
  %v3461 = vpop.f32.mrb[0].mxu0
  %v3462 = vadd.f32 0.0, %v3461
  %v3463 = vpop.f32.mrb[0].mxu0
  %v3464 = vpop.f32.mrb[0].mxu0
  %3465 = vdwg.mxu0
  %3466 = vmatprep.subr.bf16.mxu0 %v1760
  %3467 = vmatpush1.bf16.msra.mxu0 %v1759
  %3468 = vmatprep.subr.bf16.mxu0 %v2246
  %3469 = vmatpush1.bf16.msra.mxu0 %v2243
  %3470 = vmatprep.subr.bf16.mxu0 0
  %3471 = vmatpush1.bf16.msra.mxu0 0
  %3472 = vmatprep.subr.bf16.mxu0 0
  %3473 = vmatpush1.bf16.msra.mxu0 0
  %3474 = vmatprep.subr.bf16.mxu0 0
  %3475 = vmatpush1.bf16.msra.mxu0 0
  %3476 = vmatprep.subr.bf16.mxu0 0
  %3477 = vmatpush1.bf16.msra.mxu0 0
  %3478 = vmatprep.subr.bf16.mxu0 0
  %3479 = vmatpush1.bf16.msra.mxu0 0
  %3480 = vmatprep.subr.bf16.mxu0 0
  %3481 = vmatpush1.bf16.msra.mxu0 0
  %3482 = vmatprep.subr.bf16.mxu0 0
  %3483 = vmatpush1.bf16.msra.mxu0 0
  %3484 = vmatprep.subr.bf16.mxu0 0
  %3485 = vmatpush1.bf16.msra.mxu0 0
  %3486 = vmatprep.subr.bf16.mxu0 0
  %3487 = vmatpush1.bf16.msra.mxu0 0
  %3488 = vmatprep.subr.bf16.mxu0 0
  %3489 = vmatpush1.bf16.msra.mxu0 0
  %3490 = vmatprep.subr.bf16.mxu0 0
  %3491 = vmatpush1.bf16.msra.mxu0 0
  %3492 = vmatprep.subr.bf16.mxu0 0
  %3493 = vmatpush1.bf16.msra.mxu0 0
  %3494 = vmatprep.subr.bf16.mxu0 0
  %3495 = vmatpush1.bf16.msra.mxu0 0
  %3496 = vmatprep.subr.bf16.mxu0 0
  %3497 = vmatpush1.bf16.msra.mxu0 0
  %3498 = vmatprep.mubr.bf16.mxu0 0
  %3499 = vmatmul.mubr.bf16.gmra.mrb[0].mxu0 %v2096
  %v3500 = vpop.f32.mrb[0].mxu0
  %v3501 = vadd.f32 0.0, %v3500
  %v3502 = vpop.f32.mrb[0].mxu0
  %v3503 = vadd.f32 0.0, %v3502
  %v3504 = vpop.f32.mrb[0].mxu0
  %v3505 = vpop.f32.mrb[0].mxu0
  %3506 = vdwg.mxu0
  %3507 = vmatprep.subr.bf16.mxu0 %v1762
  %3508 = vmatpush1.bf16.msra.mxu0 %v1761
  %3509 = vmatprep.subr.bf16.mxu0 %v2252
  %3510 = vmatpush1.bf16.msra.mxu0 %v2249
  %3511 = vmatprep.subr.bf16.mxu0 0
  %3512 = vmatpush1.bf16.msra.mxu0 0
  %3513 = vmatprep.subr.bf16.mxu0 0
  %3514 = vmatpush1.bf16.msra.mxu0 0
  %3515 = vmatprep.subr.bf16.mxu0 0
  %3516 = vmatpush1.bf16.msra.mxu0 0
  %3517 = vmatprep.subr.bf16.mxu0 0
  %3518 = vmatpush1.bf16.msra.mxu0 0
  %3519 = vmatprep.subr.bf16.mxu0 0
  %3520 = vmatpush1.bf16.msra.mxu0 0
  %3521 = vmatprep.subr.bf16.mxu0 0
  %3522 = vmatpush1.bf16.msra.mxu0 0
  %3523 = vmatprep.subr.bf16.mxu0 0
  %3524 = vmatpush1.bf16.msra.mxu0 0
  %3525 = vmatprep.subr.bf16.mxu0 0
  %3526 = vmatpush1.bf16.msra.mxu0 0
  %3527 = vmatprep.subr.bf16.mxu0 0
  %3528 = vmatpush1.bf16.msra.mxu0 0
  %3529 = vmatprep.subr.bf16.mxu0 0
  %3530 = vmatpush1.bf16.msra.mxu0 0
  %3531 = vmatprep.subr.bf16.mxu0 0
  %3532 = vmatpush1.bf16.msra.mxu0 0
  %3533 = vmatprep.subr.bf16.mxu0 0
  %3534 = vmatpush1.bf16.msra.mxu0 0
  %3535 = vmatprep.subr.bf16.mxu0 0
  %3536 = vmatpush1.bf16.msra.mxu0 0
  %3537 = vmatprep.subr.bf16.mxu0 0
  %3538 = vmatpush1.bf16.msra.mxu0 0
  %3539 = vmatprep.mubr.bf16.mxu0 0
  %3540 = vmatmul.mubr.bf16.gmra.mrb[0].mxu0 %v2096
  %v3541 = vpop.f32.mrb[0].mxu0
  %v3542 = vadd.f32 0.0, %v3541
  %v3543 = vpop.f32.mrb[0].mxu0
  %v3544 = vadd.f32 0.0, %v3543
  %v3545 = vpop.f32.mrb[0].mxu0
  %v3546 = vpop.f32.mrb[0].mxu0
  %3547 = vdwg.mxu0
  %3548 = vmatprep.subr.bf16.mxu0 %v1764
  %3549 = vmatpush1.bf16.msra.mxu0 %v1763
  %3550 = vmatprep.subr.bf16.mxu0 %v2258
  %3551 = vmatpush1.bf16.msra.mxu0 %v2255
  %3552 = vmatprep.subr.bf16.mxu0 0
  %3553 = vmatpush1.bf16.msra.mxu0 0
  %3554 = vmatprep.subr.bf16.mxu0 0
  %3555 = vmatpush1.bf16.msra.mxu0 0
  %3556 = vmatprep.subr.bf16.mxu0 0
  %3557 = vmatpush1.bf16.msra.mxu0 0
  %3558 = vmatprep.subr.bf16.mxu0 0
  %3559 = vmatpush1.bf16.msra.mxu0 0
  %3560 = vmatprep.subr.bf16.mxu0 0
  %3561 = vmatpush1.bf16.msra.mxu0 0
  %3562 = vmatprep.subr.bf16.mxu0 0
  %3563 = vmatpush1.bf16.msra.mxu0 0
  %3564 = vmatprep.subr.bf16.mxu0 0
  %3565 = vmatpush1.bf16.msra.mxu0 0
  %3566 = vmatprep.subr.bf16.mxu0 0
  %3567 = vmatpush1.bf16.msra.mxu0 0
  %3568 = vmatprep.subr.bf16.mxu0 0
  %3569 = vmatpush1.bf16.msra.mxu0 0
  %3570 = vmatprep.subr.bf16.mxu0 0
  %3571 = vmatpush1.bf16.msra.mxu0 0
  %3572 = vmatprep.subr.bf16.mxu0 0
  %3573 = vmatpush1.bf16.msra.mxu0 0
  %3574 = vmatprep.subr.bf16.mxu0 0
  %3575 = vmatpush1.bf16.msra.mxu0 0
  %3576 = vmatprep.subr.bf16.mxu0 0
  %3577 = vmatpush1.bf16.msra.mxu0 0
  %3578 = vmatprep.subr.bf16.mxu0 0
  %3579 = vmatpush1.bf16.msra.mxu0 0
  %3580 = vmatprep.mubr.bf16.mxu0 0
  %3581 = vmatmul.mubr.bf16.gmra.mrb[0].mxu0 %v2096
  %v3582 = vpop.f32.mrb[0].mxu0
  %v3583 = vadd.f32 0.0, %v3582
  %v3584 = vpop.f32.mrb[0].mxu0
  %v3585 = vadd.f32 0.0, %v3584
  %v3586 = vpop.f32.mrb[0].mxu0
  %v3587 = vpop.f32.mrb[0].mxu0
  %3588 = vdwg.mxu0
  %3589 = vmatprep.subr.bf16.mxu0 %v1766
  %3590 = vmatpush1.bf16.msra.mxu0 %v1765
  %3591 = vmatprep.subr.bf16.mxu0 %v2264
  %3592 = vmatpush1.bf16.msra.mxu0 %v2261
  %3593 = vmatprep.subr.bf16.mxu0 0
  %3594 = vmatpush1.bf16.msra.mxu0 0
  %3595 = vmatprep.subr.bf16.mxu0 0
  %3596 = vmatpush1.bf16.msra.mxu0 0
  %3597 = vmatprep.subr.bf16.mxu0 0
  %3598 = vmatpush1.bf16.msra.mxu0 0
  %3599 = vmatprep.subr.bf16.mxu0 0
  %3600 = vmatpush1.bf16.msra.mxu0 0
  %3601 = vmatprep.subr.bf16.mxu0 0
  %3602 = vmatpush1.bf16.msra.mxu0 0
  %3603 = vmatprep.subr.bf16.mxu0 0
  %3604 = vmatpush1.bf16.msra.mxu0 0
  %3605 = vmatprep.subr.bf16.mxu0 0
  %3606 = vmatpush1.bf16.msra.mxu0 0
  %3607 = vmatprep.subr.bf16.mxu0 0
  %3608 = vmatpush1.bf16.msra.mxu0 0
  %3609 = vmatprep.subr.bf16.mxu0 0
  %3610 = vmatpush1.bf16.msra.mxu0 0
  %3611 = vmatprep.subr.bf16.mxu0 0
  %3612 = vmatpush1.bf16.msra.mxu0 0
  %3613 = vmatprep.subr.bf16.mxu0 0
  %3614 = vmatpush1.bf16.msra.mxu0 0
  %3615 = vmatprep.subr.bf16.mxu0 0
  %3616 = vmatpush1.bf16.msra.mxu0 0
  %3617 = vmatprep.subr.bf16.mxu0 0
  %3618 = vmatpush1.bf16.msra.mxu0 0
  %3619 = vmatprep.subr.bf16.mxu0 0
  %3620 = vmatpush1.bf16.msra.mxu0 0
  %3621 = vmatprep.mubr.bf16.mxu0 0
  %3622 = vmatmul.mubr.bf16.gmra.mrb[0].mxu0 %v2096
  %v3623 = vpop.f32.mrb[0].mxu0
  %v3624 = vadd.f32 0.0, %v3623
  %v3625 = vpop.f32.mrb[0].mxu0
  %v3626 = vadd.f32 0.0, %v3625
  %v3627 = vpop.f32.mrb[0].mxu0
  %v3628 = vpop.f32.mrb[0].mxu0
  %3629 = vdwg.mxu0
  %3630 = vmatprep.subr.bf16.mxu0 %v1768
  %3631 = vmatpush1.bf16.msra.mxu0 %v1767
  %3632 = vmatprep.subr.bf16.mxu0 %v2270
  %3633 = vmatpush1.bf16.msra.mxu0 %v2267
  %3634 = vmatprep.subr.bf16.mxu0 0
  %3635 = vmatpush1.bf16.msra.mxu0 0
  %3636 = vmatprep.subr.bf16.mxu0 0
  %3637 = vmatpush1.bf16.msra.mxu0 0
  %3638 = vmatprep.subr.bf16.mxu0 0
  %3639 = vmatpush1.bf16.msra.mxu0 0
  %3640 = vmatprep.subr.bf16.mxu0 0
  %3641 = vmatpush1.bf16.msra.mxu0 0
  %3642 = vmatprep.subr.bf16.mxu0 0
  %3643 = vmatpush1.bf16.msra.mxu0 0
  %3644 = vmatprep.subr.bf16.mxu0 0
  %3645 = vmatpush1.bf16.msra.mxu0 0
  %3646 = vmatprep.subr.bf16.mxu0 0
  %3647 = vmatpush1.bf16.msra.mxu0 0
  %3648 = vmatprep.subr.bf16.mxu0 0
  %3649 = vmatpush1.bf16.msra.mxu0 0
  %3650 = vmatprep.subr.bf16.mxu0 0
  %3651 = vmatpush1.bf16.msra.mxu0 0
  %3652 = vmatprep.subr.bf16.mxu0 0
  %3653 = vmatpush1.bf16.msra.mxu0 0
  %3654 = vmatprep.subr.bf16.mxu0 0
  %3655 = vmatpush1.bf16.msra.mxu0 0
  %3656 = vmatprep.subr.bf16.mxu0 0
  %3657 = vmatpush1.bf16.msra.mxu0 0
  %3658 = vmatprep.subr.bf16.mxu0 0
  %3659 = vmatpush1.bf16.msra.mxu0 0
  %3660 = vmatprep.subr.bf16.mxu0 0
  %3661 = vmatpush1.bf16.msra.mxu0 0
  %3662 = vmatprep.mubr.bf16.mxu0 0
  %3663 = vmatmul.mubr.bf16.gmra.mrb[0].mxu0 %v2096
  %v3664 = vpop.f32.mrb[0].mxu0
  %v3665 = vadd.f32 0.0, %v3664
  %v3666 = vpop.f32.mrb[0].mxu0
  %v3667 = vadd.f32 0.0, %v3666
  %v3668 = vpop.f32.mrb[0].mxu0
  %v3669 = vpop.f32.mrb[0].mxu0
  %3670 = vdwg.mxu0
  %3671 = vmatprep.subr.bf16.mxu0 %v1770
  %3672 = vmatpush1.bf16.msra.mxu0 %v1769
  %3673 = vmatprep.subr.bf16.mxu0 %v2276
  %3674 = vmatpush1.bf16.msra.mxu0 %v2273
  %3675 = vmatprep.subr.bf16.mxu0 0
  %3676 = vmatpush1.bf16.msra.mxu0 0
  %3677 = vmatprep.subr.bf16.mxu0 0
  %3678 = vmatpush1.bf16.msra.mxu0 0
  %3679 = vmatprep.subr.bf16.mxu0 0
  %3680 = vmatpush1.bf16.msra.mxu0 0
  %3681 = vmatprep.subr.bf16.mxu0 0
  %3682 = vmatpush1.bf16.msra.mxu0 0
  %3683 = vmatprep.subr.bf16.mxu0 0
  %3684 = vmatpush1.bf16.msra.mxu0 0
  %3685 = vmatprep.subr.bf16.mxu0 0
  %3686 = vmatpush1.bf16.msra.mxu0 0
  %3687 = vmatprep.subr.bf16.mxu0 0
  %3688 = vmatpush1.bf16.msra.mxu0 0
  %3689 = vmatprep.subr.bf16.mxu0 0
  %3690 = vmatpush1.bf16.msra.mxu0 0
  %3691 = vmatprep.subr.bf16.mxu0 0
  %3692 = vmatpush1.bf16.msra.mxu0 0
  %3693 = vmatprep.subr.bf16.mxu0 0
  %3694 = vmatpush1.bf16.msra.mxu0 0
  %3695 = vmatprep.subr.bf16.mxu0 0
  %3696 = vmatpush1.bf16.msra.mxu0 0
  %3697 = vmatprep.subr.bf16.mxu0 0
  %3698 = vmatpush1.bf16.msra.mxu0 0
  %3699 = vmatprep.subr.bf16.mxu0 0
  %3700 = vmatpush1.bf16.msra.mxu0 0
  %3701 = vmatprep.subr.bf16.mxu0 0
  %3702 = vmatpush1.bf16.msra.mxu0 0
  %3703 = vmatprep.mubr.bf16.mxu0 0
  %3704 = vmatmul.mubr.bf16.gmra.mrb[0].mxu0 %v2096
  %v3705 = vpop.f32.mrb[0].mxu0
  %v3706 = vadd.f32 0.0, %v3705
  %v3707 = vpop.f32.mrb[0].mxu0
  %v3708 = vadd.f32 0.0, %v3707
  %v3709 = vpop.f32.mrb[0].mxu0
  %v3710 = vpop.f32.mrb[0].mxu0
  %3711 = vdwg.mxu0
  %3712 = vmatprep.subr.bf16.mxu0 %v1772
  %3713 = vmatpush1.bf16.msra.mxu0 %v1771
  %3714 = vmatprep.subr.bf16.mxu0 %v2282
  %3715 = vmatpush1.bf16.msra.mxu0 %v2279
  %3716 = vmatprep.subr.bf16.mxu0 0
  %3717 = vmatpush1.bf16.msra.mxu0 0
  %3718 = vmatprep.subr.bf16.mxu0 0
  %3719 = vmatpush1.bf16.msra.mxu0 0
  %3720 = vmatprep.subr.bf16.mxu0 0
  %3721 = vmatpush1.bf16.msra.mxu0 0
  %3722 = vmatprep.subr.bf16.mxu0 0
  %3723 = vmatpush1.bf16.msra.mxu0 0
  %3724 = vmatprep.subr.bf16.mxu0 0
  %3725 = vmatpush1.bf16.msra.mxu0 0
  %3726 = vmatprep.subr.bf16.mxu0 0
  %3727 = vmatpush1.bf16.msra.mxu0 0
  %3728 = vmatprep.subr.bf16.mxu0 0
  %3729 = vmatpush1.bf16.msra.mxu0 0
  %3730 = vmatprep.subr.bf16.mxu0 0
  %3731 = vmatpush1.bf16.msra.mxu0 0
  %3732 = vmatprep.subr.bf16.mxu0 0
  %3733 = vmatpush1.bf16.msra.mxu0 0
  %3734 = vmatprep.subr.bf16.mxu0 0
  %3735 = vmatpush1.bf16.msra.mxu0 0
  %3736 = vmatprep.subr.bf16.mxu0 0
  %3737 = vmatpush1.bf16.msra.mxu0 0
  %3738 = vmatprep.subr.bf16.mxu0 0
  %3739 = vmatpush1.bf16.msra.mxu0 0
  %3740 = vmatprep.subr.bf16.mxu0 0
  %3741 = vmatpush1.bf16.msra.mxu0 0
  %3742 = vmatprep.subr.bf16.mxu0 0
  %3743 = vmatpush1.bf16.msra.mxu0 0
  %3744 = vmatprep.mubr.bf16.mxu0 0
  %3745 = vmatmul.mubr.bf16.gmra.mrb[0].mxu0 %v2096
  %v3746 = vpop.f32.mrb[0].mxu0
  %v3747 = vadd.f32 0.0, %v3746
  %v3748 = vpop.f32.mrb[0].mxu0
  %v3749 = vadd.f32 0.0, %v3748
  %v3750 = vpop.f32.mrb[0].mxu0
  %v3751 = vpop.f32.mrb[0].mxu0
  %3752 = vdwg.mxu0
  %3753 = vmatprep.subr.bf16.mxu0 %v1774
  %3754 = vmatpush1.bf16.msra.mxu0 %v1773
  %3755 = vmatprep.subr.bf16.mxu0 %v2288
  %3756 = vmatpush1.bf16.msra.mxu0 %v2285
  %3757 = vmatprep.subr.bf16.mxu0 0
  %3758 = vmatpush1.bf16.msra.mxu0 0
  %3759 = vmatprep.subr.bf16.mxu0 0
  %3760 = vmatpush1.bf16.msra.mxu0 0
  %3761 = vmatprep.subr.bf16.mxu0 0
  %3762 = vmatpush1.bf16.msra.mxu0 0
  %3763 = vmatprep.subr.bf16.mxu0 0
  %3764 = vmatpush1.bf16.msra.mxu0 0
  %3765 = vmatprep.subr.bf16.mxu0 0
  %3766 = vmatpush1.bf16.msra.mxu0 0
  %3767 = vmatprep.subr.bf16.mxu0 0
  %3768 = vmatpush1.bf16.msra.mxu0 0
  %3769 = vmatprep.subr.bf16.mxu0 0
  %3770 = vmatpush1.bf16.msra.mxu0 0
  %3771 = vmatprep.subr.bf16.mxu0 0
  %3772 = vmatpush1.bf16.msra.mxu0 0
  %3773 = vmatprep.subr.bf16.mxu0 0
  %3774 = vmatpush1.bf16.msra.mxu0 0
  %3775 = vmatprep.subr.bf16.mxu0 0
  %3776 = vmatpush1.bf16.msra.mxu0 0
  %3777 = vmatprep.subr.bf16.mxu0 0
  %3778 = vmatpush1.bf16.msra.mxu0 0
  %3779 = vmatprep.subr.bf16.mxu0 0
  %3780 = vmatpush1.bf16.msra.mxu0 0
  %3781 = vmatprep.subr.bf16.mxu0 0
  %3782 = vmatpush1.bf16.msra.mxu0 0
  %3783 = vmatprep.subr.bf16.mxu0 0
  %3784 = vmatpush1.bf16.msra.mxu0 0
  %3785 = vmatprep.mubr.bf16.mxu0 0
  %3786 = vmatmul.mubr.bf16.gmra.mrb[0].mxu0 %v2096
  %v3787 = vpop.f32.mrb[0].mxu0
  %v3788 = vadd.f32 0.0, %v3787
  %v3789 = vpop.f32.mrb[0].mxu0
  %v3790 = vadd.f32 0.0, %v3789
  %v3791 = vpop.f32.mrb[0].mxu0
  %v3792 = vpop.f32.mrb[0].mxu0
  %3793 = vdwg.mxu0
  %3794 = vmatprep.subr.bf16.mxu0 %v1776
  %3795 = vmatpush1.bf16.msra.mxu0 %v1775
  %3796 = vmatprep.subr.bf16.mxu0 %v2294
  %3797 = vmatpush1.bf16.msra.mxu0 %v2291
  %3798 = vmatprep.subr.bf16.mxu0 0
  %3799 = vmatpush1.bf16.msra.mxu0 0
  %3800 = vmatprep.subr.bf16.mxu0 0
  %3801 = vmatpush1.bf16.msra.mxu0 0
  %3802 = vmatprep.subr.bf16.mxu0 0
  %3803 = vmatpush1.bf16.msra.mxu0 0
  %3804 = vmatprep.subr.bf16.mxu0 0
  %3805 = vmatpush1.bf16.msra.mxu0 0
  %3806 = vmatprep.subr.bf16.mxu0 0
  %3807 = vmatpush1.bf16.msra.mxu0 0
  %3808 = vmatprep.subr.bf16.mxu0 0
  %3809 = vmatpush1.bf16.msra.mxu0 0
  %3810 = vmatprep.subr.bf16.mxu0 0
  %3811 = vmatpush1.bf16.msra.mxu0 0
  %3812 = vmatprep.subr.bf16.mxu0 0
  %3813 = vmatpush1.bf16.msra.mxu0 0
  %3814 = vmatprep.subr.bf16.mxu0 0
  %3815 = vmatpush1.bf16.msra.mxu0 0
  %3816 = vmatprep.subr.bf16.mxu0 0
  %3817 = vmatpush1.bf16.msra.mxu0 0
  %3818 = vmatprep.subr.bf16.mxu0 0
  %3819 = vmatpush1.bf16.msra.mxu0 0
  %3820 = vmatprep.subr.bf16.mxu0 0
  %3821 = vmatpush1.bf16.msra.mxu0 0
  %3822 = vmatprep.subr.bf16.mxu0 0
  %3823 = vmatpush1.bf16.msra.mxu0 0
  %3824 = vmatprep.subr.bf16.mxu0 0
  %3825 = vmatpush1.bf16.msra.mxu0 0
  %3826 = vmatprep.mubr.bf16.mxu0 0
  %3827 = vmatmul.mubr.bf16.gmra.mrb[0].mxu0 %v2096
  %v3828 = vpop.f32.mrb[0].mxu0
  %v3829 = vadd.f32 0.0, %v3828
  %v3830 = vpop.f32.mrb[0].mxu0
  %v3831 = vadd.f32 0.0, %v3830
  %v3832 = vpop.f32.mrb[0].mxu0
  %v3833 = vpop.f32.mrb[0].mxu0
  %3834 = vdwg.mxu0
  %3835 = vmatprep.subr.bf16.mxu0 %v1778
  %3836 = vmatpush1.bf16.msra.mxu0 %v1777
  %3837 = vmatprep.subr.bf16.mxu0 %v2300
  %3838 = vmatpush1.bf16.msra.mxu0 %v2297
  %3839 = vmatprep.subr.bf16.mxu0 0
  %3840 = vmatpush1.bf16.msra.mxu0 0
  %3841 = vmatprep.subr.bf16.mxu0 0
  %3842 = vmatpush1.bf16.msra.mxu0 0
  %3843 = vmatprep.subr.bf16.mxu0 0
  %3844 = vmatpush1.bf16.msra.mxu0 0
  %3845 = vmatprep.subr.bf16.mxu0 0
  %3846 = vmatpush1.bf16.msra.mxu0 0
  %3847 = vmatprep.subr.bf16.mxu0 0
  %3848 = vmatpush1.bf16.msra.mxu0 0
  %3849 = vmatprep.subr.bf16.mxu0 0
  %3850 = vmatpush1.bf16.msra.mxu0 0
  %3851 = vmatprep.subr.bf16.mxu0 0
  %3852 = vmatpush1.bf16.msra.mxu0 0
  %3853 = vmatprep.subr.bf16.mxu0 0
  %3854 = vmatpush1.bf16.msra.mxu0 0
  %3855 = vmatprep.subr.bf16.mxu0 0
  %3856 = vmatpush1.bf16.msra.mxu0 0
  %3857 = vmatprep.subr.bf16.mxu0 0
  %3858 = vmatpush1.bf16.msra.mxu0 0
  %3859 = vmatprep.subr.bf16.mxu0 0
  %3860 = vmatpush1.bf16.msra.mxu0 0
  %3861 = vmatprep.subr.bf16.mxu0 0
  %3862 = vmatpush1.bf16.msra.mxu0 0
  %3863 = vmatprep.subr.bf16.mxu0 0
  %3864 = vmatpush1.bf16.msra.mxu0 0
  %3865 = vmatprep.subr.bf16.mxu0 0
  %3866 = vmatpush1.bf16.msra.mxu0 0
  %3867 = vmatprep.mubr.bf16.mxu0 0
  %3868 = vmatmul.mubr.bf16.gmra.mrb[0].mxu0 %v2096
  %v3869 = vpop.f32.mrb[0].mxu0
  %v3870 = vadd.f32 0.0, %v3869
  %v3871 = vpop.f32.mrb[0].mxu0
  %v3872 = vadd.f32 0.0, %v3871
  %v3873 = vpop.f32.mrb[0].mxu0
  %v3874 = vpop.f32.mrb[0].mxu0
  %3875 = vdwg.mxu0
  %3876 = vmatprep.subr.bf16.mxu0 %v1780
  %3877 = vmatpush1.bf16.msra.mxu0 %v1779
  %3878 = vmatprep.subr.bf16.mxu0 %v2306
  %3879 = vmatpush1.bf16.msra.mxu0 %v2303
  %3880 = vmatprep.subr.bf16.mxu0 0
  %3881 = vmatpush1.bf16.msra.mxu0 0
  %3882 = vmatprep.subr.bf16.mxu0 0
  %3883 = vmatpush1.bf16.msra.mxu0 0
  %3884 = vmatprep.subr.bf16.mxu0 0
  %3885 = vmatpush1.bf16.msra.mxu0 0
  %3886 = vmatprep.subr.bf16.mxu0 0
  %3887 = vmatpush1.bf16.msra.mxu0 0
  %3888 = vmatprep.subr.bf16.mxu0 0
  %3889 = vmatpush1.bf16.msra.mxu0 0
  %3890 = vmatprep.subr.bf16.mxu0 0
  %3891 = vmatpush1.bf16.msra.mxu0 0
  %3892 = vmatprep.subr.bf16.mxu0 0
  %3893 = vmatpush1.bf16.msra.mxu0 0
  %3894 = vmatprep.subr.bf16.mxu0 0
  %3895 = vmatpush1.bf16.msra.mxu0 0
  %3896 = vmatprep.subr.bf16.mxu0 0
  %3897 = vmatpush1.bf16.msra.mxu0 0
  %3898 = vmatprep.subr.bf16.mxu0 0
  %3899 = vmatpush1.bf16.msra.mxu0 0
  %3900 = vmatprep.subr.bf16.mxu0 0
  %3901 = vmatpush1.bf16.msra.mxu0 0
  %3902 = vmatprep.subr.bf16.mxu0 0
  %3903 = vmatpush1.bf16.msra.mxu0 0
  %3904 = vmatprep.subr.bf16.mxu0 0
  %3905 = vmatpush1.bf16.msra.mxu0 0
  %3906 = vmatprep.subr.bf16.mxu0 0
  %3907 = vmatpush1.bf16.msra.mxu0 0
  %3908 = vmatprep.mubr.bf16.mxu0 0
  %3909 = vmatmul.mubr.bf16.gmra.mrb[0].mxu0 %v2096
  %v3910 = vpop.f32.mrb[0].mxu0
  %v3911 = vadd.f32 0.0, %v3910
  %v3912 = vpop.f32.mrb[0].mxu0
  %v3913 = vadd.f32 0.0, %v3912
  %v3914 = vpop.f32.mrb[0].mxu0
  %v3915 = vpop.f32.mrb[0].mxu0
  %3916 = vdwg.mxu0
  %3917 = vmatprep.subr.bf16.mxu0 %v1782
  %3918 = vmatpush1.bf16.msra.mxu0 %v1781
  %3919 = vmatprep.subr.bf16.mxu0 %v2312
  %3920 = vmatpush1.bf16.msra.mxu0 %v2309
  %3921 = vmatprep.subr.bf16.mxu0 0
  %3922 = vmatpush1.bf16.msra.mxu0 0
  %3923 = vmatprep.subr.bf16.mxu0 0
  %3924 = vmatpush1.bf16.msra.mxu0 0
  %3925 = vmatprep.subr.bf16.mxu0 0
  %3926 = vmatpush1.bf16.msra.mxu0 0
  %3927 = vmatprep.subr.bf16.mxu0 0
  %3928 = vmatpush1.bf16.msra.mxu0 0
  %3929 = vmatprep.subr.bf16.mxu0 0
  %3930 = vmatpush1.bf16.msra.mxu0 0
  %3931 = vmatprep.subr.bf16.mxu0 0
  %3932 = vmatpush1.bf16.msra.mxu0 0
  %3933 = vmatprep.subr.bf16.mxu0 0
  %3934 = vmatpush1.bf16.msra.mxu0 0
  %3935 = vmatprep.subr.bf16.mxu0 0
  %3936 = vmatpush1.bf16.msra.mxu0 0
  %3937 = vmatprep.subr.bf16.mxu0 0
  %3938 = vmatpush1.bf16.msra.mxu0 0
  %3939 = vmatprep.subr.bf16.mxu0 0
  %3940 = vmatpush1.bf16.msra.mxu0 0
  %3941 = vmatprep.subr.bf16.mxu0 0
  %3942 = vmatpush1.bf16.msra.mxu0 0
  %3943 = vmatprep.subr.bf16.mxu0 0
  %3944 = vmatpush1.bf16.msra.mxu0 0
  %3945 = vmatprep.subr.bf16.mxu0 0
  %3946 = vmatpush1.bf16.msra.mxu0 0
  %3947 = vmatprep.subr.bf16.mxu0 0
  %3948 = vmatpush1.bf16.msra.mxu0 0
  %3949 = vmatprep.mubr.bf16.mxu0 0
  %3950 = vmatmul.mubr.bf16.gmra.mrb[0].mxu0 %v2096
  %v3951 = vpop.f32.mrb[0].mxu0
  %v3952 = vadd.f32 0.0, %v3951
  %v3953 = vpop.f32.mrb[0].mxu0
  %v3954 = vadd.f32 0.0, %v3953
  %v3955 = vpop.f32.mrb[0].mxu0
  %v3956 = vpop.f32.mrb[0].mxu0
  %3957 = vdwg.mxu0
  %3958 = vmatprep.subr.bf16.mxu0 %v1784
  %3959 = vmatpush1.bf16.msra.mxu0 %v1783
  %3960 = vmatprep.subr.bf16.mxu0 %v2318
  %3961 = vmatpush1.bf16.msra.mxu0 %v2315
  %3962 = vmatprep.subr.bf16.mxu0 0
  %3963 = vmatpush1.bf16.msra.mxu0 0
  %3964 = vmatprep.subr.bf16.mxu0 0
  %3965 = vmatpush1.bf16.msra.mxu0 0
  %3966 = vmatprep.subr.bf16.mxu0 0
  %3967 = vmatpush1.bf16.msra.mxu0 0
  %3968 = vmatprep.subr.bf16.mxu0 0
  %3969 = vmatpush1.bf16.msra.mxu0 0
  %3970 = vmatprep.subr.bf16.mxu0 0
  %3971 = vmatpush1.bf16.msra.mxu0 0
  %3972 = vmatprep.subr.bf16.mxu0 0
  %3973 = vmatpush1.bf16.msra.mxu0 0
  %3974 = vmatprep.subr.bf16.mxu0 0
  %3975 = vmatpush1.bf16.msra.mxu0 0
  %3976 = vmatprep.subr.bf16.mxu0 0
  %3977 = vmatpush1.bf16.msra.mxu0 0
  %3978 = vmatprep.subr.bf16.mxu0 0
  %3979 = vmatpush1.bf16.msra.mxu0 0
  %3980 = vmatprep.subr.bf16.mxu0 0
  %3981 = vmatpush1.bf16.msra.mxu0 0
  %3982 = vmatprep.subr.bf16.mxu0 0
  %3983 = vmatpush1.bf16.msra.mxu0 0
  %3984 = vmatprep.subr.bf16.mxu0 0
  %3985 = vmatpush1.bf16.msra.mxu0 0
  %3986 = vmatprep.subr.bf16.mxu0 0
  %3987 = vmatpush1.bf16.msra.mxu0 0
  %3988 = vmatprep.subr.bf16.mxu0 0
  %3989 = vmatpush1.bf16.msra.mxu0 0
  %3990 = vmatprep.mubr.bf16.mxu0 0
  %3991 = vmatmul.mubr.bf16.gmra.mrb[0].mxu0 %v2096
  %v3992 = vpop.f32.mrb[0].mxu0
  %v3993 = vadd.f32 0.0, %v3992
  %v3994 = vpop.f32.mrb[0].mxu0
  %v3995 = vadd.f32 0.0, %v3994
  %v3996 = vpop.f32.mrb[0].mxu0
  %v3997 = vpop.f32.mrb[0].mxu0
  %3998 = vdwg.mxu0
  %3999 = vmatprep.subr.bf16.mxu0 %v1786
  %4000 = vmatpush1.bf16.msra.mxu0 %v1785
  %4001 = vmatprep.subr.bf16.mxu0 %v2324
  %4002 = vmatpush1.bf16.msra.mxu0 %v2321
  %4003 = vmatprep.subr.bf16.mxu0 0
  %4004 = vmatpush1.bf16.msra.mxu0 0
  %4005 = vmatprep.subr.bf16.mxu0 0
  %4006 = vmatpush1.bf16.msra.mxu0 0
  %4007 = vmatprep.subr.bf16.mxu0 0
  %4008 = vmatpush1.bf16.msra.mxu0 0
  %4009 = vmatprep.subr.bf16.mxu0 0
  %4010 = vmatpush1.bf16.msra.mxu0 0
  %4011 = vmatprep.subr.bf16.mxu0 0
  %4012 = vmatpush1.bf16.msra.mxu0 0
  %4013 = vmatprep.subr.bf16.mxu0 0
  %4014 = vmatpush1.bf16.msra.mxu0 0
  %4015 = vmatprep.subr.bf16.mxu0 0
  %4016 = vmatpush1.bf16.msra.mxu0 0
  %4017 = vmatprep.subr.bf16.mxu0 0
  %4018 = vmatpush1.bf16.msra.mxu0 0
  %4019 = vmatprep.subr.bf16.mxu0 0
  %4020 = vmatpush1.bf16.msra.mxu0 0
  %4021 = vmatprep.subr.bf16.mxu0 0
  %4022 = vmatpush1.bf16.msra.mxu0 0
  %4023 = vmatprep.subr.bf16.mxu0 0
  %4024 = vmatpush1.bf16.msra.mxu0 0
  %4025 = vmatprep.subr.bf16.mxu0 0
  %4026 = vmatpush1.bf16.msra.mxu0 0
  %4027 = vmatprep.subr.bf16.mxu0 0
  %4028 = vmatpush1.bf16.msra.mxu0 0
  %4029 = vmatprep.subr.bf16.mxu0 0
  %4030 = vmatpush1.bf16.msra.mxu0 0
  %4031 = vmatprep.mubr.bf16.mxu0 0
  %4032 = vmatmul.mubr.bf16.gmra.mrb[0].mxu0 %v2096
  %v4033 = vpop.f32.mrb[0].mxu0
  %v4034 = vadd.f32 0.0, %v4033
  %v4035 = vpop.f32.mrb[0].mxu0
  %v4036 = vadd.f32 0.0, %v4035
  %v4037 = vpop.f32.mrb[0].mxu0
  %v4038 = vpop.f32.mrb[0].mxu0
  %4039 = vdwg.mxu0
  %4040 = vmatprep.subr.bf16.mxu0 %v1788
  %4041 = vmatpush1.bf16.msra.mxu0 %v1787
  %4042 = vmatprep.subr.bf16.mxu0 %v2330
  %4043 = vmatpush1.bf16.msra.mxu0 %v2327
  %4044 = vmatprep.subr.bf16.mxu0 0
  %4045 = vmatpush1.bf16.msra.mxu0 0
  %4046 = vmatprep.subr.bf16.mxu0 0
  %4047 = vmatpush1.bf16.msra.mxu0 0
  %4048 = vmatprep.subr.bf16.mxu0 0
  %4049 = vmatpush1.bf16.msra.mxu0 0
  %4050 = vmatprep.subr.bf16.mxu0 0
  %4051 = vmatpush1.bf16.msra.mxu0 0
  %4052 = vmatprep.subr.bf16.mxu0 0
  %4053 = vmatpush1.bf16.msra.mxu0 0
  %4054 = vmatprep.subr.bf16.mxu0 0
  %4055 = vmatpush1.bf16.msra.mxu0 0
  %4056 = vmatprep.subr.bf16.mxu0 0
  %4057 = vmatpush1.bf16.msra.mxu0 0
  %4058 = vmatprep.subr.bf16.mxu0 0
  %4059 = vmatpush1.bf16.msra.mxu0 0
  %4060 = vmatprep.subr.bf16.mxu0 0
  %4061 = vmatpush1.bf16.msra.mxu0 0
  %4062 = vmatprep.subr.bf16.mxu0 0
  %4063 = vmatpush1.bf16.msra.mxu0 0
  %4064 = vmatprep.subr.bf16.mxu0 0
  %4065 = vmatpush1.bf16.msra.mxu0 0
  %4066 = vmatprep.subr.bf16.mxu0 0
  %4067 = vmatpush1.bf16.msra.mxu0 0
  %4068 = vmatprep.subr.bf16.mxu0 0
  %4069 = vmatpush1.bf16.msra.mxu0 0
  %4070 = vmatprep.subr.bf16.mxu0 0
  %4071 = vmatpush1.bf16.msra.mxu0 0
  %4072 = vmatprep.mubr.bf16.mxu0 0
  %4073 = vmatmul.mubr.bf16.gmra.mrb[0].mxu0 %v2096
  %v4074 = vpop.f32.mrb[0].mxu0
  %v4075 = vadd.f32 0.0, %v4074
  %v4076 = vpop.f32.mrb[0].mxu0
  %v4077 = vadd.f32 0.0, %v4076
  %v4078 = vpop.f32.mrb[0].mxu0
  %v4079 = vpop.f32.mrb[0].mxu0
  %4080 = vdwg.mxu0
  %4081 = vmatprep.subr.bf16.mxu0 %v1790
  %4082 = vmatpush1.bf16.msra.mxu0 %v1789
  %4083 = vmatprep.subr.bf16.mxu0 %v2336
  %4084 = vmatpush1.bf16.msra.mxu0 %v2333
  %4085 = vmatprep.subr.bf16.mxu0 0
  %4086 = vmatpush1.bf16.msra.mxu0 0
  %4087 = vmatprep.subr.bf16.mxu0 0
  %4088 = vmatpush1.bf16.msra.mxu0 0
  %4089 = vmatprep.subr.bf16.mxu0 0
  %4090 = vmatpush1.bf16.msra.mxu0 0
  %4091 = vmatprep.subr.bf16.mxu0 0
  %4092 = vmatpush1.bf16.msra.mxu0 0
  %4093 = vmatprep.subr.bf16.mxu0 0
  %4094 = vmatpush1.bf16.msra.mxu0 0
  %4095 = vmatprep.subr.bf16.mxu0 0
  %4096 = vmatpush1.bf16.msra.mxu0 0
  %4097 = vmatprep.subr.bf16.mxu0 0
  %4098 = vmatpush1.bf16.msra.mxu0 0
  %4099 = vmatprep.subr.bf16.mxu0 0
  %4100 = vmatpush1.bf16.msra.mxu0 0
  %4101 = vmatprep.subr.bf16.mxu0 0
  %4102 = vmatpush1.bf16.msra.mxu0 0
  %4103 = vmatprep.subr.bf16.mxu0 0
  %4104 = vmatpush1.bf16.msra.mxu0 0
  %4105 = vmatprep.subr.bf16.mxu0 0
  %4106 = vmatpush1.bf16.msra.mxu0 0
  %4107 = vmatprep.subr.bf16.mxu0 0
  %4108 = vmatpush1.bf16.msra.mxu0 0
  %4109 = vmatprep.subr.bf16.mxu0 0
  %4110 = vmatpush1.bf16.msra.mxu0 0
  %4111 = vmatprep.subr.bf16.mxu0 0
  %4112 = vmatpush1.bf16.msra.mxu0 0
  %4113 = vmatprep.mubr.bf16.mxu0 0
  %4114 = vmatmul.mubr.bf16.gmra.mrb[0].mxu0 %v2096
  %v4115 = vpop.f32.mrb[0].mxu0
  %v4116 = vadd.f32 0.0, %v4115
  %v4117 = vpop.f32.mrb[0].mxu0
  %v4118 = vadd.f32 0.0, %v4117
  %v4119 = vpop.f32.mrb[0].mxu0
  %v4120 = vpop.f32.mrb[0].mxu0
  %4121 = vdwg.mxu0
  %4122 = vmatprep.subr.bf16.mxu0 %v1792
  %4123 = vmatpush1.bf16.msra.mxu0 %v1791
  %4124 = vmatprep.subr.bf16.mxu0 %v2342
  %4125 = vmatpush1.bf16.msra.mxu0 %v2339
  %4126 = vmatprep.subr.bf16.mxu0 0
  %4127 = vmatpush1.bf16.msra.mxu0 0
  %4128 = vmatprep.subr.bf16.mxu0 0
  %4129 = vmatpush1.bf16.msra.mxu0 0
  %4130 = vmatprep.subr.bf16.mxu0 0
  %4131 = vmatpush1.bf16.msra.mxu0 0
  %4132 = vmatprep.subr.bf16.mxu0 0
  %4133 = vmatpush1.bf16.msra.mxu0 0
  %4134 = vmatprep.subr.bf16.mxu0 0
  %4135 = vmatpush1.bf16.msra.mxu0 0
  %4136 = vmatprep.subr.bf16.mxu0 0
  %4137 = vmatpush1.bf16.msra.mxu0 0
  %4138 = vmatprep.subr.bf16.mxu0 0
  %4139 = vmatpush1.bf16.msra.mxu0 0
  %4140 = vmatprep.subr.bf16.mxu0 0
  %4141 = vmatpush1.bf16.msra.mxu0 0
  %4142 = vmatprep.subr.bf16.mxu0 0
  %4143 = vmatpush1.bf16.msra.mxu0 0
  %4144 = vmatprep.subr.bf16.mxu0 0
  %4145 = vmatpush1.bf16.msra.mxu0 0
  %4146 = vmatprep.subr.bf16.mxu0 0
  %4147 = vmatpush1.bf16.msra.mxu0 0
  %4148 = vmatprep.subr.bf16.mxu0 0
  %4149 = vmatpush1.bf16.msra.mxu0 0
  %4150 = vmatprep.subr.bf16.mxu0 0
  %4151 = vmatpush1.bf16.msra.mxu0 0
  %4152 = vmatprep.subr.bf16.mxu0 0
  %4153 = vmatpush1.bf16.msra.mxu0 0
  %4154 = vmatprep.mubr.bf16.mxu0 0
  %4155 = vmatmul.mubr.bf16.gmra.mrb[0].mxu0 %v2096
  %v4156 = vpop.f32.mrb[0].mxu0
  %v4157 = vadd.f32 0.0, %v4156
  %v4158 = vpop.f32.mrb[0].mxu0
  %v4159 = vadd.f32 0.0, %v4158
  %v4160 = vpop.f32.mrb[0].mxu0
  %v4161 = vpop.f32.mrb[0].mxu0
  %4162 = vdwg.mxu0
  %4163 = vmatprep.subr.bf16.mxu0 %v1794
  %4164 = vmatpush1.bf16.msra.mxu0 %v1793
  %4165 = vmatprep.subr.bf16.mxu0 %v2348
  %4166 = vmatpush1.bf16.msra.mxu0 %v2345
  %4167 = vmatprep.subr.bf16.mxu0 0
  %4168 = vmatpush1.bf16.msra.mxu0 0
  %4169 = vmatprep.subr.bf16.mxu0 0
  %4170 = vmatpush1.bf16.msra.mxu0 0
  %4171 = vmatprep.subr.bf16.mxu0 0
  %4172 = vmatpush1.bf16.msra.mxu0 0
  %4173 = vmatprep.subr.bf16.mxu0 0
  %4174 = vmatpush1.bf16.msra.mxu0 0
  %4175 = vmatprep.subr.bf16.mxu0 0
  %4176 = vmatpush1.bf16.msra.mxu0 0
  %4177 = vmatprep.subr.bf16.mxu0 0
  %4178 = vmatpush1.bf16.msra.mxu0 0
  %4179 = vmatprep.subr.bf16.mxu0 0
  %4180 = vmatpush1.bf16.msra.mxu0 0
  %4181 = vmatprep.subr.bf16.mxu0 0
  %4182 = vmatpush1.bf16.msra.mxu0 0
  %4183 = vmatprep.subr.bf16.mxu0 0
  %4184 = vmatpush1.bf16.msra.mxu0 0
  %4185 = vmatprep.subr.bf16.mxu0 0
  %4186 = vmatpush1.bf16.msra.mxu0 0
  %4187 = vmatprep.subr.bf16.mxu0 0
  %4188 = vmatpush1.bf16.msra.mxu0 0
  %4189 = vmatprep.subr.bf16.mxu0 0
  %4190 = vmatpush1.bf16.msra.mxu0 0
  %4191 = vmatprep.subr.bf16.mxu0 0
  %4192 = vmatpush1.bf16.msra.mxu0 0
  %4193 = vmatprep.subr.bf16.mxu0 0
  %4194 = vmatpush1.bf16.msra.mxu0 0
  %4195 = vmatprep.mubr.bf16.mxu0 0
  %4196 = vmatmul.mubr.bf16.gmra.mrb[0].mxu0 %v2096
  %v4197 = vpop.f32.mrb[0].mxu0
  %v4198 = vadd.f32 0.0, %v4197
  %v4199 = vpop.f32.mrb[0].mxu0
  %v4200 = vadd.f32 0.0, %v4199
  %v4201 = vpop.f32.mrb[0].mxu0
  %v4202 = vpop.f32.mrb[0].mxu0
  %4203 = vdwg.mxu0
  %4204 = vmatprep.subr.bf16.mxu0 %v1796
  %4205 = vmatpush1.bf16.msra.mxu0 %v1795
  %4206 = vmatprep.subr.bf16.mxu0 %v2354
  %4207 = vmatpush1.bf16.msra.mxu0 %v2351
  %4208 = vmatprep.subr.bf16.mxu0 0
  %4209 = vmatpush1.bf16.msra.mxu0 0
  %4210 = vmatprep.subr.bf16.mxu0 0
  %4211 = vmatpush1.bf16.msra.mxu0 0
  %4212 = vmatprep.subr.bf16.mxu0 0
  %4213 = vmatpush1.bf16.msra.mxu0 0
  %4214 = vmatprep.subr.bf16.mxu0 0
  %4215 = vmatpush1.bf16.msra.mxu0 0
  %4216 = vmatprep.subr.bf16.mxu0 0
  %4217 = vmatpush1.bf16.msra.mxu0 0
  %4218 = vmatprep.subr.bf16.mxu0 0
  %4219 = vmatpush1.bf16.msra.mxu0 0
  %4220 = vmatprep.subr.bf16.mxu0 0
  %4221 = vmatpush1.bf16.msra.mxu0 0
  %4222 = vmatprep.subr.bf16.mxu0 0
  %4223 = vmatpush1.bf16.msra.mxu0 0
  %4224 = vmatprep.subr.bf16.mxu0 0
  %4225 = vmatpush1.bf16.msra.mxu0 0
  %4226 = vmatprep.subr.bf16.mxu0 0
  %4227 = vmatpush1.bf16.msra.mxu0 0
  %4228 = vmatprep.subr.bf16.mxu0 0
  %4229 = vmatpush1.bf16.msra.mxu0 0
  %4230 = vmatprep.subr.bf16.mxu0 0
  %4231 = vmatpush1.bf16.msra.mxu0 0
  %4232 = vmatprep.subr.bf16.mxu0 0
  %4233 = vmatpush1.bf16.msra.mxu0 0
  %4234 = vmatprep.subr.bf16.mxu0 0
  %4235 = vmatpush1.bf16.msra.mxu0 0
  %4236 = vmatprep.mubr.bf16.mxu0 0
  %4237 = vmatmul.mubr.bf16.gmra.mrb[0].mxu0 %v2096
  %v4238 = vpop.f32.mrb[0].mxu0
  %v4239 = vadd.f32 0.0, %v4238
  %v4240 = vpop.f32.mrb[0].mxu0
  %v4241 = vadd.f32 0.0, %v4240
  %v4242 = vpop.f32.mrb[0].mxu0
  %v4243 = vpop.f32.mrb[0].mxu0
  %4244 = vdwg.mxu0
  %4245 = vmatprep.subr.bf16.mxu0 %v1798
  %4246 = vmatpush1.bf16.msra.mxu0 %v1797
  %4247 = vmatprep.subr.bf16.mxu0 %v2360
  %4248 = vmatpush1.bf16.msra.mxu0 %v2357
  %4249 = vmatprep.subr.bf16.mxu0 0
  %4250 = vmatpush1.bf16.msra.mxu0 0
  %4251 = vmatprep.subr.bf16.mxu0 0
  %4252 = vmatpush1.bf16.msra.mxu0 0
  %4253 = vmatprep.subr.bf16.mxu0 0
  %4254 = vmatpush1.bf16.msra.mxu0 0
  %4255 = vmatprep.subr.bf16.mxu0 0
  %4256 = vmatpush1.bf16.msra.mxu0 0
  %4257 = vmatprep.subr.bf16.mxu0 0
  %4258 = vmatpush1.bf16.msra.mxu0 0
  %4259 = vmatprep.subr.bf16.mxu0 0
  %4260 = vmatpush1.bf16.msra.mxu0 0
  %4261 = vmatprep.subr.bf16.mxu0 0
  %4262 = vmatpush1.bf16.msra.mxu0 0
  %4263 = vmatprep.subr.bf16.mxu0 0
  %4264 = vmatpush1.bf16.msra.mxu0 0
  %4265 = vmatprep.subr.bf16.mxu0 0
  %4266 = vmatpush1.bf16.msra.mxu0 0
  %4267 = vmatprep.subr.bf16.mxu0 0
  %4268 = vmatpush1.bf16.msra.mxu0 0
  %4269 = vmatprep.subr.bf16.mxu0 0
  %4270 = vmatpush1.bf16.msra.mxu0 0
  %4271 = vmatprep.subr.bf16.mxu0 0
  %4272 = vmatpush1.bf16.msra.mxu0 0
  %4273 = vmatprep.subr.bf16.mxu0 0
  %4274 = vmatpush1.bf16.msra.mxu0 0
  %4275 = vmatprep.subr.bf16.mxu0 0
  %4276 = vmatpush1.bf16.msra.mxu0 0
  %4277 = vmatprep.mubr.bf16.mxu0 0
  %4278 = vmatmul.mubr.bf16.gmra.mrb[0].mxu0 %v2096
  %v4279 = vpop.f32.mrb[0].mxu0
  %v4280 = vadd.f32 0.0, %v4279
  %v4281 = vpop.f32.mrb[0].mxu0
  %v4282 = vadd.f32 0.0, %v4281
  %v4283 = vpop.f32.mrb[0].mxu0
  %v4284 = vpop.f32.mrb[0].mxu0
  %4285 = vdwg.mxu0
  %4286 = vmatprep.subr.bf16.mxu0 %v1800
  %4287 = vmatpush1.bf16.msra.mxu0 %v1799
  %4288 = vmatprep.subr.bf16.mxu0 %v2366
  %4289 = vmatpush1.bf16.msra.mxu0 %v2363
  %4290 = vmatprep.subr.bf16.mxu0 0
  %4291 = vmatpush1.bf16.msra.mxu0 0
  %4292 = vmatprep.subr.bf16.mxu0 0
  %4293 = vmatpush1.bf16.msra.mxu0 0
  %4294 = vmatprep.subr.bf16.mxu0 0
  %4295 = vmatpush1.bf16.msra.mxu0 0
  %4296 = vmatprep.subr.bf16.mxu0 0
  %4297 = vmatpush1.bf16.msra.mxu0 0
  %4298 = vmatprep.subr.bf16.mxu0 0
  %4299 = vmatpush1.bf16.msra.mxu0 0
  %4300 = vmatprep.subr.bf16.mxu0 0
  %4301 = vmatpush1.bf16.msra.mxu0 0
  %4302 = vmatprep.subr.bf16.mxu0 0
  %4303 = vmatpush1.bf16.msra.mxu0 0
  %4304 = vmatprep.subr.bf16.mxu0 0
  %4305 = vmatpush1.bf16.msra.mxu0 0
  %4306 = vmatprep.subr.bf16.mxu0 0
  %4307 = vmatpush1.bf16.msra.mxu0 0
  %4308 = vmatprep.subr.bf16.mxu0 0
  %4309 = vmatpush1.bf16.msra.mxu0 0
  %4310 = vmatprep.subr.bf16.mxu0 0
  %4311 = vmatpush1.bf16.msra.mxu0 0
  %4312 = vmatprep.subr.bf16.mxu0 0
  %4313 = vmatpush1.bf16.msra.mxu0 0
  %4314 = vmatprep.subr.bf16.mxu0 0
  %4315 = vmatpush1.bf16.msra.mxu0 0
  %4316 = vmatprep.subr.bf16.mxu0 0
  %4317 = vmatpush1.bf16.msra.mxu0 0
  %4318 = vmatprep.mubr.bf16.mxu0 0
  %4319 = vmatmul.mubr.bf16.gmra.mrb[0].mxu0 %v2096
  %v4320 = vpop.f32.mrb[0].mxu0
  %v4321 = vadd.f32 0.0, %v4320
  %v4322 = vpop.f32.mrb[0].mxu0
  %v4323 = vadd.f32 0.0, %v4322
  %v4324 = vpop.f32.mrb[0].mxu0
  %v4325 = vpop.f32.mrb[0].mxu0
  %4326 = vdwg.mxu0
  %4327 = vmatprep.subr.bf16.mxu0 %v1802
  %4328 = vmatpush1.bf16.msra.mxu0 %v1801
  %4329 = vmatprep.subr.bf16.mxu0 %v2372
  %4330 = vmatpush1.bf16.msra.mxu0 %v2369
  %4331 = vmatprep.subr.bf16.mxu0 0
  %4332 = vmatpush1.bf16.msra.mxu0 0
  %4333 = vmatprep.subr.bf16.mxu0 0
  %4334 = vmatpush1.bf16.msra.mxu0 0
  %4335 = vmatprep.subr.bf16.mxu0 0
  %4336 = vmatpush1.bf16.msra.mxu0 0
  %4337 = vmatprep.subr.bf16.mxu0 0
  %4338 = vmatpush1.bf16.msra.mxu0 0
  %4339 = vmatprep.subr.bf16.mxu0 0
  %4340 = vmatpush1.bf16.msra.mxu0 0
  %4341 = vmatprep.subr.bf16.mxu0 0
  %4342 = vmatpush1.bf16.msra.mxu0 0
  %4343 = vmatprep.subr.bf16.mxu0 0
  %4344 = vmatpush1.bf16.msra.mxu0 0
  %4345 = vmatprep.subr.bf16.mxu0 0
  %4346 = vmatpush1.bf16.msra.mxu0 0
  %4347 = vmatprep.subr.bf16.mxu0 0
  %4348 = vmatpush1.bf16.msra.mxu0 0
  %4349 = vmatprep.subr.bf16.mxu0 0
  %4350 = vmatpush1.bf16.msra.mxu0 0
  %4351 = vmatprep.subr.bf16.mxu0 0
  %4352 = vmatpush1.bf16.msra.mxu0 0
  %4353 = vmatprep.subr.bf16.mxu0 0
  %4354 = vmatpush1.bf16.msra.mxu0 0
  %4355 = vmatprep.subr.bf16.mxu0 0
  %4356 = vmatpush1.bf16.msra.mxu0 0
  %4357 = vmatprep.subr.bf16.mxu0 0
  %4358 = vmatpush1.bf16.msra.mxu0 0
  %4359 = vmatprep.mubr.bf16.mxu0 0
  %4360 = vmatmul.mubr.bf16.gmra.mrb[0].mxu0 %v2096
  %v4361 = vpop.f32.mrb[0].mxu0
  %v4362 = vadd.f32 0.0, %v4361
  %v4363 = vpop.f32.mrb[0].mxu0
  %v4364 = vadd.f32 0.0, %v4363
  %v4365 = vpop.f32.mrb[0].mxu0
  %v4366 = vpop.f32.mrb[0].mxu0
  %4367 = vdwg.mxu0
  %4368 = vmatprep.subr.bf16.mxu0 %v1804
  %4369 = vmatpush1.bf16.msra.mxu0 %v1803
  %4370 = vmatprep.subr.bf16.mxu0 %v2378
  %4371 = vmatpush1.bf16.msra.mxu0 %v2375
  %4372 = vmatprep.subr.bf16.mxu0 0
  %4373 = vmatpush1.bf16.msra.mxu0 0
  %4374 = vmatprep.subr.bf16.mxu0 0
  %4375 = vmatpush1.bf16.msra.mxu0 0
  %4376 = vmatprep.subr.bf16.mxu0 0
  %4377 = vmatpush1.bf16.msra.mxu0 0
  %4378 = vmatprep.subr.bf16.mxu0 0
  %4379 = vmatpush1.bf16.msra.mxu0 0
  %4380 = vmatprep.subr.bf16.mxu0 0
  %4381 = vmatpush1.bf16.msra.mxu0 0
  %4382 = vmatprep.subr.bf16.mxu0 0
  %4383 = vmatpush1.bf16.msra.mxu0 0
  %4384 = vmatprep.subr.bf16.mxu0 0
  %4385 = vmatpush1.bf16.msra.mxu0 0
  %4386 = vmatprep.subr.bf16.mxu0 0
  %4387 = vmatpush1.bf16.msra.mxu0 0
  %4388 = vmatprep.subr.bf16.mxu0 0
  %4389 = vmatpush1.bf16.msra.mxu0 0
  %4390 = vmatprep.subr.bf16.mxu0 0
  %4391 = vmatpush1.bf16.msra.mxu0 0
  %4392 = vmatprep.subr.bf16.mxu0 0
  %4393 = vmatpush1.bf16.msra.mxu0 0
  %4394 = vmatprep.subr.bf16.mxu0 0
  %4395 = vmatpush1.bf16.msra.mxu0 0
  %4396 = vmatprep.subr.bf16.mxu0 0
  %4397 = vmatpush1.bf16.msra.mxu0 0
  %4398 = vmatprep.subr.bf16.mxu0 0
  %4399 = vmatpush1.bf16.msra.mxu0 0
  %4400 = vmatprep.mubr.bf16.mxu0 0
  %4401 = vmatmul.mubr.bf16.gmra.mrb[0].mxu0 %v2096
  %v4402 = vpop.f32.mrb[0].mxu0
  %v4403 = vadd.f32 0.0, %v4402
  %v4404 = vpop.f32.mrb[0].mxu0
  %v4405 = vadd.f32 0.0, %v4404
  %v4406 = vpop.f32.mrb[0].mxu0
  %v4407 = vpop.f32.mrb[0].mxu0
  %4408 = vdwg.mxu0
  %4409 = vmatprep.subr.bf16.mxu0 %v1806
  %4410 = vmatpush1.bf16.msra.mxu0 %v1805
  %4411 = vmatprep.subr.bf16.mxu0 %v2384
  %4412 = vmatpush1.bf16.msra.mxu0 %v2381
  %4413 = vmatprep.subr.bf16.mxu0 0
  %4414 = vmatpush1.bf16.msra.mxu0 0
  %4415 = vmatprep.subr.bf16.mxu0 0
  %4416 = vmatpush1.bf16.msra.mxu0 0
  %4417 = vmatprep.subr.bf16.mxu0 0
  %4418 = vmatpush1.bf16.msra.mxu0 0
  %4419 = vmatprep.subr.bf16.mxu0 0
  %4420 = vmatpush1.bf16.msra.mxu0 0
  %4421 = vmatprep.subr.bf16.mxu0 0
  %4422 = vmatpush1.bf16.msra.mxu0 0
  %4423 = vmatprep.subr.bf16.mxu0 0
  %4424 = vmatpush1.bf16.msra.mxu0 0
  %4425 = vmatprep.subr.bf16.mxu0 0
  %4426 = vmatpush1.bf16.msra.mxu0 0
  %4427 = vmatprep.subr.bf16.mxu0 0
  %4428 = vmatpush1.bf16.msra.mxu0 0
  %4429 = vmatprep.subr.bf16.mxu0 0
  %4430 = vmatpush1.bf16.msra.mxu0 0
  %4431 = vmatprep.subr.bf16.mxu0 0
  %4432 = vmatpush1.bf16.msra.mxu0 0
  %4433 = vmatprep.subr.bf16.mxu0 0
  %4434 = vmatpush1.bf16.msra.mxu0 0
  %4435 = vmatprep.subr.bf16.mxu0 0
  %4436 = vmatpush1.bf16.msra.mxu0 0
  %4437 = vmatprep.subr.bf16.mxu0 0
  %4438 = vmatpush1.bf16.msra.mxu0 0
  %4439 = vmatprep.subr.bf16.mxu0 0
  %4440 = vmatpush1.bf16.msra.mxu0 0
  %4441 = vmatprep.mubr.bf16.mxu0 0
  %4442 = vmatmul.mubr.bf16.gmra.mrb[0].mxu0 %v2096
  %v4443 = vpop.f32.mrb[0].mxu0
  %v4444 = vadd.f32 0.0, %v4443
  %v4445 = vpop.f32.mrb[0].mxu0
  %v4446 = vadd.f32 0.0, %v4445
  %v4447 = vpop.f32.mrb[0].mxu0
  %v4448 = vpop.f32.mrb[0].mxu0
  %4449 = vdwg.mxu0
  %4450 = vmatprep.subr.bf16.mxu0 %v1808
  %4451 = vmatpush1.bf16.msra.mxu0 %v1807
  %4452 = vmatprep.subr.bf16.mxu0 %v2390
  %4453 = vmatpush1.bf16.msra.mxu0 %v2387
  %4454 = vmatprep.subr.bf16.mxu0 0
  %4455 = vmatpush1.bf16.msra.mxu0 0
  %4456 = vmatprep.subr.bf16.mxu0 0
  %4457 = vmatpush1.bf16.msra.mxu0 0
  %4458 = vmatprep.subr.bf16.mxu0 0
  %4459 = vmatpush1.bf16.msra.mxu0 0
  %4460 = vmatprep.subr.bf16.mxu0 0
  %4461 = vmatpush1.bf16.msra.mxu0 0
  %4462 = vmatprep.subr.bf16.mxu0 0
  %4463 = vmatpush1.bf16.msra.mxu0 0
  %4464 = vmatprep.subr.bf16.mxu0 0
  %4465 = vmatpush1.bf16.msra.mxu0 0
  %4466 = vmatprep.subr.bf16.mxu0 0
  %4467 = vmatpush1.bf16.msra.mxu0 0
  %4468 = vmatprep.subr.bf16.mxu0 0
  %4469 = vmatpush1.bf16.msra.mxu0 0
  %4470 = vmatprep.subr.bf16.mxu0 0
  %4471 = vmatpush1.bf16.msra.mxu0 0
  %4472 = vmatprep.subr.bf16.mxu0 0
  %4473 = vmatpush1.bf16.msra.mxu0 0
  %4474 = vmatprep.subr.bf16.mxu0 0
  %4475 = vmatpush1.bf16.msra.mxu0 0
  %4476 = vmatprep.subr.bf16.mxu0 0
  %4477 = vmatpush1.bf16.msra.mxu0 0
  %4478 = vmatprep.subr.bf16.mxu0 0
  %4479 = vmatpush1.bf16.msra.mxu0 0
  %4480 = vmatprep.subr.bf16.mxu0 0
  %4481 = vmatpush1.bf16.msra.mxu0 0
  %4482 = vmatprep.mubr.bf16.mxu0 0
  %4483 = vmatmul.mubr.bf16.gmra.mrb[0].mxu0 %v2096
  %v4484 = vpop.f32.mrb[0].mxu0
  %v4485 = vadd.f32 0.0, %v4484
  %v4486 = vpop.f32.mrb[0].mxu0
  %v4487 = vadd.f32 0.0, %v4486
  %v4488 = vpop.f32.mrb[0].mxu0
  %v4489 = vpop.f32.mrb[0].mxu0
  %4490 = vdwg.mxu0
  %4491 = vmatprep.subr.bf16.mxu0 %v1810
  %4492 = vmatpush1.bf16.msra.mxu0 %v1809
  %4493 = vmatprep.subr.bf16.mxu0 %v2396
  %4494 = vmatpush1.bf16.msra.mxu0 %v2393
  %4495 = vmatprep.subr.bf16.mxu0 0
  %4496 = vmatpush1.bf16.msra.mxu0 0
  %4497 = vmatprep.subr.bf16.mxu0 0
  %4498 = vmatpush1.bf16.msra.mxu0 0
  %4499 = vmatprep.subr.bf16.mxu0 0
  %4500 = vmatpush1.bf16.msra.mxu0 0
  %4501 = vmatprep.subr.bf16.mxu0 0
  %4502 = vmatpush1.bf16.msra.mxu0 0
  %4503 = vmatprep.subr.bf16.mxu0 0
  %4504 = vmatpush1.bf16.msra.mxu0 0
  %4505 = vmatprep.subr.bf16.mxu0 0
  %4506 = vmatpush1.bf16.msra.mxu0 0
  %4507 = vmatprep.subr.bf16.mxu0 0
  %4508 = vmatpush1.bf16.msra.mxu0 0
  %4509 = vmatprep.subr.bf16.mxu0 0
  %4510 = vmatpush1.bf16.msra.mxu0 0
  %4511 = vmatprep.subr.bf16.mxu0 0
  %4512 = vmatpush1.bf16.msra.mxu0 0
  %4513 = vmatprep.subr.bf16.mxu0 0
  %4514 = vmatpush1.bf16.msra.mxu0 0
  %4515 = vmatprep.subr.bf16.mxu0 0
  %4516 = vmatpush1.bf16.msra.mxu0 0
  %4517 = vmatprep.subr.bf16.mxu0 0
  %4518 = vmatpush1.bf16.msra.mxu0 0
  %4519 = vmatprep.subr.bf16.mxu0 0
  %4520 = vmatpush1.bf16.msra.mxu0 0
  %4521 = vmatprep.subr.bf16.mxu0 0
  %4522 = vmatpush1.bf16.msra.mxu0 0
  %4523 = vmatprep.mubr.bf16.mxu0 0
  %4524 = vmatmul.mubr.bf16.gmra.mrb[0].mxu0 %v2096
  %v4525 = vpop.f32.mrb[0].mxu0
  %v4526 = vadd.f32 0.0, %v4525
  %v4527 = vpop.f32.mrb[0].mxu0
  %v4528 = vadd.f32 0.0, %v4527
  %v4529 = vpop.f32.mrb[0].mxu0
  %v4530 = vpop.f32.mrb[0].mxu0
  %4531 = vdwg.mxu0
  %4532 = vmatprep.subr.bf16.mxu0 %v1812
  %4533 = vmatpush1.bf16.msra.mxu0 %v1811
  %4534 = vmatprep.subr.bf16.mxu0 %v2402
  %4535 = vmatpush1.bf16.msra.mxu0 %v2399
  %4536 = vmatprep.subr.bf16.mxu0 0
  %4537 = vmatpush1.bf16.msra.mxu0 0
  %4538 = vmatprep.subr.bf16.mxu0 0
  %4539 = vmatpush1.bf16.msra.mxu0 0
  %4540 = vmatprep.subr.bf16.mxu0 0
  %4541 = vmatpush1.bf16.msra.mxu0 0
  %4542 = vmatprep.subr.bf16.mxu0 0
  %4543 = vmatpush1.bf16.msra.mxu0 0
  %4544 = vmatprep.subr.bf16.mxu0 0
  %4545 = vmatpush1.bf16.msra.mxu0 0
  %4546 = vmatprep.subr.bf16.mxu0 0
  %4547 = vmatpush1.bf16.msra.mxu0 0
  %4548 = vmatprep.subr.bf16.mxu0 0
  %4549 = vmatpush1.bf16.msra.mxu0 0
  %4550 = vmatprep.subr.bf16.mxu0 0
  %4551 = vmatpush1.bf16.msra.mxu0 0
  %4552 = vmatprep.subr.bf16.mxu0 0
  %4553 = vmatpush1.bf16.msra.mxu0 0
  %4554 = vmatprep.subr.bf16.mxu0 0
  %4555 = vmatpush1.bf16.msra.mxu0 0
  %4556 = vmatprep.subr.bf16.mxu0 0
  %4557 = vmatpush1.bf16.msra.mxu0 0
  %4558 = vmatprep.subr.bf16.mxu0 0
  %4559 = vmatpush1.bf16.msra.mxu0 0
  %4560 = vmatprep.subr.bf16.mxu0 0
  %4561 = vmatpush1.bf16.msra.mxu0 0
  %4562 = vmatprep.subr.bf16.mxu0 0
  %4563 = vmatpush1.bf16.msra.mxu0 0
  %4564 = vmatprep.mubr.bf16.mxu0 0
  %4565 = vmatmul.mubr.bf16.gmra.mrb[0].mxu0 %v2096
  %v4566 = vpop.f32.mrb[0].mxu0
  %v4567 = vadd.f32 0.0, %v4566
  %v4568 = vpop.f32.mrb[0].mxu0
  %v4569 = vadd.f32 0.0, %v4568
  %v4570 = vpop.f32.mrb[0].mxu0
  %v4571 = vpop.f32.mrb[0].mxu0
  %4572 = vdwg.mxu0
  %4573 = vmatprep.subr.bf16.mxu0 %v1814
  %4574 = vmatpush1.bf16.msra.mxu0 %v1813
  %4575 = vmatprep.subr.bf16.mxu0 %v2408
  %4576 = vmatpush1.bf16.msra.mxu0 %v2405
  %4577 = vmatprep.subr.bf16.mxu0 0
  %4578 = vmatpush1.bf16.msra.mxu0 0
  %4579 = vmatprep.subr.bf16.mxu0 0
  %4580 = vmatpush1.bf16.msra.mxu0 0
  %4581 = vmatprep.subr.bf16.mxu0 0
  %4582 = vmatpush1.bf16.msra.mxu0 0
  %4583 = vmatprep.subr.bf16.mxu0 0
  %4584 = vmatpush1.bf16.msra.mxu0 0
  %4585 = vmatprep.subr.bf16.mxu0 0
  %4586 = vmatpush1.bf16.msra.mxu0 0
  %4587 = vmatprep.subr.bf16.mxu0 0
  %4588 = vmatpush1.bf16.msra.mxu0 0
  %4589 = vmatprep.subr.bf16.mxu0 0
  %4590 = vmatpush1.bf16.msra.mxu0 0
  %4591 = vmatprep.subr.bf16.mxu0 0
  %4592 = vmatpush1.bf16.msra.mxu0 0
  %4593 = vmatprep.subr.bf16.mxu0 0
  %4594 = vmatpush1.bf16.msra.mxu0 0
  %4595 = vmatprep.subr.bf16.mxu0 0
  %4596 = vmatpush1.bf16.msra.mxu0 0
  %4597 = vmatprep.subr.bf16.mxu0 0
  %4598 = vmatpush1.bf16.msra.mxu0 0
  %4599 = vmatprep.subr.bf16.mxu0 0
  %4600 = vmatpush1.bf16.msra.mxu0 0
  %4601 = vmatprep.subr.bf16.mxu0 0
  %4602 = vmatpush1.bf16.msra.mxu0 0
  %4603 = vmatprep.subr.bf16.mxu0 0
  %4604 = vmatpush1.bf16.msra.mxu0 0
  %4605 = vmatprep.mubr.bf16.mxu0 0
  %4606 = vmatmul.mubr.bf16.gmra.mrb[0].mxu0 %v2096
  %v4607 = vpop.f32.mrb[0].mxu0
  %v4608 = vadd.f32 0.0, %v4607
  %v4609 = vpop.f32.mrb[0].mxu0
  %v4610 = vadd.f32 0.0, %v4609
  %v4611 = vpop.f32.mrb[0].mxu0
  %v4612 = vpop.f32.mrb[0].mxu0
  %4613 = vdwg.mxu0
  %4614 = vmatprep.subr.bf16.mxu0 %v1816
  %4615 = vmatpush1.bf16.msra.mxu0 %v1815
  %4616 = vmatprep.subr.bf16.mxu0 %v2414
  %4617 = vmatpush1.bf16.msra.mxu0 %v2411
  %4618 = vmatprep.subr.bf16.mxu0 0
  %4619 = vmatpush1.bf16.msra.mxu0 0
  %4620 = vmatprep.subr.bf16.mxu0 0
  %4621 = vmatpush1.bf16.msra.mxu0 0
  %4622 = vmatprep.subr.bf16.mxu0 0
  %4623 = vmatpush1.bf16.msra.mxu0 0
  %4624 = vmatprep.subr.bf16.mxu0 0
  %4625 = vmatpush1.bf16.msra.mxu0 0
  %4626 = vmatprep.subr.bf16.mxu0 0
  %4627 = vmatpush1.bf16.msra.mxu0 0
  %4628 = vmatprep.subr.bf16.mxu0 0
  %4629 = vmatpush1.bf16.msra.mxu0 0
  %4630 = vmatprep.subr.bf16.mxu0 0
  %4631 = vmatpush1.bf16.msra.mxu0 0
  %4632 = vmatprep.subr.bf16.mxu0 0
  %4633 = vmatpush1.bf16.msra.mxu0 0
  %4634 = vmatprep.subr.bf16.mxu0 0
  %4635 = vmatpush1.bf16.msra.mxu0 0
  %4636 = vmatprep.subr.bf16.mxu0 0
  %4637 = vmatpush1.bf16.msra.mxu0 0
  %4638 = vmatprep.subr.bf16.mxu0 0
  %4639 = vmatpush1.bf16.msra.mxu0 0
  %4640 = vmatprep.subr.bf16.mxu0 0
  %4641 = vmatpush1.bf16.msra.mxu0 0
  %4642 = vmatprep.subr.bf16.mxu0 0
  %4643 = vmatpush1.bf16.msra.mxu0 0
  %4644 = vmatprep.subr.bf16.mxu0 0
  %4645 = vmatpush1.bf16.msra.mxu0 0
  %4646 = vmatprep.mubr.bf16.mxu0 0
  %4647 = vmatmul.mubr.bf16.gmra.mrb[0].mxu0 %v2096
  %v4648 = vpop.f32.mrb[0].mxu0
  %v4649 = vadd.f32 0.0, %v4648
  %v4650 = vpop.f32.mrb[0].mxu0
  %v4651 = vadd.f32 0.0, %v4650
  %v4652 = vpop.f32.mrb[0].mxu0
  %v4653 = vpop.f32.mrb[0].mxu0
  %4654 = vdwg.mxu0
  %4655 = vmatprep.subr.bf16.mxu0 %v1818
  %4656 = vmatpush1.bf16.msra.mxu0 %v1817
  %4657 = vmatprep.subr.bf16.mxu0 %v2420
  %4658 = vmatpush1.bf16.msra.mxu0 %v2417
  %4659 = vmatprep.subr.bf16.mxu0 0
  %4660 = vmatpush1.bf16.msra.mxu0 0
  %4661 = vmatprep.subr.bf16.mxu0 0
  %4662 = vmatpush1.bf16.msra.mxu0 0
  %4663 = vmatprep.subr.bf16.mxu0 0
  %4664 = vmatpush1.bf16.msra.mxu0 0
  %4665 = vmatprep.subr.bf16.mxu0 0
  %4666 = vmatpush1.bf16.msra.mxu0 0
  %4667 = vmatprep.subr.bf16.mxu0 0
  %4668 = vmatpush1.bf16.msra.mxu0 0
  %4669 = vmatprep.subr.bf16.mxu0 0
  %4670 = vmatpush1.bf16.msra.mxu0 0
  %4671 = vmatprep.subr.bf16.mxu0 0
  %4672 = vmatpush1.bf16.msra.mxu0 0
  %4673 = vmatprep.subr.bf16.mxu0 0
  %4674 = vmatpush1.bf16.msra.mxu0 0
  %4675 = vmatprep.subr.bf16.mxu0 0
  %4676 = vmatpush1.bf16.msra.mxu0 0
  %4677 = vmatprep.subr.bf16.mxu0 0
  %4678 = vmatpush1.bf16.msra.mxu0 0
  %4679 = vmatprep.subr.bf16.mxu0 0
  %4680 = vmatpush1.bf16.msra.mxu0 0
  %4681 = vmatprep.subr.bf16.mxu0 0
  %4682 = vmatpush1.bf16.msra.mxu0 0
  %4683 = vmatprep.subr.bf16.mxu0 0
  %4684 = vmatpush1.bf16.msra.mxu0 0
  %4685 = vmatprep.subr.bf16.mxu0 0
  %4686 = vmatpush1.bf16.msra.mxu0 0
  %4687 = vmatprep.mubr.bf16.mxu0 0
  %4688 = vmatmul.mubr.bf16.gmra.mrb[0].mxu0 %v2096
  %v4689 = vpop.f32.mrb[0].mxu0
  %v4690 = vadd.f32 0.0, %v4689
  %v4691 = vpop.f32.mrb[0].mxu0
  %v4692 = vadd.f32 0.0, %v4691
  %v4693 = vpop.f32.mrb[0].mxu0
  %v4694 = vpop.f32.mrb[0].mxu0
  %4695 = vdwg.mxu0
  %4696 = vmatprep.subr.bf16.mxu0 %v1820
  %4697 = vmatpush1.bf16.msra.mxu0 %v1819
  %4698 = vmatprep.subr.bf16.mxu0 %v2426
  %4699 = vmatpush1.bf16.msra.mxu0 %v2423
  %4700 = vmatprep.subr.bf16.mxu0 0
  %4701 = vmatpush1.bf16.msra.mxu0 0
  %4702 = vmatprep.subr.bf16.mxu0 0
  %4703 = vmatpush1.bf16.msra.mxu0 0
  %4704 = vmatprep.subr.bf16.mxu0 0
  %4705 = vmatpush1.bf16.msra.mxu0 0
  %4706 = vmatprep.subr.bf16.mxu0 0
  %4707 = vmatpush1.bf16.msra.mxu0 0
  %4708 = vmatprep.subr.bf16.mxu0 0
  %4709 = vmatpush1.bf16.msra.mxu0 0
  %4710 = vmatprep.subr.bf16.mxu0 0
  %4711 = vmatpush1.bf16.msra.mxu0 0
  %4712 = vmatprep.subr.bf16.mxu0 0
  %4713 = vmatpush1.bf16.msra.mxu0 0
  %4714 = vmatprep.subr.bf16.mxu0 0
  %4715 = vmatpush1.bf16.msra.mxu0 0
  %4716 = vmatprep.subr.bf16.mxu0 0
  %4717 = vmatpush1.bf16.msra.mxu0 0
  %4718 = vmatprep.subr.bf16.mxu0 0
  %4719 = vmatpush1.bf16.msra.mxu0 0
  %4720 = vmatprep.subr.bf16.mxu0 0
  %4721 = vmatpush1.bf16.msra.mxu0 0
  %4722 = vmatprep.subr.bf16.mxu0 0
  %4723 = vmatpush1.bf16.msra.mxu0 0
  %4724 = vmatprep.subr.bf16.mxu0 0
  %4725 = vmatpush1.bf16.msra.mxu0 0
  %4726 = vmatprep.subr.bf16.mxu0 0
  %4727 = vmatpush1.bf16.msra.mxu0 0
  %4728 = vmatprep.mubr.bf16.mxu0 0
  %4729 = vmatmul.mubr.bf16.gmra.mrb[0].mxu0 %v2096
  %v4730 = vpop.f32.mrb[0].mxu0
  %v4731 = vadd.f32 0.0, %v4730
  %v4732 = vpop.f32.mrb[0].mxu0
  %v4733 = vadd.f32 0.0, %v4732
  %v4734 = vpop.f32.mrb[0].mxu0
  %v4735 = vpop.f32.mrb[0].mxu0
  %4736 = vdwg.mxu0
  %4737 = vmatprep.subr.bf16.mxu0 %v1822
  %4738 = vmatpush1.bf16.msra.mxu0 %v1821
  %4739 = vmatprep.subr.bf16.mxu0 %v2432
  %4740 = vmatpush1.bf16.msra.mxu0 %v2429
  %4741 = vmatprep.subr.bf16.mxu0 0
  %4742 = vmatpush1.bf16.msra.mxu0 0
  %4743 = vmatprep.subr.bf16.mxu0 0
  %4744 = vmatpush1.bf16.msra.mxu0 0
  %4745 = vmatprep.subr.bf16.mxu0 0
  %4746 = vmatpush1.bf16.msra.mxu0 0
  %4747 = vmatprep.subr.bf16.mxu0 0
  %4748 = vmatpush1.bf16.msra.mxu0 0
  %4749 = vmatprep.subr.bf16.mxu0 0
  %4750 = vmatpush1.bf16.msra.mxu0 0
  %4751 = vmatprep.subr.bf16.mxu0 0
  %4752 = vmatpush1.bf16.msra.mxu0 0
  %4753 = vmatprep.subr.bf16.mxu0 0
  %4754 = vmatpush1.bf16.msra.mxu0 0
  %4755 = vmatprep.subr.bf16.mxu0 0
  %4756 = vmatpush1.bf16.msra.mxu0 0
  %4757 = vmatprep.subr.bf16.mxu0 0
  %4758 = vmatpush1.bf16.msra.mxu0 0
  %4759 = vmatprep.subr.bf16.mxu0 0
  %4760 = vmatpush1.bf16.msra.mxu0 0
  %4761 = vmatprep.subr.bf16.mxu0 0
  %4762 = vmatpush1.bf16.msra.mxu0 0
  %4763 = vmatprep.subr.bf16.mxu0 0
  %4764 = vmatpush1.bf16.msra.mxu0 0
  %4765 = vmatprep.subr.bf16.mxu0 0
  %4766 = vmatpush1.bf16.msra.mxu0 0
  %4767 = vmatprep.subr.bf16.mxu0 0
  %4768 = vmatpush1.bf16.msra.mxu0 0
  %4769 = vmatprep.mubr.bf16.mxu0 0
  %4770 = vmatmul.mubr.bf16.gmra.mrb[0].mxu0 %v2096
  %v4771 = vpop.f32.mrb[0].mxu0
  %v4772 = vadd.f32 0.0, %v4771
  %v4773 = vpop.f32.mrb[0].mxu0
  %v4774 = vadd.f32 0.0, %v4773
  %v4775 = vpop.f32.mrb[0].mxu0
  %v4776 = vpop.f32.mrb[0].mxu0
  %4777 = vdwg.mxu0
  %4778 = vmatprep.subr.bf16.mxu0 %v1824
  %4779 = vmatpush1.bf16.msra.mxu0 %v1823
  %4780 = vmatprep.subr.bf16.mxu0 %v2438
  %4781 = vmatpush1.bf16.msra.mxu0 %v2435
  %4782 = vmatprep.subr.bf16.mxu0 0
  %4783 = vmatpush1.bf16.msra.mxu0 0
  %4784 = vmatprep.subr.bf16.mxu0 0
  %4785 = vmatpush1.bf16.msra.mxu0 0
  %4786 = vmatprep.subr.bf16.mxu0 0
  %4787 = vmatpush1.bf16.msra.mxu0 0
  %4788 = vmatprep.subr.bf16.mxu0 0
  %4789 = vmatpush1.bf16.msra.mxu0 0
  %4790 = vmatprep.subr.bf16.mxu0 0
  %4791 = vmatpush1.bf16.msra.mxu0 0
  %4792 = vmatprep.subr.bf16.mxu0 0
  %4793 = vmatpush1.bf16.msra.mxu0 0
  %4794 = vmatprep.subr.bf16.mxu0 0
  %4795 = vmatpush1.bf16.msra.mxu0 0
  %4796 = vmatprep.subr.bf16.mxu0 0
  %4797 = vmatpush1.bf16.msra.mxu0 0
  %4798 = vmatprep.subr.bf16.mxu0 0
  %4799 = vmatpush1.bf16.msra.mxu0 0
  %4800 = vmatprep.subr.bf16.mxu0 0
  %4801 = vmatpush1.bf16.msra.mxu0 0
  %4802 = vmatprep.subr.bf16.mxu0 0
  %4803 = vmatpush1.bf16.msra.mxu0 0
  %4804 = vmatprep.subr.bf16.mxu0 0
  %4805 = vmatpush1.bf16.msra.mxu0 0
  %4806 = vmatprep.subr.bf16.mxu0 0
  %4807 = vmatpush1.bf16.msra.mxu0 0
  %4808 = vmatprep.subr.bf16.mxu0 0
  %4809 = vmatpush1.bf16.msra.mxu0 0
  %4810 = vmatprep.mubr.bf16.mxu0 0
  %4811 = vmatmul.mubr.bf16.gmra.mrb[0].mxu0 %v2096
  %v4812 = vpop.f32.mrb[0].mxu0
  %v4813 = vadd.f32 0.0, %v4812
  %v4814 = vpop.f32.mrb[0].mxu0
  %v4815 = vadd.f32 0.0, %v4814
  %v4816 = vpop.f32.mrb[0].mxu0
  %v4817 = vpop.f32.mrb[0].mxu0
  %4818 = vdwg.mxu0
  %4819 = vmatprep.subr.bf16.mxu0 %v1826
  %4820 = vmatpush1.bf16.msra.mxu0 %v1825
  %4821 = vmatprep.subr.bf16.mxu0 %v2444
  %4822 = vmatpush1.bf16.msra.mxu0 %v2441
  %4823 = vmatprep.subr.bf16.mxu0 0
  %4824 = vmatpush1.bf16.msra.mxu0 0
  %4825 = vmatprep.subr.bf16.mxu0 0
  %4826 = vmatpush1.bf16.msra.mxu0 0
  %4827 = vmatprep.subr.bf16.mxu0 0
  %4828 = vmatpush1.bf16.msra.mxu0 0
  %4829 = vmatprep.subr.bf16.mxu0 0
  %4830 = vmatpush1.bf16.msra.mxu0 0
  %4831 = vmatprep.subr.bf16.mxu0 0
  %4832 = vmatpush1.bf16.msra.mxu0 0
  %4833 = vmatprep.subr.bf16.mxu0 0
  %4834 = vmatpush1.bf16.msra.mxu0 0
  %4835 = vmatprep.subr.bf16.mxu0 0
  %4836 = vmatpush1.bf16.msra.mxu0 0
  %4837 = vmatprep.subr.bf16.mxu0 0
  %4838 = vmatpush1.bf16.msra.mxu0 0
  %4839 = vmatprep.subr.bf16.mxu0 0
  %4840 = vmatpush1.bf16.msra.mxu0 0
  %4841 = vmatprep.subr.bf16.mxu0 0
  %4842 = vmatpush1.bf16.msra.mxu0 0
  %4843 = vmatprep.subr.bf16.mxu0 0
  %4844 = vmatpush1.bf16.msra.mxu0 0
  %4845 = vmatprep.subr.bf16.mxu0 0
  %4846 = vmatpush1.bf16.msra.mxu0 0
  %4847 = vmatprep.subr.bf16.mxu0 0
  %4848 = vmatpush1.bf16.msra.mxu0 0
  %4849 = vmatprep.subr.bf16.mxu0 0
  %4850 = vmatpush1.bf16.msra.mxu0 0
  %4851 = vmatprep.mubr.bf16.mxu0 0
  %4852 = vmatmul.mubr.bf16.gmra.mrb[0].mxu0 %v2096
  %v4853 = vpop.f32.mrb[0].mxu0
  %v4854 = vadd.f32 0.0, %v4853
  %v4855 = vpop.f32.mrb[0].mxu0
  %v4856 = vadd.f32 0.0, %v4855
  %v4857 = vpop.f32.mrb[0].mxu0
  %v4858 = vpop.f32.mrb[0].mxu0
  %4859 = vdwg.mxu0
  %4860 = vmatprep.subr.bf16.mxu0 %v1828
  %4861 = vmatpush1.bf16.msra.mxu0 %v1827
  %4862 = vmatprep.subr.bf16.mxu0 %v2450
  %4863 = vmatpush1.bf16.msra.mxu0 %v2447
  %4864 = vmatprep.subr.bf16.mxu0 0
  %4865 = vmatpush1.bf16.msra.mxu0 0
  %4866 = vmatprep.subr.bf16.mxu0 0
  %4867 = vmatpush1.bf16.msra.mxu0 0
  %4868 = vmatprep.subr.bf16.mxu0 0
  %4869 = vmatpush1.bf16.msra.mxu0 0
  %4870 = vmatprep.subr.bf16.mxu0 0
  %4871 = vmatpush1.bf16.msra.mxu0 0
  %4872 = vmatprep.subr.bf16.mxu0 0
  %4873 = vmatpush1.bf16.msra.mxu0 0
  %4874 = vmatprep.subr.bf16.mxu0 0
  %4875 = vmatpush1.bf16.msra.mxu0 0
  %4876 = vmatprep.subr.bf16.mxu0 0
  %4877 = vmatpush1.bf16.msra.mxu0 0
  %4878 = vmatprep.subr.bf16.mxu0 0
  %4879 = vmatpush1.bf16.msra.mxu0 0
  %4880 = vmatprep.subr.bf16.mxu0 0
  %4881 = vmatpush1.bf16.msra.mxu0 0
  %4882 = vmatprep.subr.bf16.mxu0 0
  %4883 = vmatpush1.bf16.msra.mxu0 0
  %4884 = vmatprep.subr.bf16.mxu0 0
  %4885 = vmatpush1.bf16.msra.mxu0 0
  %4886 = vmatprep.subr.bf16.mxu0 0
  %4887 = vmatpush1.bf16.msra.mxu0 0
  %4888 = vmatprep.subr.bf16.mxu0 0
  %4889 = vmatpush1.bf16.msra.mxu0 0
  %4890 = vmatprep.subr.bf16.mxu0 0
  %4891 = vmatpush1.bf16.msra.mxu0 0
  %4892 = vmatprep.mubr.bf16.mxu0 0
  %4893 = vmatmul.mubr.bf16.gmra.mrb[0].mxu0 %v2096
  %v4894 = vpop.f32.mrb[0].mxu0
  %v4895 = vadd.f32 0.0, %v4894
  %v4896 = vpop.f32.mrb[0].mxu0
  %v4897 = vadd.f32 0.0, %v4896
  %v4898 = vpop.f32.mrb[0].mxu0
  %v4899 = vpop.f32.mrb[0].mxu0
  %4900 = vdwg.mxu0
  %4901 = vmatprep.subr.bf16.mxu0 %v1830
  %4902 = vmatpush1.bf16.msra.mxu0 %v1829
  %4903 = vmatprep.subr.bf16.mxu0 %v2456
  %4904 = vmatpush1.bf16.msra.mxu0 %v2453
  %4905 = vmatprep.subr.bf16.mxu0 0
  %4906 = vmatpush1.bf16.msra.mxu0 0
  %4907 = vmatprep.subr.bf16.mxu0 0
  %4908 = vmatpush1.bf16.msra.mxu0 0
  %4909 = vmatprep.subr.bf16.mxu0 0
  %4910 = vmatpush1.bf16.msra.mxu0 0
  %4911 = vmatprep.subr.bf16.mxu0 0
  %4912 = vmatpush1.bf16.msra.mxu0 0
  %4913 = vmatprep.subr.bf16.mxu0 0
  %4914 = vmatpush1.bf16.msra.mxu0 0
  %4915 = vmatprep.subr.bf16.mxu0 0
  %4916 = vmatpush1.bf16.msra.mxu0 0
  %4917 = vmatprep.subr.bf16.mxu0 0
  %4918 = vmatpush1.bf16.msra.mxu0 0
  %4919 = vmatprep.subr.bf16.mxu0 0
  %4920 = vmatpush1.bf16.msra.mxu0 0
  %4921 = vmatprep.subr.bf16.mxu0 0
  %4922 = vmatpush1.bf16.msra.mxu0 0
  %4923 = vmatprep.subr.bf16.mxu0 0
  %4924 = vmatpush1.bf16.msra.mxu0 0
  %4925 = vmatprep.subr.bf16.mxu0 0
  %4926 = vmatpush1.bf16.msra.mxu0 0
  %4927 = vmatprep.subr.bf16.mxu0 0
  %4928 = vmatpush1.bf16.msra.mxu0 0
  %4929 = vmatprep.subr.bf16.mxu0 0
  %4930 = vmatpush1.bf16.msra.mxu0 0
  %4931 = vmatprep.subr.bf16.mxu0 0
  %4932 = vmatpush1.bf16.msra.mxu0 0
  %4933 = vmatprep.mubr.bf16.mxu0 0
  %4934 = vmatmul.mubr.bf16.gmra.mrb[0].mxu0 %v2096
  %v4935 = vpop.f32.mrb[0].mxu0
  %v4936 = vadd.f32 0.0, %v4935
  %v4937 = vpop.f32.mrb[0].mxu0
  %v4938 = vadd.f32 0.0, %v4937
  %v4939 = vpop.f32.mrb[0].mxu0
  %v4940 = vpop.f32.mrb[0].mxu0
  %4941 = vdwg.mxu0
  %4942 = vmatprep.subr.bf16.mxu0 %v1832
  %4943 = vmatpush1.bf16.msra.mxu0 %v1831
  %4944 = vmatprep.subr.bf16.mxu0 %v2462
  %4945 = vmatpush1.bf16.msra.mxu0 %v2459
  %4946 = vmatprep.subr.bf16.mxu0 0
  %4947 = vmatpush1.bf16.msra.mxu0 0
  %4948 = vmatprep.subr.bf16.mxu0 0
  %4949 = vmatpush1.bf16.msra.mxu0 0
  %4950 = vmatprep.subr.bf16.mxu0 0
  %4951 = vmatpush1.bf16.msra.mxu0 0
  %4952 = vmatprep.subr.bf16.mxu0 0
  %4953 = vmatpush1.bf16.msra.mxu0 0
  %4954 = vmatprep.subr.bf16.mxu0 0
  %4955 = vmatpush1.bf16.msra.mxu0 0
  %4956 = vmatprep.subr.bf16.mxu0 0
  %4957 = vmatpush1.bf16.msra.mxu0 0
  %4958 = vmatprep.subr.bf16.mxu0 0
  %4959 = vmatpush1.bf16.msra.mxu0 0
  %4960 = vmatprep.subr.bf16.mxu0 0
  %4961 = vmatpush1.bf16.msra.mxu0 0
  %4962 = vmatprep.subr.bf16.mxu0 0
  %4963 = vmatpush1.bf16.msra.mxu0 0
  %4964 = vmatprep.subr.bf16.mxu0 0
  %4965 = vmatpush1.bf16.msra.mxu0 0
  %4966 = vmatprep.subr.bf16.mxu0 0
  %4967 = vmatpush1.bf16.msra.mxu0 0
  %4968 = vmatprep.subr.bf16.mxu0 0
  %4969 = vmatpush1.bf16.msra.mxu0 0
  %4970 = vmatprep.subr.bf16.mxu0 0
  %4971 = vmatpush1.bf16.msra.mxu0 0
  %4972 = vmatprep.subr.bf16.mxu0 0
  %4973 = vmatpush1.bf16.msra.mxu0 0
  %4974 = vmatprep.mubr.bf16.mxu0 0
  %4975 = vmatmul.mubr.bf16.gmra.mrb[0].mxu0 %v2096
  %v4976 = vpop.f32.mrb[0].mxu0
  %v4977 = vadd.f32 0.0, %v4976
  %v4978 = vpop.f32.mrb[0].mxu0
  %v4979 = vadd.f32 0.0, %v4978
  %v4980 = vpop.f32.mrb[0].mxu0
  %v4981 = vpop.f32.mrb[0].mxu0
  %4982 = vdwg.mxu0
  %4983 = vmatprep.subr.bf16.mxu0 %v1834
  %4984 = vmatpush1.bf16.msra.mxu0 %v1833
  %4985 = vmatprep.subr.bf16.mxu0 %v2468
  %4986 = vmatpush1.bf16.msra.mxu0 %v2465
  %4987 = vmatprep.subr.bf16.mxu0 0
  %4988 = vmatpush1.bf16.msra.mxu0 0
  %4989 = vmatprep.subr.bf16.mxu0 0
  %4990 = vmatpush1.bf16.msra.mxu0 0
  %4991 = vmatprep.subr.bf16.mxu0 0
  %4992 = vmatpush1.bf16.msra.mxu0 0
  %4993 = vmatprep.subr.bf16.mxu0 0
  %4994 = vmatpush1.bf16.msra.mxu0 0
  %4995 = vmatprep.subr.bf16.mxu0 0
  %4996 = vmatpush1.bf16.msra.mxu0 0
  %4997 = vmatprep.subr.bf16.mxu0 0
  %4998 = vmatpush1.bf16.msra.mxu0 0
  %4999 = vmatprep.subr.bf16.mxu0 0
  %5000 = vmatpush1.bf16.msra.mxu0 0
  %5001 = vmatprep.subr.bf16.mxu0 0
  %5002 = vmatpush1.bf16.msra.mxu0 0
  %5003 = vmatprep.subr.bf16.mxu0 0
  %5004 = vmatpush1.bf16.msra.mxu0 0
  %5005 = vmatprep.subr.bf16.mxu0 0
  %5006 = vmatpush1.bf16.msra.mxu0 0
  %5007 = vmatprep.subr.bf16.mxu0 0
  %5008 = vmatpush1.bf16.msra.mxu0 0
  %5009 = vmatprep.subr.bf16.mxu0 0
  %5010 = vmatpush1.bf16.msra.mxu0 0
  %5011 = vmatprep.subr.bf16.mxu0 0
  %5012 = vmatpush1.bf16.msra.mxu0 0
  %5013 = vmatprep.subr.bf16.mxu0 0
  %5014 = vmatpush1.bf16.msra.mxu0 0
  %5015 = vmatprep.mubr.bf16.mxu0 0
  %5016 = vmatmul.mubr.bf16.gmra.mrb[0].mxu0 %v2096
  %v5017 = vpop.f32.mrb[0].mxu0
  %v5018 = vadd.f32 0.0, %v5017
  %v5019 = vpop.f32.mrb[0].mxu0
  %v5020 = vadd.f32 0.0, %v5019
  %v5021 = vpop.f32.mrb[0].mxu0
  %v5022 = vpop.f32.mrb[0].mxu0
  %5023 = vdwg.mxu0
  %5024 = vmatprep.subr.bf16.mxu0 %v1836
  %5025 = vmatpush1.bf16.msra.mxu0 %v1835
  %5026 = vmatprep.subr.bf16.mxu0 %v2474
  %5027 = vmatpush1.bf16.msra.mxu0 %v2471
  %5028 = vmatprep.subr.bf16.mxu0 0
  %5029 = vmatpush1.bf16.msra.mxu0 0
  %5030 = vmatprep.subr.bf16.mxu0 0
  %5031 = vmatpush1.bf16.msra.mxu0 0
  %5032 = vmatprep.subr.bf16.mxu0 0
  %5033 = vmatpush1.bf16.msra.mxu0 0
  %5034 = vmatprep.subr.bf16.mxu0 0
  %5035 = vmatpush1.bf16.msra.mxu0 0
  %5036 = vmatprep.subr.bf16.mxu0 0
  %5037 = vmatpush1.bf16.msra.mxu0 0
  %5038 = vmatprep.subr.bf16.mxu0 0
  %5039 = vmatpush1.bf16.msra.mxu0 0
  %5040 = vmatprep.subr.bf16.mxu0 0
  %5041 = vmatpush1.bf16.msra.mxu0 0
  %5042 = vmatprep.subr.bf16.mxu0 0
  %5043 = vmatpush1.bf16.msra.mxu0 0
  %5044 = vmatprep.subr.bf16.mxu0 0
  %5045 = vmatpush1.bf16.msra.mxu0 0
  %5046 = vmatprep.subr.bf16.mxu0 0
  %5047 = vmatpush1.bf16.msra.mxu0 0
  %5048 = vmatprep.subr.bf16.mxu0 0
  %5049 = vmatpush1.bf16.msra.mxu0 0
  %5050 = vmatprep.subr.bf16.mxu0 0
  %5051 = vmatpush1.bf16.msra.mxu0 0
  %5052 = vmatprep.subr.bf16.mxu0 0
  %5053 = vmatpush1.bf16.msra.mxu0 0
  %5054 = vmatprep.subr.bf16.mxu0 0
  %5055 = vmatpush1.bf16.msra.mxu0 0
  %5056 = vmatprep.mubr.bf16.mxu0 0
  %5057 = vmatmul.mubr.bf16.gmra.mrb[0].mxu0 %v2096
  %v5058 = vpop.f32.mrb[0].mxu0
  %v5059 = vadd.f32 0.0, %v5058
  %v5060 = vpop.f32.mrb[0].mxu0
  %v5061 = vadd.f32 0.0, %v5060
  %v5062 = vpop.f32.mrb[0].mxu0
  %v5063 = vpop.f32.mrb[0].mxu0
  %5064 = vdwg.mxu0
  %5065 = vmatprep.subr.bf16.mxu0 %v1838
  %5066 = vmatpush1.bf16.msra.mxu0 %v1837
  %5067 = vmatprep.subr.bf16.mxu0 %v2480
  %5068 = vmatpush1.bf16.msra.mxu0 %v2477
  %5069 = vmatprep.subr.bf16.mxu0 0
  %5070 = vmatpush1.bf16.msra.mxu0 0
  %5071 = vmatprep.subr.bf16.mxu0 0
  %5072 = vmatpush1.bf16.msra.mxu0 0
  %5073 = vmatprep.subr.bf16.mxu0 0
  %5074 = vmatpush1.bf16.msra.mxu0 0
  %5075 = vmatprep.subr.bf16.mxu0 0
  %5076 = vmatpush1.bf16.msra.mxu0 0
  %5077 = vmatprep.subr.bf16.mxu0 0
  %5078 = vmatpush1.bf16.msra.mxu0 0
  %5079 = vmatprep.subr.bf16.mxu0 0
  %5080 = vmatpush1.bf16.msra.mxu0 0
  %5081 = vmatprep.subr.bf16.mxu0 0
  %5082 = vmatpush1.bf16.msra.mxu0 0
  %5083 = vmatprep.subr.bf16.mxu0 0
  %5084 = vmatpush1.bf16.msra.mxu0 0
  %5085 = vmatprep.subr.bf16.mxu0 0
  %5086 = vmatpush1.bf16.msra.mxu0 0
  %5087 = vmatprep.subr.bf16.mxu0 0
  %5088 = vmatpush1.bf16.msra.mxu0 0
  %5089 = vmatprep.subr.bf16.mxu0 0
  %5090 = vmatpush1.bf16.msra.mxu0 0
  %5091 = vmatprep.subr.bf16.mxu0 0
  %5092 = vmatpush1.bf16.msra.mxu0 0
  %5093 = vmatprep.subr.bf16.mxu0 0
  %5094 = vmatpush1.bf16.msra.mxu0 0
  %5095 = vmatprep.subr.bf16.mxu0 0
  %5096 = vmatpush1.bf16.msra.mxu0 0
  %5097 = vmatprep.mubr.bf16.mxu0 0
  %5098 = vmatmul.mubr.bf16.gmra.mrb[0].mxu0 %v2096
  %v5099 = vpop.f32.mrb[0].mxu0
  %v5100 = vadd.f32 0.0, %v5099
  %v5101 = vpop.f32.mrb[0].mxu0
  %v5102 = vadd.f32 0.0, %v5101
  %v5103 = vpop.f32.mrb[0].mxu0
  %v5104 = vpop.f32.mrb[0].mxu0
  %5105 = vdwg.mxu0
  %v5106 = vpack.c.bf16 %v2517, %v2517
  %v5107 = vpack.c.bf16 %v2519, %v2519
  %v5108 = vpack.c.bf16 %v2558, %v2558
  %v5109 = vpack.c.bf16 %v2560, %v2560
  %v5110 = vpack.c.bf16 %v2599, %v2599
  %v5111 = vpack.c.bf16 %v2601, %v2601
  %v5112 = vpack.c.bf16 %v2640, %v2640
  %v5113 = vpack.c.bf16 %v2642, %v2642
  %v5114 = vpack.c.bf16 %v2681, %v2681
  %v5115 = vpack.c.bf16 %v2683, %v2683
  %v5116 = vpack.c.bf16 %v2722, %v2722
  %v5117 = vpack.c.bf16 %v2724, %v2724
  %v5118 = vpack.c.bf16 %v2763, %v2763
  %v5119 = vpack.c.bf16 %v2765, %v2765
  %v5120 = vpack.c.bf16 %v2804, %v2804
  %v5121 = vpack.c.bf16 %v2806, %v2806
  %v5122 = vpack.c.bf16 %v2845, %v2845
  %v5123 = vpack.c.bf16 %v2847, %v2847
  %v5124 = vpack.c.bf16 %v2886, %v2886
  %v5125 = vpack.c.bf16 %v2888, %v2888
  %v5126 = vpack.c.bf16 %v2927, %v2927
  %v5127 = vpack.c.bf16 %v2929, %v2929
  %v5128 = vpack.c.bf16 %v2968, %v2968
  %v5129 = vpack.c.bf16 %v2970, %v2970
  %v5130 = vpack.c.bf16 %v3009, %v3009
  %v5131 = vpack.c.bf16 %v3011, %v3011
  %v5132 = vpack.c.bf16 %v3050, %v3050
  %v5133 = vpack.c.bf16 %v3052, %v3052
  %v5134 = vpack.c.bf16 %v3091, %v3091
  %v5135 = vpack.c.bf16 %v3093, %v3093
  %v5136 = vpack.c.bf16 %v3132, %v3132
  %v5137 = vpack.c.bf16 %v3134, %v3134
  %v5138 = vpack.c.bf16 %v3173, %v3173
  %v5139 = vpack.c.bf16 %v3175, %v3175
  %v5140 = vpack.c.bf16 %v3214, %v3214
  %v5141 = vpack.c.bf16 %v3216, %v3216
  %v5142 = vpack.c.bf16 %v3255, %v3255
  %v5143 = vpack.c.bf16 %v3257, %v3257
  %v5144 = vpack.c.bf16 %v3296, %v3296
  %v5145 = vpack.c.bf16 %v3298, %v3298
  %v5146 = vpack.c.bf16 %v3337, %v3337
  %v5147 = vpack.c.bf16 %v3339, %v3339
  %v5148 = vpack.c.bf16 %v3378, %v3378
  %v5149 = vpack.c.bf16 %v3380, %v3380
  %v5150 = vpack.c.bf16 %v3419, %v3419
  %v5151 = vpack.c.bf16 %v3421, %v3421
  %v5152 = vpack.c.bf16 %v3460, %v3460
  %v5153 = vpack.c.bf16 %v3462, %v3462
  %v5154 = vpack.c.bf16 %v3501, %v3501
  %v5155 = vpack.c.bf16 %v3503, %v3503
  %v5156 = vpack.c.bf16 %v3542, %v3542
  %v5157 = vpack.c.bf16 %v3544, %v3544
  %v5158 = vpack.c.bf16 %v3583, %v3583
  %v5159 = vpack.c.bf16 %v3585, %v3585
  %v5160 = vpack.c.bf16 %v3624, %v3624
  %v5161 = vpack.c.bf16 %v3626, %v3626
  %v5162 = vpack.c.bf16 %v3665, %v3665
  %v5163 = vpack.c.bf16 %v3667, %v3667
  %v5164 = vpack.c.bf16 %v3706, %v3706
  %v5165 = vpack.c.bf16 %v3708, %v3708
  %v5166 = vpack.c.bf16 %v3747, %v3747
  %v5167 = vpack.c.bf16 %v3749, %v3749
  %v5168 = vpack.c.bf16 %v3788, %v3788
  %v5169 = vpack.c.bf16 %v3790, %v3790
  %v5170 = vpack.c.bf16 %v3829, %v3829
  %v5171 = vpack.c.bf16 %v3831, %v3831
  %v5172 = vpack.c.bf16 %v3870, %v3870
  %v5173 = vpack.c.bf16 %v3872, %v3872
  %v5174 = vpack.c.bf16 %v3911, %v3911
  %v5175 = vpack.c.bf16 %v3913, %v3913
  %v5176 = vpack.c.bf16 %v3952, %v3952
  %v5177 = vpack.c.bf16 %v3954, %v3954
  %v5178 = vpack.c.bf16 %v3993, %v3993
  %v5179 = vpack.c.bf16 %v3995, %v3995
  %v5180 = vpack.c.bf16 %v4034, %v4034
  %v5181 = vpack.c.bf16 %v4036, %v4036
  %v5182 = vpack.c.bf16 %v4075, %v4075
  %v5183 = vpack.c.bf16 %v4077, %v4077
  %v5184 = vpack.c.bf16 %v4116, %v4116
  %v5185 = vpack.c.bf16 %v4118, %v4118
  %v5186 = vpack.c.bf16 %v4157, %v4157
  %v5187 = vpack.c.bf16 %v4159, %v4159
  %v5188 = vpack.c.bf16 %v4198, %v4198
  %v5189 = vpack.c.bf16 %v4200, %v4200
  %v5190 = vpack.c.bf16 %v4239, %v4239
  %v5191 = vpack.c.bf16 %v4241, %v4241
  %v5192 = vpack.c.bf16 %v4280, %v4280
  %v5193 = vpack.c.bf16 %v4282, %v4282
  %v5194 = vpack.c.bf16 %v4321, %v4321
  %v5195 = vpack.c.bf16 %v4323, %v4323
  %v5196 = vpack.c.bf16 %v4362, %v4362
  %v5197 = vpack.c.bf16 %v4364, %v4364
  %v5198 = vpack.c.bf16 %v4403, %v4403
  %v5199 = vpack.c.bf16 %v4405, %v4405
  %v5200 = vpack.c.bf16 %v4444, %v4444
  %v5201 = vpack.c.bf16 %v4446, %v4446
  %v5202 = vpack.c.bf16 %v4485, %v4485
  %v5203 = vpack.c.bf16 %v4487, %v4487
  %v5204 = vpack.c.bf16 %v4526, %v4526
  %v5205 = vpack.c.bf16 %v4528, %v4528
  %v5206 = vpack.c.bf16 %v4567, %v4567
  %v5207 = vpack.c.bf16 %v4569, %v4569
  %v5208 = vpack.c.bf16 %v4608, %v4608
  %v5209 = vpack.c.bf16 %v4610, %v4610
  %v5210 = vpack.c.bf16 %v4649, %v4649
  %v5211 = vpack.c.bf16 %v4651, %v4651
  %v5212 = vpack.c.bf16 %v4690, %v4690
  %v5213 = vpack.c.bf16 %v4692, %v4692
  %v5214 = vpack.c.bf16 %v4731, %v4731
  %v5215 = vpack.c.bf16 %v4733, %v4733
  %v5216 = vpack.c.bf16 %v4772, %v4772
  %v5217 = vpack.c.bf16 %v4774, %v4774
  %v5218 = vpack.c.bf16 %v4813, %v4813
  %v5219 = vpack.c.bf16 %v4815, %v4815
  %v5220 = vpack.c.bf16 %v4854, %v4854
  %v5221 = vpack.c.bf16 %v4856, %v4856
  %v5222 = vpack.c.bf16 %v4895, %v4895
  %v5223 = vpack.c.bf16 %v4897, %v4897
  %v5224 = vpack.c.bf16 %v4936, %v4936
  %v5225 = vpack.c.bf16 %v4938, %v4938
  %v5226 = vpack.c.bf16 %v4977, %v4977
  %v5227 = vpack.c.bf16 %v4979, %v4979
  %v5228 = vpack.c.bf16 %v5018, %v5018
  %v5229 = vpack.c.bf16 %v5020, %v5020
  %v5230 = vpack.c.bf16 %v5059, %v5059
  %v5231 = vpack.c.bf16 %v5061, %v5061
  %v5232 = vpack.c.bf16 %v5100, %v5100
  %v5233 = vpack.c.bf16 %v5102, %v5102
  %v5362 = vcombine.low %v5106, %v5107
  %v5363 = vcombine.low %v5108, %v5109
  %v5365 = vunpack.c.l.s4 1983009808
  %v5366 = vunpack.c.0.s8 %v5365
  %v5367 = vlaneseq
  %v5368 = vshrl.u32 %v5367, 7
  %v5369 = vsub.s32 %v5366, %v5368
  %v5370 = vrot.slane %v5362, %v5369
  %v5372 = vunpack.c.l.s4 1983009808
  %v5373 = vunpack.c.0.s8 %v5372
  %v5374 = vlaneseq
  %v5375 = vshrl.u32 %v5374, 7
  %v5376 = vsub.s32 %v5373, %v5375
  %v5377 = vrot.slane %v5363, %v5376
  %v5378 = vcombine.low %v5370, %v5377
  %v5379 = vcombine.low %v5110, %v5111
  %v5380 = vcombine.low %v5112, %v5113
  %v5382 = vunpack.c.l.s4 1983009808
  %v5383 = vunpack.c.0.s8 %v5382
  %v5384 = vlaneseq
  %v5385 = vshrl.u32 %v5384, 7
  %v5386 = vsub.s32 %v5383, %v5385
  %v5387 = vrot.slane %v5379, %v5386
  %v5389 = vunpack.c.l.s4 1983009808
  %v5390 = vunpack.c.0.s8 %v5389
  %v5391 = vlaneseq
  %v5392 = vshrl.u32 %v5391, 7
  %v5393 = vsub.s32 %v5390, %v5392
  %v5394 = vrot.slane %v5380, %v5393
  %v5395 = vcombine.low %v5387, %v5394
  %v5396 = vcombine.low %v5114, %v5115
  %v5397 = vcombine.low %v5116, %v5117
  %v5399 = vunpack.c.l.s4 1983009808
  %v5400 = vunpack.c.0.s8 %v5399
  %v5401 = vlaneseq
  %v5402 = vshrl.u32 %v5401, 7
  %v5403 = vsub.s32 %v5400, %v5402
  %v5404 = vrot.slane %v5396, %v5403
  %v5406 = vunpack.c.l.s4 1983009808
  %v5407 = vunpack.c.0.s8 %v5406
  %v5408 = vlaneseq
  %v5409 = vshrl.u32 %v5408, 7
  %v5410 = vsub.s32 %v5407, %v5409
  %v5411 = vrot.slane %v5397, %v5410
  %v5412 = vcombine.low %v5404, %v5411
  %v5413 = vcombine.low %v5118, %v5119
  %v5414 = vcombine.low %v5120, %v5121
  %v5416 = vunpack.c.l.s4 1983009808
  %v5417 = vunpack.c.0.s8 %v5416
  %v5418 = vlaneseq
  %v5419 = vshrl.u32 %v5418, 7
  %v5420 = vsub.s32 %v5417, %v5419
  %v5421 = vrot.slane %v5413, %v5420
  %v5423 = vunpack.c.l.s4 1983009808
  %v5424 = vunpack.c.0.s8 %v5423
  %v5425 = vlaneseq
  %v5426 = vshrl.u32 %v5425, 7
  %v5427 = vsub.s32 %v5424, %v5426
  %v5428 = vrot.slane %v5414, %v5427
  %v5429 = vcombine.low %v5421, %v5428
  %v5430 = vcombine.low %v5122, %v5123
  %v5431 = vcombine.low %v5124, %v5125
  %v5433 = vunpack.c.l.s4 1983009808
  %v5434 = vunpack.c.0.s8 %v5433
  %v5435 = vlaneseq
  %v5436 = vshrl.u32 %v5435, 7
  %v5437 = vsub.s32 %v5434, %v5436
  %v5438 = vrot.slane %v5430, %v5437
  %v5440 = vunpack.c.l.s4 1983009808
  %v5441 = vunpack.c.0.s8 %v5440
  %v5442 = vlaneseq
  %v5443 = vshrl.u32 %v5442, 7
  %v5444 = vsub.s32 %v5441, %v5443
  %v5445 = vrot.slane %v5431, %v5444
  %v5446 = vcombine.low %v5438, %v5445
  %v5447 = vcombine.low %v5126, %v5127
  %v5448 = vcombine.low %v5128, %v5129
  %v5450 = vunpack.c.l.s4 1983009808
  %v5451 = vunpack.c.0.s8 %v5450
  %v5452 = vlaneseq
  %v5453 = vshrl.u32 %v5452, 7
  %v5454 = vsub.s32 %v5451, %v5453
  %v5455 = vrot.slane %v5447, %v5454
  %v5457 = vunpack.c.l.s4 1983009808
  %v5458 = vunpack.c.0.s8 %v5457
  %v5459 = vlaneseq
  %v5460 = vshrl.u32 %v5459, 7
  %v5461 = vsub.s32 %v5458, %v5460
  %v5462 = vrot.slane %v5448, %v5461
  %v5463 = vcombine.low %v5455, %v5462
  %v5464 = vcombine.low %v5130, %v5131
  %v5465 = vcombine.low %v5132, %v5133
  %v5467 = vunpack.c.l.s4 1983009808
  %v5468 = vunpack.c.0.s8 %v5467
  %v5469 = vlaneseq
  %v5470 = vshrl.u32 %v5469, 7
  %v5471 = vsub.s32 %v5468, %v5470
  %v5472 = vrot.slane %v5464, %v5471
  %v5474 = vunpack.c.l.s4 1983009808
  %v5475 = vunpack.c.0.s8 %v5474
  %v5476 = vlaneseq
  %v5477 = vshrl.u32 %v5476, 7
  %v5478 = vsub.s32 %v5475, %v5477
  %v5479 = vrot.slane %v5465, %v5478
  %v5480 = vcombine.low %v5472, %v5479
  %v5481 = vcombine.low %v5134, %v5135
  %v5482 = vcombine.low %v5136, %v5137
  %v5484 = vunpack.c.l.s4 1983009808
  %v5485 = vunpack.c.0.s8 %v5484
  %v5486 = vlaneseq
  %v5487 = vshrl.u32 %v5486, 7
  %v5488 = vsub.s32 %v5485, %v5487
  %v5489 = vrot.slane %v5481, %v5488
  %v5491 = vunpack.c.l.s4 1983009808
  %v5492 = vunpack.c.0.s8 %v5491
  %v5493 = vlaneseq
  %v5494 = vshrl.u32 %v5493, 7
  %v5495 = vsub.s32 %v5492, %v5494
  %v5496 = vrot.slane %v5482, %v5495
  %v5497 = vcombine.low %v5489, %v5496
  %v5498 = vcombine.low %v5138, %v5139
  %v5499 = vcombine.low %v5140, %v5141
  %v5501 = vunpack.c.l.s4 1983009808
  %v5502 = vunpack.c.0.s8 %v5501
  %v5503 = vlaneseq
  %v5504 = vshrl.u32 %v5503, 7
  %v5505 = vsub.s32 %v5502, %v5504
  %v5506 = vrot.slane %v5498, %v5505
  %v5508 = vunpack.c.l.s4 1983009808
  %v5509 = vunpack.c.0.s8 %v5508
  %v5510 = vlaneseq
  %v5511 = vshrl.u32 %v5510, 7
  %v5512 = vsub.s32 %v5509, %v5511
  %v5513 = vrot.slane %v5499, %v5512
  %v5514 = vcombine.low %v5506, %v5513
  %v5515 = vcombine.low %v5142, %v5143
  %v5516 = vcombine.low %v5144, %v5145
  %v5518 = vunpack.c.l.s4 1983009808
  %v5519 = vunpack.c.0.s8 %v5518
  %v5520 = vlaneseq
  %v5521 = vshrl.u32 %v5520, 7
  %v5522 = vsub.s32 %v5519, %v5521
  %v5523 = vrot.slane %v5515, %v5522
  %v5525 = vunpack.c.l.s4 1983009808
  %v5526 = vunpack.c.0.s8 %v5525
  %v5527 = vlaneseq
  %v5528 = vshrl.u32 %v5527, 7
  %v5529 = vsub.s32 %v5526, %v5528
  %v5530 = vrot.slane %v5516, %v5529
  %v5531 = vcombine.low %v5523, %v5530
  %v5532 = vcombine.low %v5146, %v5147
  %v5533 = vcombine.low %v5148, %v5149
  %v5535 = vunpack.c.l.s4 1983009808
  %v5536 = vunpack.c.0.s8 %v5535
  %v5537 = vlaneseq
  %v5538 = vshrl.u32 %v5537, 7
  %v5539 = vsub.s32 %v5536, %v5538
  %v5540 = vrot.slane %v5532, %v5539
  %v5542 = vunpack.c.l.s4 1983009808
  %v5543 = vunpack.c.0.s8 %v5542
  %v5544 = vlaneseq
  %v5545 = vshrl.u32 %v5544, 7
  %v5546 = vsub.s32 %v5543, %v5545
  %v5547 = vrot.slane %v5533, %v5546
  %v5548 = vcombine.low %v5540, %v5547
  %v5549 = vcombine.low %v5150, %v5151
  %v5550 = vcombine.low %v5152, %v5153
  %v5552 = vunpack.c.l.s4 1983009808
  %v5553 = vunpack.c.0.s8 %v5552
  %v5554 = vlaneseq
  %v5555 = vshrl.u32 %v5554, 7
  %v5556 = vsub.s32 %v5553, %v5555
  %v5557 = vrot.slane %v5549, %v5556
  %v5559 = vunpack.c.l.s4 1983009808
  %v5560 = vunpack.c.0.s8 %v5559
  %v5561 = vlaneseq
  %v5562 = vshrl.u32 %v5561, 7
  %v5563 = vsub.s32 %v5560, %v5562
  %v5564 = vrot.slane %v5550, %v5563
  %v5565 = vcombine.low %v5557, %v5564
  %v5566 = vcombine.low %v5154, %v5155
  %v5567 = vcombine.low %v5156, %v5157
  %v5569 = vunpack.c.l.s4 1983009808
  %v5570 = vunpack.c.0.s8 %v5569
  %v5571 = vlaneseq
  %v5572 = vshrl.u32 %v5571, 7
  %v5573 = vsub.s32 %v5570, %v5572
  %v5574 = vrot.slane %v5566, %v5573
  %v5576 = vunpack.c.l.s4 1983009808
  %v5577 = vunpack.c.0.s8 %v5576
  %v5578 = vlaneseq
  %v5579 = vshrl.u32 %v5578, 7
  %v5580 = vsub.s32 %v5577, %v5579
  %v5581 = vrot.slane %v5567, %v5580
  %v5582 = vcombine.low %v5574, %v5581
  %v5583 = vcombine.low %v5158, %v5159
  %v5584 = vcombine.low %v5160, %v5161
  %v5586 = vunpack.c.l.s4 1983009808
  %v5587 = vunpack.c.0.s8 %v5586
  %v5588 = vlaneseq
  %v5589 = vshrl.u32 %v5588, 7
  %v5590 = vsub.s32 %v5587, %v5589
  %v5591 = vrot.slane %v5583, %v5590
  %v5593 = vunpack.c.l.s4 1983009808
  %v5594 = vunpack.c.0.s8 %v5593
  %v5595 = vlaneseq
  %v5596 = vshrl.u32 %v5595, 7
  %v5597 = vsub.s32 %v5594, %v5596
  %v5598 = vrot.slane %v5584, %v5597
  %v5599 = vcombine.low %v5591, %v5598
  %v5600 = vcombine.low %v5162, %v5163
  %v5601 = vcombine.low %v5164, %v5165
  %v5603 = vunpack.c.l.s4 1983009808
  %v5604 = vunpack.c.0.s8 %v5603
  %v5605 = vlaneseq
  %v5606 = vshrl.u32 %v5605, 7
  %v5607 = vsub.s32 %v5604, %v5606
  %v5608 = vrot.slane %v5600, %v5607
  %v5610 = vunpack.c.l.s4 1983009808
  %v5611 = vunpack.c.0.s8 %v5610
  %v5612 = vlaneseq
  %v5613 = vshrl.u32 %v5612, 7
  %v5614 = vsub.s32 %v5611, %v5613
  %v5615 = vrot.slane %v5601, %v5614
  %v5616 = vcombine.low %v5608, %v5615
  %v5617 = vcombine.low %v5166, %v5167
  %v5618 = vcombine.low %v5168, %v5169
  %v5620 = vunpack.c.l.s4 1983009808
  %v5621 = vunpack.c.0.s8 %v5620
  %v5622 = vlaneseq
  %v5623 = vshrl.u32 %v5622, 7
  %v5624 = vsub.s32 %v5621, %v5623
  %v5625 = vrot.slane %v5617, %v5624
  %v5627 = vunpack.c.l.s4 1983009808
  %v5628 = vunpack.c.0.s8 %v5627
  %v5629 = vlaneseq
  %v5630 = vshrl.u32 %v5629, 7
  %v5631 = vsub.s32 %v5628, %v5630
  %v5632 = vrot.slane %v5618, %v5631
  %v5633 = vcombine.low %v5625, %v5632
  %v5634 = vcombine.low %v5170, %v5171
  %v5635 = vcombine.low %v5172, %v5173
  %v5637 = vunpack.c.l.s4 1983009808
  %v5638 = vunpack.c.0.s8 %v5637
  %v5639 = vlaneseq
  %v5640 = vshrl.u32 %v5639, 7
  %v5641 = vsub.s32 %v5638, %v5640
  %v5642 = vrot.slane %v5634, %v5641
  %v5644 = vunpack.c.l.s4 1983009808
  %v5645 = vunpack.c.0.s8 %v5644
  %v5646 = vlaneseq
  %v5647 = vshrl.u32 %v5646, 7
  %v5648 = vsub.s32 %v5645, %v5647
  %v5649 = vrot.slane %v5635, %v5648
  %v5650 = vcombine.low %v5642, %v5649
  %v5651 = vcombine.low %v5174, %v5175
  %v5652 = vcombine.low %v5176, %v5177
  %v5654 = vunpack.c.l.s4 1983009808
  %v5655 = vunpack.c.0.s8 %v5654
  %v5656 = vlaneseq
  %v5657 = vshrl.u32 %v5656, 7
  %v5658 = vsub.s32 %v5655, %v5657
  %v5659 = vrot.slane %v5651, %v5658
  %v5661 = vunpack.c.l.s4 1983009808
  %v5662 = vunpack.c.0.s8 %v5661
  %v5663 = vlaneseq
  %v5664 = vshrl.u32 %v5663, 7
  %v5665 = vsub.s32 %v5662, %v5664
  %v5666 = vrot.slane %v5652, %v5665
  %v5667 = vcombine.low %v5659, %v5666
  %v5668 = vcombine.low %v5178, %v5179
  %v5669 = vcombine.low %v5180, %v5181
  %v5671 = vunpack.c.l.s4 1983009808
  %v5672 = vunpack.c.0.s8 %v5671
  %v5673 = vlaneseq
  %v5674 = vshrl.u32 %v5673, 7
  %v5675 = vsub.s32 %v5672, %v5674
  %v5676 = vrot.slane %v5668, %v5675
  %v5678 = vunpack.c.l.s4 1983009808
  %v5679 = vunpack.c.0.s8 %v5678
  %v5680 = vlaneseq
  %v5681 = vshrl.u32 %v5680, 7
  %v5682 = vsub.s32 %v5679, %v5681
  %v5683 = vrot.slane %v5669, %v5682
  %v5684 = vcombine.low %v5676, %v5683
  %v5685 = vcombine.low %v5182, %v5183
  %v5686 = vcombine.low %v5184, %v5185
  %v5688 = vunpack.c.l.s4 1983009808
  %v5689 = vunpack.c.0.s8 %v5688
  %v5690 = vlaneseq
  %v5691 = vshrl.u32 %v5690, 7
  %v5692 = vsub.s32 %v5689, %v5691
  %v5693 = vrot.slane %v5685, %v5692
  %v5695 = vunpack.c.l.s4 1983009808
  %v5696 = vunpack.c.0.s8 %v5695
  %v5697 = vlaneseq
  %v5698 = vshrl.u32 %v5697, 7
  %v5699 = vsub.s32 %v5696, %v5698
  %v5700 = vrot.slane %v5686, %v5699
  %v5701 = vcombine.low %v5693, %v5700
  %v5702 = vcombine.low %v5186, %v5187
  %v5703 = vcombine.low %v5188, %v5189
  %v5705 = vunpack.c.l.s4 1983009808
  %v5706 = vunpack.c.0.s8 %v5705
  %v5707 = vlaneseq
  %v5708 = vshrl.u32 %v5707, 7
  %v5709 = vsub.s32 %v5706, %v5708
  %v5710 = vrot.slane %v5702, %v5709
  %v5712 = vunpack.c.l.s4 1983009808
  %v5713 = vunpack.c.0.s8 %v5712
  %v5714 = vlaneseq
  %v5715 = vshrl.u32 %v5714, 7
  %v5716 = vsub.s32 %v5713, %v5715
  %v5717 = vrot.slane %v5703, %v5716
  %v5718 = vcombine.low %v5710, %v5717
  %v5719 = vcombine.low %v5190, %v5191
  %v5720 = vcombine.low %v5192, %v5193
  %v5722 = vunpack.c.l.s4 1983009808
  %v5723 = vunpack.c.0.s8 %v5722
  %v5724 = vlaneseq
  %v5725 = vshrl.u32 %v5724, 7
  %v5726 = vsub.s32 %v5723, %v5725
  %v5727 = vrot.slane %v5719, %v5726
  %v5729 = vunpack.c.l.s4 1983009808
  %v5730 = vunpack.c.0.s8 %v5729
  %v5731 = vlaneseq
  %v5732 = vshrl.u32 %v5731, 7
  %v5733 = vsub.s32 %v5730, %v5732
  %v5734 = vrot.slane %v5720, %v5733
  %v5735 = vcombine.low %v5727, %v5734
  %v5736 = vcombine.low %v5194, %v5195
  %v5737 = vcombine.low %v5196, %v5197
  %v5739 = vunpack.c.l.s4 1983009808
  %v5740 = vunpack.c.0.s8 %v5739
  %v5741 = vlaneseq
  %v5742 = vshrl.u32 %v5741, 7
  %v5743 = vsub.s32 %v5740, %v5742
  %v5744 = vrot.slane %v5736, %v5743
  %v5746 = vunpack.c.l.s4 1983009808
  %v5747 = vunpack.c.0.s8 %v5746
  %v5748 = vlaneseq
  %v5749 = vshrl.u32 %v5748, 7
  %v5750 = vsub.s32 %v5747, %v5749
  %v5751 = vrot.slane %v5737, %v5750
  %v5752 = vcombine.low %v5744, %v5751
  %v5753 = vcombine.low %v5198, %v5199
  %v5754 = vcombine.low %v5200, %v5201
  %v5756 = vunpack.c.l.s4 1983009808
  %v5757 = vunpack.c.0.s8 %v5756
  %v5758 = vlaneseq
  %v5759 = vshrl.u32 %v5758, 7
  %v5760 = vsub.s32 %v5757, %v5759
  %v5761 = vrot.slane %v5753, %v5760
  %v5763 = vunpack.c.l.s4 1983009808
  %v5764 = vunpack.c.0.s8 %v5763
  %v5765 = vlaneseq
  %v5766 = vshrl.u32 %v5765, 7
  %v5767 = vsub.s32 %v5764, %v5766
  %v5768 = vrot.slane %v5754, %v5767
  %v5769 = vcombine.low %v5761, %v5768
  %v5770 = vcombine.low %v5202, %v5203
  %v5771 = vcombine.low %v5204, %v5205
  %v5773 = vunpack.c.l.s4 1983009808
  %v5774 = vunpack.c.0.s8 %v5773
  %v5775 = vlaneseq
  %v5776 = vshrl.u32 %v5775, 7
  %v5777 = vsub.s32 %v5774, %v5776
  %v5778 = vrot.slane %v5770, %v5777
  %v5780 = vunpack.c.l.s4 1983009808
  %v5781 = vunpack.c.0.s8 %v5780
  %v5782 = vlaneseq
  %v5783 = vshrl.u32 %v5782, 7
  %v5784 = vsub.s32 %v5781, %v5783
  %v5785 = vrot.slane %v5771, %v5784
  %v5786 = vcombine.low %v5778, %v5785
  %v5787 = vcombine.low %v5206, %v5207
  %v5788 = vcombine.low %v5208, %v5209
  %v5790 = vunpack.c.l.s4 1983009808
  %v5791 = vunpack.c.0.s8 %v5790
  %v5792 = vlaneseq
  %v5793 = vshrl.u32 %v5792, 7
  %v5794 = vsub.s32 %v5791, %v5793
  %v5795 = vrot.slane %v5787, %v5794
  %v5797 = vunpack.c.l.s4 1983009808
  %v5798 = vunpack.c.0.s8 %v5797
  %v5799 = vlaneseq
  %v5800 = vshrl.u32 %v5799, 7
  %v5801 = vsub.s32 %v5798, %v5800
  %v5802 = vrot.slane %v5788, %v5801
  %v5803 = vcombine.low %v5795, %v5802
  %v5804 = vcombine.low %v5210, %v5211
  %v5805 = vcombine.low %v5212, %v5213
  %v5807 = vunpack.c.l.s4 1983009808
  %v5808 = vunpack.c.0.s8 %v5807
  %v5809 = vlaneseq
  %v5810 = vshrl.u32 %v5809, 7
  %v5811 = vsub.s32 %v5808, %v5810
  %v5812 = vrot.slane %v5804, %v5811
  %v5814 = vunpack.c.l.s4 1983009808
  %v5815 = vunpack.c.0.s8 %v5814
  %v5816 = vlaneseq
  %v5817 = vshrl.u32 %v5816, 7
  %v5818 = vsub.s32 %v5815, %v5817
  %v5819 = vrot.slane %v5805, %v5818
  %v5820 = vcombine.low %v5812, %v5819
  %v5821 = vcombine.low %v5214, %v5215
  %v5822 = vcombine.low %v5216, %v5217
  %v5824 = vunpack.c.l.s4 1983009808
  %v5825 = vunpack.c.0.s8 %v5824
  %v5826 = vlaneseq
  %v5827 = vshrl.u32 %v5826, 7
  %v5828 = vsub.s32 %v5825, %v5827
  %v5829 = vrot.slane %v5821, %v5828
  %v5831 = vunpack.c.l.s4 1983009808
  %v5832 = vunpack.c.0.s8 %v5831
  %v5833 = vlaneseq
  %v5834 = vshrl.u32 %v5833, 7
  %v5835 = vsub.s32 %v5832, %v5834
  %v5836 = vrot.slane %v5822, %v5835
  %v5837 = vcombine.low %v5829, %v5836
  %v5838 = vcombine.low %v5218, %v5219
  %v5839 = vcombine.low %v5220, %v5221
  %v5841 = vunpack.c.l.s4 1983009808
  %v5842 = vunpack.c.0.s8 %v5841
  %v5843 = vlaneseq
  %v5844 = vshrl.u32 %v5843, 7
  %v5845 = vsub.s32 %v5842, %v5844
  %v5846 = vrot.slane %v5838, %v5845
  %v5848 = vunpack.c.l.s4 1983009808
  %v5849 = vunpack.c.0.s8 %v5848
  %v5850 = vlaneseq
  %v5851 = vshrl.u32 %v5850, 7
  %v5852 = vsub.s32 %v5849, %v5851
  %v5853 = vrot.slane %v5839, %v5852
  %v5854 = vcombine.low %v5846, %v5853
  %v5855 = vcombine.low %v5222, %v5223
  %v5856 = vcombine.low %v5224, %v5225
  %v5858 = vunpack.c.l.s4 1983009808
  %v5859 = vunpack.c.0.s8 %v5858
  %v5860 = vlaneseq
  %v5861 = vshrl.u32 %v5860, 7
  %v5862 = vsub.s32 %v5859, %v5861
  %v5863 = vrot.slane %v5855, %v5862
  %v5865 = vunpack.c.l.s4 1983009808
  %v5866 = vunpack.c.0.s8 %v5865
  %v5867 = vlaneseq
  %v5868 = vshrl.u32 %v5867, 7
  %v5869 = vsub.s32 %v5866, %v5868
  %v5870 = vrot.slane %v5856, %v5869
  %v5871 = vcombine.low %v5863, %v5870
  %v5872 = vcombine.low %v5226, %v5227
  %v5873 = vcombine.low %v5228, %v5229
  %v5875 = vunpack.c.l.s4 1983009808
  %v5876 = vunpack.c.0.s8 %v5875
  %v5877 = vlaneseq
  %v5878 = vshrl.u32 %v5877, 7
  %v5879 = vsub.s32 %v5876, %v5878
  %v5880 = vrot.slane %v5872, %v5879
  %v5882 = vunpack.c.l.s4 1983009808
  %v5883 = vunpack.c.0.s8 %v5882
  %v5884 = vlaneseq
  %v5885 = vshrl.u32 %v5884, 7
  %v5886 = vsub.s32 %v5883, %v5885
  %v5887 = vrot.slane %v5873, %v5886
  %v5888 = vcombine.low %v5880, %v5887
  %v5889 = vcombine.low %v5230, %v5231
  %v5890 = vcombine.low %v5232, %v5233
  %v5892 = vunpack.c.l.s4 1983009808
  %v5893 = vunpack.c.0.s8 %v5892
  %v5894 = vlaneseq
  %v5895 = vshrl.u32 %v5894, 7
  %v5896 = vsub.s32 %v5893, %v5895
  %v5897 = vrot.slane %v5889, %v5896
  %v5899 = vunpack.c.l.s4 1983009808
  %v5900 = vunpack.c.0.s8 %v5899
  %v5901 = vlaneseq
  %v5902 = vshrl.u32 %v5901, 7
  %v5903 = vsub.s32 %v5900, %v5902
  %v5904 = vrot.slane %v5890, %v5903
  %v5905 = vcombine.low %v5897, %v5904
  %5938 = vst [vmem:[%s5] sm:$0xff] %v5378
  %5939 = vst [vmem:[%s5 + $0x8] sm:$0xff] %v5395
  %5940 = vst [vmem:[%s5 + $0x10] sm:$0xff] %v5412
  %5941 = vst [vmem:[%s5 + $0x18] sm:$0xff] %v5429
  %5942 = vst [vmem:[%s5 + $0x20] sm:$0xff] %v5446
  %5943 = vst [vmem:[%s5 + $0x28] sm:$0xff] %v5463
  %5944 = vst [vmem:[%s5 + $0x30] sm:$0xff] %v5480
  %5945 = vst [vmem:[%s5 + $0x38] sm:$0xff] %v5497
  %5946 = vst [vmem:[%s5 + $0x40] sm:$0xff] %v5514
  %5947 = vst [vmem:[%s5 + $0x48] sm:$0xff] %v5531
  %5948 = vst [vmem:[%s5 + $0x50] sm:$0xff] %v5548
  %5949 = vst [vmem:[%s5 + $0x58] sm:$0xff] %v5565
  %5950 = vst [vmem:[%s5 + $0x60] sm:$0xff] %v5582
  %5951 = vst [vmem:[%s5 + $0x68] sm:$0xff] %v5599
  %5952 = vst [vmem:[%s5 + $0x70] sm:$0xff] %v5616
  %5953 = vst [vmem:[%s5 + $0x78] sm:$0xff] %v5633
  %5954 = vst [vmem:[%s5 + $0x80] sm:$0xff] %v5650
  %5955 = vst [vmem:[%s5 + $0x88] sm:$0xff] %v5667
  %5956 = vst [vmem:[%s5 + $0x90] sm:$0xff] %v5684
  %5957 = vst [vmem:[%s5 + $0x98] sm:$0xff] %v5701
  %5958 = vst [vmem:[%s5 + $0xa0] sm:$0xff] %v5718
  %5959 = vst [vmem:[%s5 + $0xa8] sm:$0xff] %v5735
  %5960 = vst [vmem:[%s5 + $0xb0] sm:$0xff] %v5752
  %5961 = vst [vmem:[%s5 + $0xb8] sm:$0xff] %v5769
  %5962 = vst [vmem:[%s5 + $0xc0] sm:$0xff] %v5786
  %5963 = vst [vmem:[%s5 + $0xc8] sm:$0xff] %v5803
  %5964 = vst [vmem:[%s5 + $0xd0] sm:$0xff] %v5820
  %5965 = vst [vmem:[%s5 + $0xd8] sm:$0xff] %v5837
  %5966 = vst [vmem:[%s5 + $0xe0] sm:$0xff] %v5854
  %5967 = vst [vmem:[%s5 + $0xe8] sm:$0xff] %v5871
  %5968 = vst [vmem:[%s5 + $0xf0] sm:$0xff] %v5888
  %5969 = vst [vmem:[%s5 + $0xf8] sm:$0xff] %v5905
  // Predicated region
  $region18: #{rgcn_link_predict_forward.2} parent=0 // pred_check
    _
  $region19: #{rgcn_link_predict_forward.2} parent=0 // pred_check_branch
    %5971 = sbr.rel (0) target = $region21
  $region20: #{rgcn_link_predict_forward.2} parent=0 // pred_region
    _
  $region21: #{rgcn_link_predict_forward.2} parent=0 // pred_fallthru
    _
  // Predicated region
  $region22: #{rgcn_link_predict_forward.2} parent=0 // pred_check
    _
  $region23: #{rgcn_link_predict_forward.2} parent=0 // pred_check_branch
    %5973 = sbr.rel (0) target = $region25
  $region24: #{rgcn_link_predict_forward.2} parent=0 // pred_region
    _
  $region25: #{rgcn_link_predict_forward.2} parent=0 // pred_fallthru
    _
  // Predicated region
  $region26: #{rgcn_link_predict_forward.2} parent=0 // pred_check
    _
  $region27: #{rgcn_link_predict_forward.2} parent=0 // pred_check_branch
    %5975 = sbr.rel (0) target = $region29
  $region28: #{rgcn_link_predict_forward.2} parent=0 // pred_region
    _
  $region29: #{rgcn_link_predict_forward.2} parent=0 // pred_fallthru
    _
  // Predicated region
  $region30: #{rgcn_link_predict_forward.2} parent=0 // pred_check
    _
  $region31: #{rgcn_link_predict_forward.2} parent=0 // pred_check_branch
    %5977 = sbr.rel (0) target = $region33
  $region32: #{rgcn_link_predict_forward.2} parent=0 // pred_region
    _
  $region33: #{rgcn_link_predict_forward.2} parent=0 // pred_fallthru
    _

</llo_original>
